<compile_context>
chip_gen: v7x
topology: tpu7x:2x2x1
jax: 0.10.0
libtpu: 0.0.40
codegen_flags: <defaults>
</compile_context>

<pallas_src>
import jax
import jax.numpy as jnp
from jax.experimental import pallas as pl
from jax.experimental.pallas import tpu as pltpu


def _up_kernel(w_ref, b_ref, x_ref, o_ref):
    """One (batch, row-tile) step of ConvTranspose2d(k=2, s=2).

    w_ref: SMEM f32[C_in*C_out*4]   PyTorch weight [C_in, C_out, 2, 2]
                                    flattened as ((ci*C_out + co)*2 + kh)*2 + kw.
    b_ref: SMEM f32[C_out]
    x_ref: VMEM (1, C_in, th, W)        native NCHW input tile.
    o_ref: VMEM (1, C_out, 2*th, 2*W)   native NCHW output tile.
    """
    _, c_in, th, w_dim = x_ref.shape
    c_out = o_ref.shape[1]
    f32 = jnp.float32

    # Constant 0/1 scatter matrices, built in-register (iota + compare):
    #   T[kw][w, j] = 1  iff  j == 2*w + kw   (lane / width interleave)
    #   S[kh][i, h] = 1  iff  i == 2*h + kh   (sublane / height interleave)
    tr = jax.lax.broadcasted_iota(jnp.int32, (w_dim, 2 * w_dim), 0)
    tc = jax.lax.broadcasted_iota(jnp.int32, (w_dim, 2 * w_dim), 1)
    T = [(tc == 2 * tr + kw).astype(f32) for kw in range(2)]

    sr = jax.lax.broadcasted_iota(jnp.int32, (2 * th, th), 0)
    sc = jax.lax.broadcasted_iota(jnp.int32, (2 * th, th), 1)
    S = [(sr == 2 * sc + kh).astype(f32) for kh in range(2)]

    # Load each input-channel plane once (c_in is small for this module).
    xs = [x_ref[0, ci].astype(f32) for ci in range(c_in)]

    for co in range(c_out):
        rows = None
        for kh in range(2):
            cols = None
            for kw in range(2):
                # Channel mix on the *small* (th, W) plane (VPU, scalar weights).
                m = None
                for ci in range(c_in):
                    w_s = w_ref[((ci * c_out + co) * 2 + kh) * 2 + kw]
                    term = xs[ci] * w_s
                    m = term if m is None else m + term
                # Width interleave: (th, W) @ (W, 2W) -> (th, 2W) on the MXU.
                col = jnp.dot(m, T[kw], preferred_element_type=f32)
                cols = col if cols is None else cols + col
            # Height interleave: (2th, th) @ (th, 2W) -> (2th, 2W) on the MXU.
            row = jnp.dot(S[kh], cols, preferred_element_type=f32)
            rows = row if rows is None else rows + row
        o_ref[0, co] = (rows + b_ref[co]).astype(o_ref.dtype)


def _padded_bytes(rows, cols, itemsize):
    """Bytes of one 2-D VMEM tile after (8, 128) layout padding."""
    pr = -(-rows // 8) * 8
    pc = -(-cols // 128) * 128
    return pr * pc * itemsize


def _pick_tile_rows(H, W, c_in, c_out, in_item, out_item,
                    budget_bytes=8 * 1024 * 1024):
    """Largest row tile th (divisor of H; multiple of 8 or == H) whose
    double-buffered in/out blocks plus f32 working set fit the VMEM budget."""

    def vmem_bytes(th):
        in_blk = c_in * _padded_bytes(th, W, in_item)
        out_blk = c_out * _padded_bytes(2 * th, 2 * W, out_item)
        # f32 working set: c_in small planes + a handful of output-sized temps.
        work = c_in * _padded_bytes(th, W, 4) + 4 * _padded_bytes(2 * th, 2 * W, 4)
        return 2 * (in_blk + out_blk) + work   # x2 for pipeline double-buffering

    cands = {H}
    for d in range(8, H, 8):
        if H % d == 0:
            cands.add(d)
    for th in sorted(cands, reverse=True):
        if vmem_bytes(th) <= budget_bytes:
            return th
    return min(cands)


def up_forward(x, weight, bias, *, tile_rows=None,
               vmem_limit_bytes=32 * 1024 * 1024):
    """Forward of `up` (ConvTranspose2d(in_ch, in_ch, 2, stride=2)).

    x:      [N, C_in, H, W]      (NCHW, PyTorch convention)
    weight: [C_in, C_out, 2, 2]  (PyTorch ConvTranspose2d layout)
    bias:   [C_out]
    returns [N, C_out, 2H, 2W]   (NCHW)
    """
    N, c_in, H, W = x.shape
    c_out = weight.shape[1]
    assert weight.shape == (c_in, c_out, 2, 2)
    assert bias.shape == (c_out,)

    th = tile_rows if tile_rows is not None else _pick_tile_rows(
        H, W, c_in, c_out,
        jnp.dtype(x.dtype).itemsize, jnp.dtype(x.dtype).itemsize)
    assert H % th == 0 and (th % 8 == 0 or th == H), (H, th)

    w_flat = weight.astype(jnp.float32).reshape(-1)
    b_vec = bias.astype(jnp.float32).reshape(-1)

    grid = (N, H // th)
    return pl.pallas_call(
        _up_kernel,
        out_shape=jax.ShapeDtypeStruct((N, c_out, 2 * H, 2 * W), x.dtype),
        grid_spec=pltpu.PrefetchScalarGridSpec(
            num_scalar_prefetch=0,
            grid=grid,
            in_specs=[
                pl.BlockSpec(memory_space=pltpu.MemorySpace.SMEM),   # weights
                pl.BlockSpec(memory_space=pltpu.MemorySpace.SMEM),   # bias
                pl.BlockSpec((1, c_in, th, W), lambda n, i: (n, 0, i, 0)),
            ],
            out_specs=pl.BlockSpec((1, c_out, 2 * th, 2 * W),
                                   lambda n, i: (n, 0, i, 0)),
        ),
        compiler_params=pltpu.CompilerParams(
            dimension_semantics=("parallel", "parallel"),
            vmem_limit_bytes=vmem_limit_bytes,
        ),
    )(w_flat, b_vec, x)


def up_reference(x, weight, bias):
    """Pure-JAX reference of ConvTranspose2d(k=2, s=2)."""
    N, C_in, H, W = x.shape
    C_out = weight.shape[1]
    # out[n, co, 2h+kh, 2w+kw] = sum_ci x[n,ci,h,w] * weight[ci,co,kh,kw] + b[co]
    y = jnp.einsum("nchw,cokl->nohwkl", x, weight)
    y = jnp.transpose(y, (0, 1, 2, 4, 3, 5)).reshape(N, C_out, 2 * H, 2 * W)
    return y + bias[None, :, None, None]


if __name__ == "__main__":
    key = jax.random.PRNGKey(0)
    k_x, k_w, k_b = jax.random.split(key, 3)

    # Small shapes consistent with the module: ConvTranspose2d(4, 4, 2, 2).
    N, C, H, W = 2, 4, 16, 16
    # Test values are snapped to the bf16 grid so the check is independent of
    # the TPU matmul precision mode (all products are then exact in f32).
    x = jax.random.normal(k_x, (N, C, H, W), dtype=jnp.float32)
    x = x.astype(jnp.bfloat16).astype(jnp.float32)
    weight = (jax.random.normal(k_w, (C, C, 2, 2), dtype=jnp.float32) * 0.1)
    weight = weight.astype(jnp.bfloat16).astype(jnp.float32)
    bias = jax.random.normal(k_b, (C,), dtype=jnp.float32) * 0.1

    out = jax.block_until_ready(up_forward(x, weight, bias))
    ref = up_reference(x, weight, bias)

    assert out.shape == (N, C, 2 * H, 2 * W)
    max_err = float(jnp.max(jnp.abs(out - ref)))
    assert jnp.allclose(out, ref, atol=1e-4, rtol=1e-4), max_err
    print("KERNEL_OK")
</pallas_src>

<mosaic_0001>
module attributes {stable_mosaic.version = 11 : i64} {
  func.func @_up_kernel(%arg0: i32, %arg1: i32, %arg2: memref<64xf32, #tpu.memory_space<smem>>, %arg3: memref<4xf32, #tpu.memory_space<smem>>, %arg4: memref<1x4x16x16xf32, #tpu.memory_space<vmem>>, %arg5: memref<1x4x32x32xf32, #tpu.memory_space<vmem>>) attributes {dimension_semantics = [#tpu.dimension_semantics<parallel>, #tpu.dimension_semantics<parallel>], iteration_bounds = array<i64: 2, 1>, scalar_prefetch = 0 : i64, scratch_operands = 0 : i64, tpu.core_type = #tpu.core_type<tc>, window_params = [{transform_indices = @transform_0, window_bounds = array<i64: 64>}, {transform_indices = @transform_1, window_bounds = array<i64: 4>}, {transform_indices = @transform_2, window_bounds = array<i64: 1, 4, 16, 16>}, {transform_indices = @transform_3, window_bounds = array<i64: 1, 4, 32, 32>}]} {
    %0 = tpu.iota {dimensions = array<i32: 0>} : vector<16x32xi32>
    %1 = tpu.iota {dimensions = array<i32: 1>} : vector<16x32xi32>
    %c2_i32 = arith.constant 2 : i32
    %2 = vector.broadcast %c2_i32 : i32 to vector<16x32xi32>
    %3 = arith.muli %2, %0 : vector<16x32xi32>
    %c0_i32 = arith.constant 0 : i32
    %4 = vector.broadcast %c0_i32 : i32 to vector<16x32xi32>
    %5 = arith.addi %3, %4 : vector<16x32xi32>
    %6 = arith.cmpi eq, %1, %5 : vector<16x32xi32>
    %7 = arith.extui %6 : vector<16x32xi1> to vector<16x32xi32>
    %8 = arith.sitofp %7 : vector<16x32xi32> to vector<16x32xf32>
    %c2_i32_0 = arith.constant 2 : i32
    %9 = vector.broadcast %c2_i32_0 : i32 to vector<16x32xi32>
    %10 = arith.muli %9, %0 : vector<16x32xi32>
    %c1_i32 = arith.constant 1 : i32
    %11 = vector.broadcast %c1_i32 : i32 to vector<16x32xi32>
    %12 = arith.addi %10, %11 : vector<16x32xi32>
    %13 = arith.cmpi eq, %1, %12 : vector<16x32xi32>
    %14 = arith.extui %13 : vector<16x32xi1> to vector<16x32xi32>
    %15 = arith.sitofp %14 : vector<16x32xi32> to vector<16x32xf32>
    %16 = tpu.iota {dimensions = array<i32: 0>} : vector<32x16xi32>
    %17 = tpu.iota {dimensions = array<i32: 1>} : vector<32x16xi32>
    %c2_i32_1 = arith.constant 2 : i32
    %18 = vector.broadcast %c2_i32_1 : i32 to vector<32x16xi32>
    %19 = arith.muli %18, %17 : vector<32x16xi32>
    %c0_i32_2 = arith.constant 0 : i32
    %20 = vector.broadcast %c0_i32_2 : i32 to vector<32x16xi32>
    %21 = arith.addi %19, %20 : vector<32x16xi32>
    %22 = arith.cmpi eq, %16, %21 : vector<32x16xi32>
    %23 = arith.extui %22 : vector<32x16xi1> to vector<32x16xi32>
    %24 = arith.sitofp %23 : vector<32x16xi32> to vector<32x16xf32>
    %c2_i32_3 = arith.constant 2 : i32
    %25 = vector.broadcast %c2_i32_3 : i32 to vector<32x16xi32>
    %26 = arith.muli %25, %17 : vector<32x16xi32>
    %c1_i32_4 = arith.constant 1 : i32
    %27 = vector.broadcast %c1_i32_4 : i32 to vector<32x16xi32>
    %28 = arith.addi %26, %27 : vector<32x16xi32>
    %29 = arith.cmpi eq, %16, %28 : vector<32x16xi32>
    %30 = arith.extui %29 : vector<32x16xi1> to vector<32x16xi32>
    %31 = arith.sitofp %30 : vector<32x16xi32> to vector<32x16xf32>
    %c0 = arith.constant 0 : index
    %c0_5 = arith.constant 0 : index
    %c0_6 = arith.constant 0 : index
    %c0_7 = arith.constant 0 : index
    %32 = vector.load %arg4[%c0, %c0_5, %c0_6, %c0_7] : memref<1x4x16x16xf32, #tpu.memory_space<vmem>>, vector<1x1x16x16xf32>
    %33 = vector.shape_cast %32 : vector<1x1x16x16xf32> to vector<16x16xf32>
    %c0_8 = arith.constant 0 : index
    %c1 = arith.constant 1 : index
    %c0_9 = arith.constant 0 : index
    %c0_10 = arith.constant 0 : index
    %34 = vector.load %arg4[%c0_8, %c1, %c0_9, %c0_10] : memref<1x4x16x16xf32, #tpu.memory_space<vmem>>, vector<1x1x16x16xf32>
    %35 = vector.shape_cast %34 : vector<1x1x16x16xf32> to vector<16x16xf32>
    %c0_11 = arith.constant 0 : index
    %c2 = arith.constant 2 : index
    %c0_12 = arith.constant 0 : index
    %c0_13 = arith.constant 0 : index
    %36 = vector.load %arg4[%c0_11, %c2, %c0_12, %c0_13] : memref<1x4x16x16xf32, #tpu.memory_space<vmem>>, vector<1x1x16x16xf32>
    %37 = vector.shape_cast %36 : vector<1x1x16x16xf32> to vector<16x16xf32>
    %c0_14 = arith.constant 0 : index
    %c3 = arith.constant 3 : index
    %c0_15 = arith.constant 0 : index
    %c0_16 = arith.constant 0 : index
    %38 = vector.load %arg4[%c0_14, %c3, %c0_15, %c0_16] : memref<1x4x16x16xf32, #tpu.memory_space<vmem>>, vector<1x1x16x16xf32>
    %39 = vector.shape_cast %38 : vector<1x1x16x16xf32> to vector<16x16xf32>
    %c0_17 = arith.constant 0 : index
    %40 = memref.load %arg2[%c0_17] : memref<64xf32, #tpu.memory_space<smem>>
    %41 = vector.broadcast %40 : f32 to vector<16x16xf32>
    %42 = arith.mulf %33, %41 : vector<16x16xf32>
    %c16 = arith.constant 16 : index
    %43 = memref.load %arg2[%c16] : memref<64xf32, #tpu.memory_space<smem>>
    %44 = vector.broadcast %43 : f32 to vector<16x16xf32>
    %45 = arith.mulf %35, %44 : vector<16x16xf32>
    %46 = arith.addf %42, %45 : vector<16x16xf32>
    %c32 = arith.constant 32 : index
    %47 = memref.load %arg2[%c32] : memref<64xf32, #tpu.memory_space<smem>>
    %48 = vector.broadcast %47 : f32 to vector<16x16xf32>
    %49 = arith.mulf %37, %48 : vector<16x16xf32>
    %50 = arith.addf %46, %49 : vector<16x16xf32>
    %c48 = arith.constant 48 : index
    %51 = memref.load %arg2[%c48] : memref<64xf32, #tpu.memory_space<smem>>
    %52 = vector.broadcast %51 : f32 to vector<16x16xf32>
    %53 = arith.mulf %39, %52 : vector<16x16xf32>
    %54 = arith.addf %50, %53 : vector<16x16xf32>
    %cst = arith.constant dense<0.000000e+00> : vector<16x32xf32>
    %55 = tpu.matmul %54, %8, %cst {dimension_numbers = #tpu.dot_dimension_numbers<[1], [0], [0], [1], [0, 0, 1, 1], [], []>} : vector<16x16xf32>, vector<16x32xf32>, vector<16x32xf32> -> vector<16x32xf32>
    %c1_18 = arith.constant 1 : index
    %56 = memref.load %arg2[%c1_18] : memref<64xf32, #tpu.memory_space<smem>>
    %57 = vector.broadcast %56 : f32 to vector<16x16xf32>
    %58 = arith.mulf %33, %57 : vector<16x16xf32>
    %c17 = arith.constant 17 : index
    %59 = memref.load %arg2[%c17] : memref<64xf32, #tpu.memory_space<smem>>
    %60 = vector.broadcast %59 : f32 to vector<16x16xf32>
    %61 = arith.mulf %35, %60 : vector<16x16xf32>
    %62 = arith.addf %58, %61 : vector<16x16xf32>
    %c33 = arith.constant 33 : index
    %63 = memref.load %arg2[%c33] : memref<64xf32, #tpu.memory_space<smem>>
    %64 = vector.broadcast %63 : f32 to vector<16x16xf32>
    %65 = arith.mulf %37, %64 : vector<16x16xf32>
    %66 = arith.addf %62, %65 : vector<16x16xf32>
    %c49 = arith.constant 49 : index
    %67 = memref.load %arg2[%c49] : memref<64xf32, #tpu.memory_space<smem>>
    %68 = vector.broadcast %67 : f32 to vector<16x16xf32>
    %69 = arith.mulf %39, %68 : vector<16x16xf32>
    %70 = arith.addf %66, %69 : vector<16x16xf32>
    %cst_19 = arith.constant dense<0.000000e+00> : vector<16x32xf32>
    %71 = tpu.matmul %70, %15, %cst_19 {dimension_numbers = #tpu.dot_dimension_numbers<[1], [0], [0], [1], [0, 0, 1, 1], [], []>} : vector<16x16xf32>, vector<16x32xf32>, vector<16x32xf32> -> vector<16x32xf32>
    %72 = arith.addf %55, %71 : vector<16x32xf32>
    %cst_20 = arith.constant dense<0.000000e+00> : vector<32x32xf32>
    %73 = tpu.matmul %24, %72, %cst_20 {dimension_numbers = #tpu.dot_dimension_numbers<[1], [0], [0], [1], [0, 0, 1, 1], [], []>} : vector<32x16xf32>, vector<16x32xf32>, vector<32x32xf32> -> vector<32x32xf32>
    %c2_21 = arith.constant 2 : index
    %74 = memref.load %arg2[%c2_21] : memref<64xf32, #tpu.memory_space<smem>>
    %75 = vector.broadcast %74 : f32 to vector<16x16xf32>
    %76 = arith.mulf %33, %75 : vector<16x16xf32>
    %c18 = arith.constant 18 : index
    %77 = memref.load %arg2[%c18] : memref<64xf32, #tpu.memory_space<smem>>
    %78 = vector.broadcast %77 : f32 to vector<16x16xf32>
    %79 = arith.mulf %35, %78 : vector<16x16xf32>
    %80 = arith.addf %76, %79 : vector<16x16xf32>
    %c34 = arith.constant 34 : index
    %81 = memref.load %arg2[%c34] : memref<64xf32, #tpu.memory_space<smem>>
    %82 = vector.broadcast %81 : f32 to vector<16x16xf32>
    %83 = arith.mulf %37, %82 : vector<16x16xf32>
    %84 = arith.addf %80, %83 : vector<16x16xf32>
    %c50 = arith.constant 50 : index
    %85 = memref.load %arg2[%c50] : memref<64xf32, #tpu.memory_space<smem>>
    %86 = vector.broadcast %85 : f32 to vector<16x16xf32>
    %87 = arith.mulf %39, %86 : vector<16x16xf32>
    %88 = arith.addf %84, %87 : vector<16x16xf32>
    %cst_22 = arith.constant dense<0.000000e+00> : vector<16x32xf32>
    %89 = tpu.matmul %88, %8, %cst_22 {dimension_numbers = #tpu.dot_dimension_numbers<[1], [0], [0], [1], [0, 0, 1, 1], [], []>} : vector<16x16xf32>, vector<16x32xf32>, vector<16x32xf32> -> vector<16x32xf32>
    %c3_23 = arith.constant 3 : index
    %90 = memref.load %arg2[%c3_23] : memref<64xf32, #tpu.memory_space<smem>>
    %91 = vector.broadcast %90 : f32 to vector<16x16xf32>
    %92 = arith.mulf %33, %91 : vector<16x16xf32>
    %c19 = arith.constant 19 : index
    %93 = memref.load %arg2[%c19] : memref<64xf32, #tpu.memory_space<smem>>
    %94 = vector.broadcast %93 : f32 to vector<16x16xf32>
    %95 = arith.mulf %35, %94 : vector<16x16xf32>
    %96 = arith.addf %92, %95 : vector<16x16xf32>
    %c35 = arith.constant 35 : index
    %97 = memref.load %arg2[%c35] : memref<64xf32, #tpu.memory_space<smem>>
    %98 = vector.broadcast %97 : f32 to vector<16x16xf32>
    %99 = arith.mulf %37, %98 : vector<16x16xf32>
    %100 = arith.addf %96, %99 : vector<16x16xf32>
    %c51 = arith.constant 51 : index
    %101 = memref.load %arg2[%c51] : memref<64xf32, #tpu.memory_space<smem>>
    %102 = vector.broadcast %101 : f32 to vector<16x16xf32>
    %103 = arith.mulf %39, %102 : vector<16x16xf32>
    %104 = arith.addf %100, %103 : vector<16x16xf32>
    %cst_24 = arith.constant dense<0.000000e+00> : vector<16x32xf32>
    %105 = tpu.matmul %104, %15, %cst_24 {dimension_numbers = #tpu.dot_dimension_numbers<[1], [0], [0], [1], [0, 0, 1, 1], [], []>} : vector<16x16xf32>, vector<16x32xf32>, vector<16x32xf32> -> vector<16x32xf32>
    %106 = arith.addf %89, %105 : vector<16x32xf32>
    %cst_25 = arith.constant dense<0.000000e+00> : vector<32x32xf32>
    %107 = tpu.matmul %31, %106, %cst_25 {dimension_numbers = #tpu.dot_dimension_numbers<[1], [0], [0], [1], [0, 0, 1, 1], [], []>} : vector<32x16xf32>, vector<16x32xf32>, vector<32x32xf32> -> vector<32x32xf32>
    %108 = arith.addf %73, %107 : vector<32x32xf32>
    %c0_26 = arith.constant 0 : index
    %109 = memref.load %arg3[%c0_26] : memref<4xf32, #tpu.memory_space<smem>>
    %110 = vector.broadcast %109 : f32 to vector<32x32xf32>
    %111 = arith.addf %108, %110 : vector<32x32xf32>
    %c0_27 = arith.constant 0 : index
    %c0_28 = arith.constant 0 : index
    %c0_29 = arith.constant 0 : index
    %c0_30 = arith.constant 0 : index
    %112 = vector.load %arg5[%c0_27, %c0_28, %c0_29, %c0_30] : memref<1x4x32x32xf32, #tpu.memory_space<vmem>>, vector<1x1x32x32xf32>
    %113 = vector.shape_cast %112 : vector<1x1x32x32xf32> to vector<32x32xf32>
    %114 = vector.shape_cast %111 : vector<32x32xf32> to vector<1x1x32x32xf32>
    tpu.vector_store %arg5[%c0_27, %c0_28, %c0_29, %c0_30], %114 {strides = array<i32>} : memref<1x4x32x32xf32, #tpu.memory_space<vmem>>, vector<1x1x32x32xf32>,
    %c4 = arith.constant 4 : index
    %115 = memref.load %arg2[%c4] : memref<64xf32, #tpu.memory_space<smem>>
    %116 = vector.broadcast %115 : f32 to vector<16x16xf32>
    %117 = arith.mulf %33, %116 : vector<16x16xf32>
    %c20 = arith.constant 20 : index
    %118 = memref.load %arg2[%c20] : memref<64xf32, #tpu.memory_space<smem>>
    %119 = vector.broadcast %118 : f32 to vector<16x16xf32>
    %120 = arith.mulf %35, %119 : vector<16x16xf32>
    %121 = arith.addf %117, %120 : vector<16x16xf32>
    %c36 = arith.constant 36 : index
    %122 = memref.load %arg2[%c36] : memref<64xf32, #tpu.memory_space<smem>>
    %123 = vector.broadcast %122 : f32 to vector<16x16xf32>
    %124 = arith.mulf %37, %123 : vector<16x16xf32>
    %125 = arith.addf %121, %124 : vector<16x16xf32>
    %c52 = arith.constant 52 : index
    %126 = memref.load %arg2[%c52] : memref<64xf32, #tpu.memory_space<smem>>
    %127 = vector.broadcast %126 : f32 to vector<16x16xf32>
    %128 = arith.mulf %39, %127 : vector<16x16xf32>
    %129 = arith.addf %125, %128 : vector<16x16xf32>
    %cst_31 = arith.constant dense<0.000000e+00> : vector<16x32xf32>
    %130 = tpu.matmul %129, %8, %cst_31 {dimension_numbers = #tpu.dot_dimension_numbers<[1], [0], [0], [1], [0, 0, 1, 1], [], []>} : vector<16x16xf32>, vector<16x32xf32>, vector<16x32xf32> -> vector<16x32xf32>
    %c5 = arith.constant 5 : index
    %131 = memref.load %arg2[%c5] : memref<64xf32, #tpu.memory_space<smem>>
    %132 = vector.broadcast %131 : f32 to vector<16x16xf32>
    %133 = arith.mulf %33, %132 : vector<16x16xf32>
    %c21 = arith.constant 21 : index
    %134 = memref.load %arg2[%c21] : memref<64xf32, #tpu.memory_space<smem>>
    %135 = vector.broadcast %134 : f32 to vector<16x16xf32>
    %136 = arith.mulf %35, %135 : vector<16x16xf32>
    %137 = arith.addf %133, %136 : vector<16x16xf32>
    %c37 = arith.constant 37 : index
    %138 = memref.load %arg2[%c37] : memref<64xf32, #tpu.memory_space<smem>>
    %139 = vector.broadcast %138 : f32 to vector<16x16xf32>
    %140 = arith.mulf %37, %139 : vector<16x16xf32>
    %141 = arith.addf %137, %140 : vector<16x16xf32>
    %c53 = arith.constant 53 : index
    %142 = memref.load %arg2[%c53] : memref<64xf32, #tpu.memory_space<smem>>
    %143 = vector.broadcast %142 : f32 to vector<16x16xf32>
    %144 = arith.mulf %39, %143 : vector<16x16xf32>
    %145 = arith.addf %141, %144 : vector<16x16xf32>
    %cst_32 = arith.constant dense<0.000000e+00> : vector<16x32xf32>
    %146 = tpu.matmul %145, %15, %cst_32 {dimension_numbers = #tpu.dot_dimension_numbers<[1], [0], [0], [1], [0, 0, 1, 1], [], []>} : vector<16x16xf32>, vector<16x32xf32>, vector<16x32xf32> -> vector<16x32xf32>
    %147 = arith.addf %130, %146 : vector<16x32xf32>
    %cst_33 = arith.constant dense<0.000000e+00> : vector<32x32xf32>
    %148 = tpu.matmul %24, %147, %cst_33 {dimension_numbers = #tpu.dot_dimension_numbers<[1], [0], [0], [1], [0, 0, 1, 1], [], []>} : vector<32x16xf32>, vector<16x32xf32>, vector<32x32xf32> -> vector<32x32xf32>
    %c6 = arith.constant 6 : index
    %149 = memref.load %arg2[%c6] : memref<64xf32, #tpu.memory_space<smem>>
    %150 = vector.broadcast %149 : f32 to vector<16x16xf32>
    %151 = arith.mulf %33, %150 : vector<16x16xf32>
    %c22 = arith.constant 22 : index
    %152 = memref.load %arg2[%c22] : memref<64xf32, #tpu.memory_space<smem>>
    %153 = vector.broadcast %152 : f32 to vector<16x16xf32>
    %154 = arith.mulf %35, %153 : vector<16x16xf32>
    %155 = arith.addf %151, %154 : vector<16x16xf32>
    %c38 = arith.constant 38 : index
    %156 = memref.load %arg2[%c38] : memref<64xf32, #tpu.memory_space<smem>>
    %157 = vector.broadcast %156 : f32 to vector<16x16xf32>
    %158 = arith.mulf %37, %157 : vector<16x16xf32>
    %159 = arith.addf %155, %158 : vector<16x16xf32>
    %c54 = arith.constant 54 : index
    %160 = memref.load %arg2[%c54] : memref<64xf32, #tpu.memory_space<smem>>
    %161 = vector.broadcast %160 : f32 to vector<16x16xf32>
    %162 = arith.mulf %39, %161 : vector<16x16xf32>
    %163 = arith.addf %159, %162 : vector<16x16xf32>
    %cst_34 = arith.constant dense<0.000000e+00> : vector<16x32xf32>
    %164 = tpu.matmul %163, %8, %cst_34 {dimension_numbers = #tpu.dot_dimension_numbers<[1], [0], [0], [1], [0, 0, 1, 1], [], []>} : vector<16x16xf32>, vector<16x32xf32>, vector<16x32xf32> -> vector<16x32xf32>
    %c7 = arith.constant 7 : index
    %165 = memref.load %arg2[%c7] : memref<64xf32, #tpu.memory_space<smem>>
    %166 = vector.broadcast %165 : f32 to vector<16x16xf32>
    %167 = arith.mulf %33, %166 : vector<16x16xf32>
    %c23 = arith.constant 23 : index
    %168 = memref.load %arg2[%c23] : memref<64xf32, #tpu.memory_space<smem>>
    %169 = vector.broadcast %168 : f32 to vector<16x16xf32>
    %170 = arith.mulf %35, %169 : vector<16x16xf32>
    %171 = arith.addf %167, %170 : vector<16x16xf32>
    %c39 = arith.constant 39 : index
    %172 = memref.load %arg2[%c39] : memref<64xf32, #tpu.memory_space<smem>>
    %173 = vector.broadcast %172 : f32 to vector<16x16xf32>
    %174 = arith.mulf %37, %173 : vector<16x16xf32>
    %175 = arith.addf %171, %174 : vector<16x16xf32>
    %c55 = arith.constant 55 : index
    %176 = memref.load %arg2[%c55] : memref<64xf32, #tpu.memory_space<smem>>
    %177 = vector.broadcast %176 : f32 to vector<16x16xf32>
    %178 = arith.mulf %39, %177 : vector<16x16xf32>
    %179 = arith.addf %175, %178 : vector<16x16xf32>
    %cst_35 = arith.constant dense<0.000000e+00> : vector<16x32xf32>
    %180 = tpu.matmul %179, %15, %cst_35 {dimension_numbers = #tpu.dot_dimension_numbers<[1], [0], [0], [1], [0, 0, 1, 1], [], []>} : vector<16x16xf32>, vector<16x32xf32>, vector<16x32xf32> -> vector<16x32xf32>
    %181 = arith.addf %164, %180 : vector<16x32xf32>
    %cst_36 = arith.constant dense<0.000000e+00> : vector<32x32xf32>
    %182 = tpu.matmul %31, %181, %cst_36 {dimension_numbers = #tpu.dot_dimension_numbers<[1], [0], [0], [1], [0, 0, 1, 1], [], []>} : vector<32x16xf32>, vector<16x32xf32>, vector<32x32xf32> -> vector<32x32xf32>
    %183 = arith.addf %148, %182 : vector<32x32xf32>
    %c1_37 = arith.constant 1 : index
    %184 = memref.load %arg3[%c1_37] : memref<4xf32, #tpu.memory_space<smem>>
    %185 = vector.broadcast %184 : f32 to vector<32x32xf32>
    %186 = arith.addf %183, %185 : vector<32x32xf32>
    %c0_38 = arith.constant 0 : index
    %c1_39 = arith.constant 1 : index
    %c0_40 = arith.constant 0 : index
    %c0_41 = arith.constant 0 : index
    %187 = vector.load %arg5[%c0_38, %c1_39, %c0_40, %c0_41] : memref<1x4x32x32xf32, #tpu.memory_space<vmem>>, vector<1x1x32x32xf32>
    %188 = vector.shape_cast %187 : vector<1x1x32x32xf32> to vector<32x32xf32>
    %189 = vector.shape_cast %186 : vector<32x32xf32> to vector<1x1x32x32xf32>
    tpu.vector_store %arg5[%c0_38, %c1_39, %c0_40, %c0_41], %189 {strides = array<i32>} : memref<1x4x32x32xf32, #tpu.memory_space<vmem>>, vector<1x1x32x32xf32>,
    %c8 = arith.constant 8 : index
    %190 = memref.load %arg2[%c8] : memref<64xf32, #tpu.memory_space<smem>>
    %191 = vector.broadcast %190 : f32 to vector<16x16xf32>
    %192 = arith.mulf %33, %191 : vector<16x16xf32>
    %c24 = arith.constant 24 : index
    %193 = memref.load %arg2[%c24] : memref<64xf32, #tpu.memory_space<smem>>
    %194 = vector.broadcast %193 : f32 to vector<16x16xf32>
    %195 = arith.mulf %35, %194 : vector<16x16xf32>
    %196 = arith.addf %192, %195 : vector<16x16xf32>
    %c40 = arith.constant 40 : index
    %197 = memref.load %arg2[%c40] : memref<64xf32, #tpu.memory_space<smem>>
    %198 = vector.broadcast %197 : f32 to vector<16x16xf32>
    %199 = arith.mulf %37, %198 : vector<16x16xf32>
    %200 = arith.addf %196, %199 : vector<16x16xf32>
    %c56 = arith.constant 56 : index
    %201 = memref.load %arg2[%c56] : memref<64xf32, #tpu.memory_space<smem>>
    %202 = vector.broadcast %201 : f32 to vector<16x16xf32>
    %203 = arith.mulf %39, %202 : vector<16x16xf32>
    %204 = arith.addf %200, %203 : vector<16x16xf32>
    %cst_42 = arith.constant dense<0.000000e+00> : vector<16x32xf32>
    %205 = tpu.matmul %204, %8, %cst_42 {dimension_numbers = #tpu.dot_dimension_numbers<[1], [0], [0], [1], [0, 0, 1, 1], [], []>} : vector<16x16xf32>, vector<16x32xf32>, vector<16x32xf32> -> vector<16x32xf32>
    %c9 = arith.constant 9 : index
    %206 = memref.load %arg2[%c9] : memref<64xf32, #tpu.memory_space<smem>>
    %207 = vector.broadcast %206 : f32 to vector<16x16xf32>
    %208 = arith.mulf %33, %207 : vector<16x16xf32>
    %c25 = arith.constant 25 : index
    %209 = memref.load %arg2[%c25] : memref<64xf32, #tpu.memory_space<smem>>
    %210 = vector.broadcast %209 : f32 to vector<16x16xf32>
    %211 = arith.mulf %35, %210 : vector<16x16xf32>
    %212 = arith.addf %208, %211 : vector<16x16xf32>
    %c41 = arith.constant 41 : index
    %213 = memref.load %arg2[%c41] : memref<64xf32, #tpu.memory_space<smem>>
    %214 = vector.broadcast %213 : f32 to vector<16x16xf32>
    %215 = arith.mulf %37, %214 : vector<16x16xf32>
    %216 = arith.addf %212, %215 : vector<16x16xf32>
    %c57 = arith.constant 57 : index
    %217 = memref.load %arg2[%c57] : memref<64xf32, #tpu.memory_space<smem>>
    %218 = vector.broadcast %217 : f32 to vector<16x16xf32>
    %219 = arith.mulf %39, %218 : vector<16x16xf32>
    %220 = arith.addf %216, %219 : vector<16x16xf32>
    %cst_43 = arith.constant dense<0.000000e+00> : vector<16x32xf32>
    %221 = tpu.matmul %220, %15, %cst_43 {dimension_numbers = #tpu.dot_dimension_numbers<[1], [0], [0], [1], [0, 0, 1, 1], [], []>} : vector<16x16xf32>, vector<16x32xf32>, vector<16x32xf32> -> vector<16x32xf32>
    %222 = arith.addf %205, %221 : vector<16x32xf32>
    %cst_44 = arith.constant dense<0.000000e+00> : vector<32x32xf32>
    %223 = tpu.matmul %24, %222, %cst_44 {dimension_numbers = #tpu.dot_dimension_numbers<[1], [0], [0], [1], [0, 0, 1, 1], [], []>} : vector<32x16xf32>, vector<16x32xf32>, vector<32x32xf32> -> vector<32x32xf32>
    %c10 = arith.constant 10 : index
    %224 = memref.load %arg2[%c10] : memref<64xf32, #tpu.memory_space<smem>>
    %225 = vector.broadcast %224 : f32 to vector<16x16xf32>
    %226 = arith.mulf %33, %225 : vector<16x16xf32>
    %c26 = arith.constant 26 : index
    %227 = memref.load %arg2[%c26] : memref<64xf32, #tpu.memory_space<smem>>
    %228 = vector.broadcast %227 : f32 to vector<16x16xf32>
    %229 = arith.mulf %35, %228 : vector<16x16xf32>
    %230 = arith.addf %226, %229 : vector<16x16xf32>
    %c42 = arith.constant 42 : index
    %231 = memref.load %arg2[%c42] : memref<64xf32, #tpu.memory_space<smem>>
    %232 = vector.broadcast %231 : f32 to vector<16x16xf32>
    %233 = arith.mulf %37, %232 : vector<16x16xf32>
    %234 = arith.addf %230, %233 : vector<16x16xf32>
    %c58 = arith.constant 58 : index
    %235 = memref.load %arg2[%c58] : memref<64xf32, #tpu.memory_space<smem>>
    %236 = vector.broadcast %235 : f32 to vector<16x16xf32>
    %237 = arith.mulf %39, %236 : vector<16x16xf32>
    %238 = arith.addf %234, %237 : vector<16x16xf32>
    %cst_45 = arith.constant dense<0.000000e+00> : vector<16x32xf32>
    %239 = tpu.matmul %238, %8, %cst_45 {dimension_numbers = #tpu.dot_dimension_numbers<[1], [0], [0], [1], [0, 0, 1, 1], [], []>} : vector<16x16xf32>, vector<16x32xf32>, vector<16x32xf32> -> vector<16x32xf32>
    %c11 = arith.constant 11 : index
    %240 = memref.load %arg2[%c11] : memref<64xf32, #tpu.memory_space<smem>>
    %241 = vector.broadcast %240 : f32 to vector<16x16xf32>
    %242 = arith.mulf %33, %241 : vector<16x16xf32>
    %c27 = arith.constant 27 : index
    %243 = memref.load %arg2[%c27] : memref<64xf32, #tpu.memory_space<smem>>
    %244 = vector.broadcast %243 : f32 to vector<16x16xf32>
    %245 = arith.mulf %35, %244 : vector<16x16xf32>
    %246 = arith.addf %242, %245 : vector<16x16xf32>
    %c43 = arith.constant 43 : index
    %247 = memref.load %arg2[%c43] : memref<64xf32, #tpu.memory_space<smem>>
    %248 = vector.broadcast %247 : f32 to vector<16x16xf32>
    %249 = arith.mulf %37, %248 : vector<16x16xf32>
    %250 = arith.addf %246, %249 : vector<16x16xf32>
    %c59 = arith.constant 59 : index
    %251 = memref.load %arg2[%c59] : memref<64xf32, #tpu.memory_space<smem>>
    %252 = vector.broadcast %251 : f32 to vector<16x16xf32>
    %253 = arith.mulf %39, %252 : vector<16x16xf32>
    %254 = arith.addf %250, %253 : vector<16x16xf32>
    %cst_46 = arith.constant dense<0.000000e+00> : vector<16x32xf32>
    %255 = tpu.matmul %254, %15, %cst_46 {dimension_numbers = #tpu.dot_dimension_numbers<[1], [0], [0], [1], [0, 0, 1, 1], [], []>} : vector<16x16xf32>, vector<16x32xf32>, vector<16x32xf32> -> vector<16x32xf32>
    %256 = arith.addf %239, %255 : vector<16x32xf32>
    %cst_47 = arith.constant dense<0.000000e+00> : vector<32x32xf32>
    %257 = tpu.matmul %31, %256, %cst_47 {dimension_numbers = #tpu.dot_dimension_numbers<[1], [0], [0], [1], [0, 0, 1, 1], [], []>} : vector<32x16xf32>, vector<16x32xf32>, vector<32x32xf32> -> vector<32x32xf32>
    %258 = arith.addf %223, %257 : vector<32x32xf32>
    %c2_48 = arith.constant 2 : index
    %259 = memref.load %arg3[%c2_48] : memref<4xf32, #tpu.memory_space<smem>>
    %260 = vector.broadcast %259 : f32 to vector<32x32xf32>
    %261 = arith.addf %258, %260 : vector<32x32xf32>
    %c0_49 = arith.constant 0 : index
    %c2_50 = arith.constant 2 : index
    %c0_51 = arith.constant 0 : index
    %c0_52 = arith.constant 0 : index
    %262 = vector.load %arg5[%c0_49, %c2_50, %c0_51, %c0_52] : memref<1x4x32x32xf32, #tpu.memory_space<vmem>>, vector<1x1x32x32xf32>
    %263 = vector.shape_cast %262 : vector<1x1x32x32xf32> to vector<32x32xf32>
    %264 = vector.shape_cast %261 : vector<32x32xf32> to vector<1x1x32x32xf32>
    tpu.vector_store %arg5[%c0_49, %c2_50, %c0_51, %c0_52], %264 {strides = array<i32>} : memref<1x4x32x32xf32, #tpu.memory_space<vmem>>, vector<1x1x32x32xf32>,
    %c12 = arith.constant 12 : index
    %265 = memref.load %arg2[%c12] : memref<64xf32, #tpu.memory_space<smem>>
    %266 = vector.broadcast %265 : f32 to vector<16x16xf32>
    %267 = arith.mulf %33, %266 : vector<16x16xf32>
    %c28 = arith.constant 28 : index
    %268 = memref.load %arg2[%c28] : memref<64xf32, #tpu.memory_space<smem>>
    %269 = vector.broadcast %268 : f32 to vector<16x16xf32>
    %270 = arith.mulf %35, %269 : vector<16x16xf32>
    %271 = arith.addf %267, %270 : vector<16x16xf32>
    %c44 = arith.constant 44 : index
    %272 = memref.load %arg2[%c44] : memref<64xf32, #tpu.memory_space<smem>>
    %273 = vector.broadcast %272 : f32 to vector<16x16xf32>
    %274 = arith.mulf %37, %273 : vector<16x16xf32>
    %275 = arith.addf %271, %274 : vector<16x16xf32>
    %c60 = arith.constant 60 : index
    %276 = memref.load %arg2[%c60] : memref<64xf32, #tpu.memory_space<smem>>
    %277 = vector.broadcast %276 : f32 to vector<16x16xf32>
    %278 = arith.mulf %39, %277 : vector<16x16xf32>
    %279 = arith.addf %275, %278 : vector<16x16xf32>
    %cst_53 = arith.constant dense<0.000000e+00> : vector<16x32xf32>
    %280 = tpu.matmul %279, %8, %cst_53 {dimension_numbers = #tpu.dot_dimension_numbers<[1], [0], [0], [1], [0, 0, 1, 1], [], []>} : vector<16x16xf32>, vector<16x32xf32>, vector<16x32xf32> -> vector<16x32xf32>
    %c13 = arith.constant 13 : index
    %281 = memref.load %arg2[%c13] : memref<64xf32, #tpu.memory_space<smem>>
    %282 = vector.broadcast %281 : f32 to vector<16x16xf32>
    %283 = arith.mulf %33, %282 : vector<16x16xf32>
    %c29 = arith.constant 29 : index
    %284 = memref.load %arg2[%c29] : memref<64xf32, #tpu.memory_space<smem>>
    %285 = vector.broadcast %284 : f32 to vector<16x16xf32>
    %286 = arith.mulf %35, %285 : vector<16x16xf32>
    %287 = arith.addf %283, %286 : vector<16x16xf32>
    %c45 = arith.constant 45 : index
    %288 = memref.load %arg2[%c45] : memref<64xf32, #tpu.memory_space<smem>>
    %289 = vector.broadcast %288 : f32 to vector<16x16xf32>
    %290 = arith.mulf %37, %289 : vector<16x16xf32>
    %291 = arith.addf %287, %290 : vector<16x16xf32>
    %c61 = arith.constant 61 : index
    %292 = memref.load %arg2[%c61] : memref<64xf32, #tpu.memory_space<smem>>
    %293 = vector.broadcast %292 : f32 to vector<16x16xf32>
    %294 = arith.mulf %39, %293 : vector<16x16xf32>
    %295 = arith.addf %291, %294 : vector<16x16xf32>
    %cst_54 = arith.constant dense<0.000000e+00> : vector<16x32xf32>
    %296 = tpu.matmul %295, %15, %cst_54 {dimension_numbers = #tpu.dot_dimension_numbers<[1], [0], [0], [1], [0, 0, 1, 1], [], []>} : vector<16x16xf32>, vector<16x32xf32>, vector<16x32xf32> -> vector<16x32xf32>
    %297 = arith.addf %280, %296 : vector<16x32xf32>
    %cst_55 = arith.constant dense<0.000000e+00> : vector<32x32xf32>
    %298 = tpu.matmul %24, %297, %cst_55 {dimension_numbers = #tpu.dot_dimension_numbers<[1], [0], [0], [1], [0, 0, 1, 1], [], []>} : vector<32x16xf32>, vector<16x32xf32>, vector<32x32xf32> -> vector<32x32xf32>
    %c14 = arith.constant 14 : index
    %299 = memref.load %arg2[%c14] : memref<64xf32, #tpu.memory_space<smem>>
    %300 = vector.broadcast %299 : f32 to vector<16x16xf32>
    %301 = arith.mulf %33, %300 : vector<16x16xf32>
    %c30 = arith.constant 30 : index
    %302 = memref.load %arg2[%c30] : memref<64xf32, #tpu.memory_space<smem>>
    %303 = vector.broadcast %302 : f32 to vector<16x16xf32>
    %304 = arith.mulf %35, %303 : vector<16x16xf32>
    %305 = arith.addf %301, %304 : vector<16x16xf32>
    %c46 = arith.constant 46 : index
    %306 = memref.load %arg2[%c46] : memref<64xf32, #tpu.memory_space<smem>>
    %307 = vector.broadcast %306 : f32 to vector<16x16xf32>
    %308 = arith.mulf %37, %307 : vector<16x16xf32>
    %309 = arith.addf %305, %308 : vector<16x16xf32>
    %c62 = arith.constant 62 : index
    %310 = memref.load %arg2[%c62] : memref<64xf32, #tpu.memory_space<smem>>
    %311 = vector.broadcast %310 : f32 to vector<16x16xf32>
    %312 = arith.mulf %39, %311 : vector<16x16xf32>
    %313 = arith.addf %309, %312 : vector<16x16xf32>
    %cst_56 = arith.constant dense<0.000000e+00> : vector<16x32xf32>
    %314 = tpu.matmul %313, %8, %cst_56 {dimension_numbers = #tpu.dot_dimension_numbers<[1], [0], [0], [1], [0, 0, 1, 1], [], []>} : vector<16x16xf32>, vector<16x32xf32>, vector<16x32xf32> -> vector<16x32xf32>
    %c15 = arith.constant 15 : index
    %315 = memref.load %arg2[%c15] : memref<64xf32, #tpu.memory_space<smem>>
    %316 = vector.broadcast %315 : f32 to vector<16x16xf32>
    %317 = arith.mulf %33, %316 : vector<16x16xf32>
    %c31 = arith.constant 31 : index
    %318 = memref.load %arg2[%c31] : memref<64xf32, #tpu.memory_space<smem>>
    %319 = vector.broadcast %318 : f32 to vector<16x16xf32>
    %320 = arith.mulf %35, %319 : vector<16x16xf32>
    %321 = arith.addf %317, %320 : vector<16x16xf32>
    %c47 = arith.constant 47 : index
    %322 = memref.load %arg2[%c47] : memref<64xf32, #tpu.memory_space<smem>>
    %323 = vector.broadcast %322 : f32 to vector<16x16xf32>
    %324 = arith.mulf %37, %323 : vector<16x16xf32>
    %325 = arith.addf %321, %324 : vector<16x16xf32>
    %c63 = arith.constant 63 : index
    %326 = memref.load %arg2[%c63] : memref<64xf32, #tpu.memory_space<smem>>
    %327 = vector.broadcast %326 : f32 to vector<16x16xf32>
    %328 = arith.mulf %39, %327 : vector<16x16xf32>
    %329 = arith.addf %325, %328 : vector<16x16xf32>
    %cst_57 = arith.constant dense<0.000000e+00> : vector<16x32xf32>
    %330 = tpu.matmul %329, %15, %cst_57 {dimension_numbers = #tpu.dot_dimension_numbers<[1], [0], [0], [1], [0, 0, 1, 1], [], []>} : vector<16x16xf32>, vector<16x32xf32>, vector<16x32xf32> -> vector<16x32xf32>
    %331 = arith.addf %314, %330 : vector<16x32xf32>
    %cst_58 = arith.constant dense<0.000000e+00> : vector<32x32xf32>
    %332 = tpu.matmul %31, %331, %cst_58 {dimension_numbers = #tpu.dot_dimension_numbers<[1], [0], [0], [1], [0, 0, 1, 1], [], []>} : vector<32x16xf32>, vector<16x32xf32>, vector<32x32xf32> -> vector<32x32xf32>
    %333 = arith.addf %298, %332 : vector<32x32xf32>
    %c3_59 = arith.constant 3 : index
    %334 = memref.load %arg3[%c3_59] : memref<4xf32, #tpu.memory_space<smem>>
    %335 = vector.broadcast %334 : f32 to vector<32x32xf32>
    %336 = arith.addf %333, %335 : vector<32x32xf32>
    %c0_60 = arith.constant 0 : index
    %c3_61 = arith.constant 3 : index
    %c0_62 = arith.constant 0 : index
    %c0_63 = arith.constant 0 : index
    %337 = vector.load %arg5[%c0_60, %c3_61, %c0_62, %c0_63] : memref<1x4x32x32xf32, #tpu.memory_space<vmem>>, vector<1x1x32x32xf32>
    %338 = vector.shape_cast %337 : vector<1x1x32x32xf32> to vector<32x32xf32>
    %339 = vector.shape_cast %336 : vector<32x32xf32> to vector<1x1x32x32xf32>
    tpu.vector_store %arg5[%c0_60, %c3_61, %c0_62, %c0_63], %339 {strides = array<i32>} : memref<1x4x32x32xf32, #tpu.memory_space<vmem>>, vector<1x1x32x32xf32>,
    return
  }
  func.func @transform_0(%arg0: i32, %arg1: i32) -> i32 {
    %c0_i32 = arith.constant 0 : i32
    %c0_i32_0 = arith.constant 0 : i32
    return %c0_i32 : i32
  }
  func.func @transform_1(%arg0: i32, %arg1: i32) -> i32 {
    %c0_i32 = arith.constant 0 : i32
    %c0_i32_0 = arith.constant 0 : i32
    return %c0_i32 : i32
  }
  func.func @transform_2(%arg0: i32, %arg1: i32) -> (i32, i32, i32, i32) {
    %c0_i32 = arith.constant 0 : i32
    %c0_i32_0 = arith.constant 0 : i32
    %c0_i32_1 = arith.constant 0 : i32
    return %arg0, %c0_i32, %arg1, %c0_i32_0 : i32, i32, i32, i32
  }
  func.func @transform_3(%arg0: i32, %arg1: i32) -> (i32, i32, i32, i32) {
    %c0_i32 = arith.constant 0 : i32
    %c0_i32_0 = arith.constant 0 : i32
    %c0_i32_1 = arith.constant 0 : i32
    return %arg0, %c0_i32, %arg1, %c0_i32_0 : i32, i32, i32, i32
  }
}

</mosaic_0001>

<llo_original>
// kernel: tpu_custom_call.1
$region0: #{tpu_custom_call.1}
  #allocation0 [shape = 'u32[]', space=smem, size = 0x4, offset = 0x4, fixed_abs, tag = 'smem constant byte address 0x4 - core index']
  #allocation1 [shape = 'u32[144,128]{1,0:T(1,128)}', space=vmem, size = 0x12000, scoped, tag = 'internal scratch']
  %s0 = inlined_call_operand.hbm [shape: f32[64], index: 0, kind: input, shape index: {}]
  %s1 = inlined_call_operand.vmem [shape: f32[4], index: 1, kind: input, shape index: {}]
  %s2 = inlined_call_operand.hbm [shape: f32[2,4,16,16], index: 2, kind: input, shape index: {}]
  %s3 = inlined_call_operand.hbm [shape: f32[2,4,32,32], index: 3, kind: output, shape index: {}]
  %s4 = sld [smem:[#allocation0]]
  $region57: #{tpu_custom_call.1} parent=0
    _
  %s6 = ssub.s32 1, %s4
  %s7 = scalar_select 0, %s6, %s4
  $region1: #{tpu_custom_call.1} parent=0
    #allocation2 [shape = 'u8[512]{0}', space=smem, size = 0x200, scoped, tag = 'input window, operand 0, single buffered']
    #allocation3 [shape = 's32[2]{0}', space=sflag, size = 0x8, scoped, tag = 'scoped memory for tpu_custom_call.1']
    #allocation4 [shape = 's32[2]{0}', space=sflag, size = 0x8, scoped, tag = 'scoped memory for tpu_custom_call.1']
    #allocation5 [shape = 's32[2]{0}', space=sflag, size = 0x8, scoped, tag = 'scoped memory for tpu_custom_call.1']
    #allocation6 [shape = 's32[2]{0}', space=sflag, size = 0x8, scoped, tag = 'scoped memory for tpu_custom_call.1']
    #allocation7 [shape = 'u8[512]{0}', space=smem, size = 0x200, scoped, tag = 'input window, operand 1, single buffered']
    #allocation8 [shape = 'u8[65536]{0}', space=vmem, size = 0x10000, scoped, tag = 'input window, operand 2']
    #allocation9 [shape = 'u8[131072]{0}', space=vmem, size = 0x20000, scoped, tag = 'output window, operand 0']
    %8 = vsyncpa [#allocation5], 0
    %9 = vsyncpa [#allocation6], 0
    %10 = vsyncpa [#allocation3], 0
    %s11 = scalar_lea.sflag [#allocation3], 1
    %12 = vsyncpa %s11, 0
    %13 = vsyncpa [#allocation4], 0
    %s14 = scalar_lea.sflag [#allocation4], 1
    %15 = vsyncpa %s14, 0
    loop: start=0, step=1, limit=4
    $region2: #{tpu_custom_call.1} parent=1 // loop_pre_header
      _
    $region3: #{tpu_custom_call.1} parent=1 // loop_header
      %s17 = sphi 0, %s21
      %p18 = scmp.ge.s32.totalorder %s17, 4
      %s24 = sphi 0, %s36
      %s25 = sphi 0, %s32
      %s26 = sphi 0, %s24
      %s27 = sphi 0, %s25
      %s28 = sphi 0, %s26
      %s29 = sphi 0, %s27
      %s37 = sphi 0, %s37
      %s39 = sphi 0, %s37
      %s40 = sphi 0, %s39
      %s54 = sphi 0, %s40
      %s58 = sphi 0, %s58
      %s60 = sphi 0, %s58
      %s61 = sphi 0, %s60
      %s75 = sphi 0, %s61
      %s83 = sphi 0, %s85
      %s86 = sphi 0, %s83
      %s87 = sphi 0, %s86
      %s103 = sphi 0, %s87
      %s111 = sphi 0, %s113
      %s114 = sphi 0, %s111
      %s115 = sphi 0, %s114
      %s131 = sphi 0, %s115
    $region4: #{tpu_custom_call.1} parent=1 // loop_header_branch
      %20 = sbr.rel (%p18) target = $region8
    $region5: #{tpu_custom_call.1} parent=1 // loop_body
      %s22 = ssub.s32 %s17, 1
      %s23 = ssub.s32 %s17, 2
      %s30 = sadd.s32 1, %s25
      %p31 = scmp.ge.s32.totalorder %s30, 1
      %s32 = scalar_select %p31, 0, %s30
      %s33 = sadd.s32 1, %s24
      %s34 = scalar_select %p31, %s33, %s24
      %p35 = scmp.ge.s32.totalorder %s34, 2
      %s36 = scalar_select %p35, 0, %s34
      %s38 = sadd.s32 %s37, 1
      %p41 = scmp.eq.s32.totalorder %s17, 1
      %p42 = scmp.ne.s32.totalorder %s37, %s39
      %p43 = scmp.eq.s32.totalorder %s17, 0
      %p44 = por %p42, %p43
      %p45 = scmp.ne.s32.totalorder %s37, %s39
      %p46 = scmp.eq.s32.totalorder %s22, 1
      %p47 = por %p45, %p46
      %p48 = scmp.ne.s32.totalorder %s39, %s40
      %p49 = scmp.eq.s32.totalorder %s22, 0
      %p50 = por %p48, %p49
      %p51 = scmp.ne.s32.totalorder %s39, %s40
      %p52 = scmp.eq.s32.totalorder %s23, 1
      %p53 = por %p51, %p52
      %p55 = scmp.ne.s32.totalorder %s40, %s54
      %p56 = scmp.eq.s32.totalorder %s23, 0
      %p57 = por %p55, %p56
      %s59 = sadd.s32 %s58, 1
      %p62 = scmp.eq.s32.totalorder %s17, 1
      %p63 = scmp.ne.s32.totalorder %s58, %s60
      %p64 = scmp.eq.s32.totalorder %s17, 0
      %p65 = por %p63, %p64
      %p66 = scmp.ne.s32.totalorder %s58, %s60
      %p67 = scmp.eq.s32.totalorder %s22, 1
      %p68 = por %p66, %p67
      %p69 = scmp.ne.s32.totalorder %s60, %s61
      %p70 = scmp.eq.s32.totalorder %s22, 0
      %p71 = por %p69, %p70
      %p72 = scmp.ne.s32.totalorder %s60, %s61
      %p73 = scmp.eq.s32.totalorder %s23, 1
      %p74 = por %p72, %p73
      %p76 = scmp.ne.s32.totalorder %s61, %s75
      %p77 = scmp.eq.s32.totalorder %s23, 0
      %p78 = por %p76, %p77
      %s79 = ssub.s32 %s24, %s36
      %s80 = ssub.s32 %s25, %s32
      %s81 = sor.u32 %s79, %s80
      %p82 = scmp.eq.s32.totalorder %s81, 0
      %s84 = sadd.s32 %s83, 1
      %s85 = scalar_select %p82, %s83, %s84
      %p88 = pneg %p82
      %p89 = scmp.eq.s32.totalorder %s17, 1
      %p90 = por %p88, %p89
      %p91 = scmp.ne.s32.totalorder %s83, %s86
      %p92 = scmp.eq.s32.totalorder %s17, 0
      %p93 = por %p91, %p92
      %p94 = scmp.ne.s32.totalorder %s83, %s86
      %p95 = scmp.eq.s32.totalorder %s22, 1
      %p96 = por %p94, %p95
      %p97 = scmp.ne.s32.totalorder %s86, %s87
      %p98 = scmp.eq.s32.totalorder %s22, 0
      %p99 = por %p97, %p98
      %p100 = scmp.ne.s32.totalorder %s86, %s87
      %p101 = scmp.eq.s32.totalorder %s23, 1
      %p102 = por %p100, %p101
      %p104 = scmp.ne.s32.totalorder %s87, %s103
      %p105 = scmp.eq.s32.totalorder %s23, 0
      %p106 = por %p104, %p105
      %s107 = ssub.s32 %s24, %s36
      %s108 = ssub.s32 %s25, %s32
      %s109 = sor.u32 %s107, %s108
      %p110 = scmp.eq.s32.totalorder %s109, 0
      %s112 = sadd.s32 %s111, 1
      %s113 = scalar_select %p110, %s111, %s112
      %p116 = pneg %p110
      %p117 = scmp.eq.s32.totalorder %s17, 1
      %p118 = por %p116, %p117
      %p119 = scmp.ne.s32.totalorder %s111, %s114
      %p120 = scmp.eq.s32.totalorder %s17, 0
      %p121 = por %p119, %p120
      %p122 = scmp.ne.s32.totalorder %s111, %s114
      %p123 = scmp.eq.s32.totalorder %s22, 1
      %p124 = por %p122, %p123
      %p125 = scmp.ne.s32.totalorder %s114, %s115
      %p126 = scmp.eq.s32.totalorder %s22, 0
      %p127 = por %p125, %p126
      %p128 = scmp.ne.s32.totalorder %s114, %s115
      %p129 = scmp.eq.s32.totalorder %s23, 1
      %p130 = por %p128, %p129
      %p132 = scmp.ne.s32.totalorder %s115, %s131
      %p133 = scmp.eq.s32.totalorder %s23, 0
      %p134 = por %p132, %p133
      %p135 = scmp.le.s32.totalorder 1, %s17
      %p136 = scmp.lt.s32.totalorder %s17, 3
      %p137 = pnand %p135, %p136
      %p138 = pneg %p137
      // Predicated region
      $region9: #{tpu_custom_call.1} parent=5 // pred_check
        _
      $region10: #{tpu_custom_call.1} parent=5 // pred_check_branch
        %140 = sbr.rel (%p137) target = $region12
      $region11: #{tpu_custom_call.1} parent=5 // pred_region
        %s141 = ssub.s32 %s17, 1
        // Predicated region
        $region13: #{tpu_custom_call.1} parent=11 // pred_check
          %p142 = pneg %p50
        $region14: #{tpu_custom_call.1} parent=11 // pred_check_branch
          %144 = sbr.rel (%p142) target = $region16
        $region15: #{tpu_custom_call.1} parent=11 // pred_region
          %s146 = ssub.s32 16, 16
          %147 = vsyncadd [#allocation5], %s146
          %150 = dma.hbm_to_smem %s0, 16, [#allocation2], [#allocation5]
        $region16: #{tpu_custom_call.1} parent=11 // pred_fallthru
          _
        // Predicated region
        $region17: #{tpu_custom_call.1} parent=11 // pred_check
          %p151 = pneg %p71
        $region18: #{tpu_custom_call.1} parent=11 // pred_check_branch
          %153 = sbr.rel (%p151) target = $region20
        $region19: #{tpu_custom_call.1} parent=11 // pred_region
          %s155 = ssub.s32 16, 16
          %156 = vsyncadd [#allocation6], %s155
          %s158 = sshll.u32 %s1, 4
          %s159 = int_to_ptr.vmem [resolvable:$true] %s158
          %161 = dma.vmem_to_smem %s159, 16, [#allocation7], [#allocation6]
        $region20: #{tpu_custom_call.1} parent=11 // pred_fallthru
          _
      $region12: #{tpu_custom_call.1} parent=5 // pred_fallthru
        _
      %p162 = scmp.lt.s32.totalorder %s17, 2
      // Predicated region
      $region21: #{tpu_custom_call.1} parent=5 // pred_check
        %p163 = pneg %p162
      $region22: #{tpu_custom_call.1} parent=5 // pred_check_branch
        %165 = sbr.rel (%p163) target = $region24
      $region23: #{tpu_custom_call.1} parent=5 // pred_region
        // Predicated region
        $region25: #{tpu_custom_call.1} parent=23 // pred_check
          %p166 = pneg %p93
        $region26: #{tpu_custom_call.1} parent=23 // pred_check_branch
          %168 = sbr.rel (%p166) target = $region28
        $region27: #{tpu_custom_call.1} parent=23 // pred_region
          %s169 = sand.u32 %s83, 1
          %s170 = scalar_lea.sflag [#allocation3], %s169
          %s171 = sand.u32 %s83, 1
          %s172 = smul.addr %s171, 64
          %s173 = scalar_lea.vmem [#allocation8], %s172
          %s174 = smul.u32 2, %s25
          %s176 = ssub.s32 1024, 1024
          %177 = vsyncadd %s170, %s176
          %s178 = smul.addr %s24, 8
          %s179 = sadd.s32 %s174, %s178
          %s180 = smul.addr %s179, 128
          %s181 = scalar_lea.hbm %s2, %s180
          %s182 = sshll.u32 %s173, 4
          %s183 = int_to_ptr.vmem [resolvable:$true] %s182
          %188 = dma.hbm_to_vmem [thread:$0]  %s181, 1024, %s183, %s170, 128, 128, 8
        $region28: #{tpu_custom_call.1} parent=23 // pred_fallthru
          _
      $region24: #{tpu_custom_call.1} parent=5 // pred_fallthru
        _
      %p189 = scmp.le.s32.totalorder 1, %s17
      %p190 = scmp.lt.s32.totalorder %s17, 3
      %p191 = pnand %p189, %p190
      %p192 = pneg %p191
      // Predicated region
      $region29: #{tpu_custom_call.1} parent=5 // pred_check
        _
      $region30: #{tpu_custom_call.1} parent=5 // pred_check_branch
        %194 = sbr.rel (%p191) target = $region32
      $region31: #{tpu_custom_call.1} parent=5 // pred_region
        %s195 = ssub.s32 %s17, 1
        // Predicated region
        $region33: #{tpu_custom_call.1} parent=31 // pred_check
          %p196 = pneg %p50
        $region34: #{tpu_custom_call.1} parent=31 // pred_check_branch
          %198 = sbr.rel (%p196) target = $region36
        $region35: #{tpu_custom_call.1} parent=31 // pred_region
          %199 = dma.done [#allocation5], 16
        $region36: #{tpu_custom_call.1} parent=31 // pred_fallthru
          _
        // Predicated region
        $region37: #{tpu_custom_call.1} parent=31 // pred_check
          %p200 = pneg %p71
        $region38: #{tpu_custom_call.1} parent=31 // pred_check_branch
          %202 = sbr.rel (%p200) target = $region40
        $region39: #{tpu_custom_call.1} parent=31 // pred_region
          %203 = dma.done [#allocation6], 16
        $region40: #{tpu_custom_call.1} parent=31 // pred_fallthru
          _
        %s204 = sand.u32 %s86, 1
        %s205 = scalar_lea.sflag [#allocation3], %s204
        %s206 = sand.u32 %s86, 1
        %s207 = smul.addr %s206, 64
        %s208 = scalar_lea.vmem [#allocation8], %s207
        // Predicated region
        $region41: #{tpu_custom_call.1} parent=31 // pred_check
          %p209 = pneg %p99
        $region42: #{tpu_custom_call.1} parent=31 // pred_check_branch
          %211 = sbr.rel (%p209) target = $region44
        $region43: #{tpu_custom_call.1} parent=31 // pred_region
          %212 = dma.done %s205, 1024
        $region44: #{tpu_custom_call.1} parent=31 // pred_fallthru
          _
        %213 = sfence
        %p214 = pneg %p50
        %p215 = pneg %p47
        %p216 = pneg %p71
        %p217 = pneg %p68
        %s218 = sand.u32 %s86, 1
        %s219 = scalar_lea.sflag [#allocation3], %s218
        %s220 = sand.u32 %s86, 1
        %s221 = smul.addr %s220, 64
        %s222 = scalar_lea.vmem [#allocation8], %s221
        %p223 = pneg %p99
        %p224 = pneg %p96
        %p225 = pneg %p127
        %p226 = pneg %p124
        %s227 = sand.u32 %s114, 1
        %s228 = scalar_lea.sflag [#allocation4], %s227
        %s229 = sand.u32 %s114, 1
        %s230 = smul.addr %s229, 128
        %s231 = scalar_lea.vmem [#allocation9], %s230
        %s232 = smul.u32 2, %s27
        %s233 = smul.u32 4, %s27
        %v234 = vlaneseq
        %v235 = vshrl.u32 %v234, 7
        %v236 = vadd.s32 %v235, 8
        %v237 = vlaneseq
        %v238 = vand.u32 %v237, 127
        %v239 = vmul.u32 %v235, 2
        %v240 = vmul.u32 %v236, 2
        %vm241 = vcmp.eq.s32.totalorder %v238, %v239
        %vm242 = vcmp.eq.s32.totalorder %v238, %v240
        %v243 = vsel %vm241, 1, 0
        %v244 = vsel %vm242, 1, 0
        %v245 = vcvt.s32.f32 %v243
        %v246 = vcvt.s32.f32 %v244
        %v247 = vadd.s32 %v239, 1
        %v248 = vadd.s32 %v240, 1
        %vm249 = vcmp.eq.s32.totalorder %v238, %v247
        %vm250 = vcmp.eq.s32.totalorder %v238, %v248
        %v251 = vsel %vm249, 1, 0
        %v252 = vsel %vm250, 1, 0
        %v253 = vcvt.s32.f32 %v251
        %v254 = vcvt.s32.f32 %v252
        %v255 = vadd.s32 %v235, 16
        %v256 = vadd.s32 %v235, 24
        %v257 = vmul.u32 %v238, 2
        %vm258 = vcmp.eq.s32.totalorder %v235, %v257
        %vm259 = vcmp.eq.s32.totalorder %v236, %v257
        %vm260 = vcmp.eq.s32.totalorder %v255, %v257
        %vm261 = vcmp.eq.s32.totalorder %v256, %v257
        %v262 = vsel %vm258, 1, 0
        %v263 = vsel %vm259, 1, 0
        %v264 = vsel %vm260, 1, 0
        %v265 = vsel %vm261, 1, 0
        %v266 = vcvt.s32.f32 %v262
        %v267 = vcvt.s32.f32 %v263
        %v268 = vcvt.s32.f32 %v264
        %v269 = vcvt.s32.f32 %v265
        %v270 = vadd.s32 %v257, 1
        %vm271 = vcmp.eq.s32.totalorder %v235, %v270
        %vm272 = vcmp.eq.s32.totalorder %v236, %v270
        %vm273 = vcmp.eq.s32.totalorder %v255, %v270
        %vm274 = vcmp.eq.s32.totalorder %v256, %v270
        %v275 = vsel %vm271, 1, 0
        %v276 = vsel %vm272, 1, 0
        %v277 = vsel %vm273, 1, 0
        %v278 = vsel %vm274, 1, 0
        %v279 = vcvt.s32.f32 %v275
        %v280 = vcvt.s32.f32 %v276
        %v281 = vcvt.s32.f32 %v277
        %v282 = vcvt.s32.f32 %v278
        %v283 = vld [vmem:[%s208] sm:$0xff]
        %v284 = vld [vmem:[%s208 + $0x8] sm:$0xff]
        %s285 = scalar_lea.vmem %s208, 16 [#allocation8]
        %v286 = vld [vmem:[%s285] sm:$0xff]
        %v287 = vld [vmem:[%s285 + $0x8] sm:$0xff]
        %s288 = scalar_lea.vmem %s208, 32 [#allocation8]
        %v289 = vld [vmem:[%s288] sm:$0xff]
        %v290 = vld [vmem:[%s288 + $0x8] sm:$0xff]
        %s291 = scalar_lea.vmem %s208, 48 [#allocation8]
        %v292 = vld [vmem:[%s291] sm:$0xff]
        %v293 = vld [vmem:[%s291 + $0x8] sm:$0xff]
        %s294 = sld [smem:[#allocation2]]
        %v295 = vstv %s294
        %v296 = vmul.f32 %v283, %v295
        %v297 = vmul.f32 %v284, %v295
        %s298 = sld [smem:[#allocation2 + $0x10]]
        %v299 = vstv %s298
        %v300 = vmul.f32 %v286, %v299
        %v301 = vmul.f32 %v287, %v299
        %v302 = vadd.f32 %v296, %v300
        %v303 = vadd.f32 %v297, %v301
        %s304 = sld [smem:[#allocation2 + $0x20]]
        %v305 = vstv %s304
        %v306 = vmul.f32 %v289, %v305
        %v307 = vmul.f32 %v290, %v305
        %v308 = vadd.f32 %v302, %v306
        %v309 = vadd.f32 %v303, %v307
        %s310 = sld [smem:[#allocation2 + $0x30]]
        %v311 = vstv %s310
        %v312 = vmul.f32 %v292, %v311
        %v313 = vmul.f32 %v293, %v311
        %v314 = vadd.f32 %v308, %v312
        %v315 = vadd.f32 %v309, %v313
        %s316 = sld [smem:[#allocation2 + $0x1]]
        %v317 = vstv %s316
        %v318 = vmul.f32 %v283, %v317
        %v319 = vmul.f32 %v284, %v317
        %s320 = sld [smem:[#allocation2 + $0x11]]
        %v321 = vstv %s320
        %v322 = vmul.f32 %v286, %v321
        %v323 = vmul.f32 %v287, %v321
        %v324 = vadd.f32 %v318, %v322
        %v325 = vadd.f32 %v319, %v323
        %s326 = sld [smem:[#allocation2 + $0x21]]
        %v327 = vstv %s326
        %v328 = vmul.f32 %v289, %v327
        %v329 = vmul.f32 %v290, %v327
        %v330 = vadd.f32 %v324, %v328
        %v331 = vadd.f32 %v325, %v329
        %s332 = sld [smem:[#allocation2 + $0x31]]
        %v333 = vstv %s332
        %v334 = vmul.f32 %v292, %v333
        %v335 = vmul.f32 %v293, %v333
        %v336 = vadd.f32 %v330, %v334
        %v337 = vadd.f32 %v331, %v335
        %vm338 = vcmask 130048
        %v340 = vsel %vm338, %v336, 0
        %v343 = vsel %vm338, %v337, 0
        %345 = vmatprep.subr.mxu0 0.0
        %346 = vmatpush1.msra.mxu0 %v253
        %347 = vmatprep.subr.mxu0 0.0
        %348 = vmatpush1.msra.mxu0 %v254
        %349 = vmatprep.subr.mxu0 0.0
        %350 = vmatpush1.msra.mxu0 0.0
        %351 = vmatprep.subr.mxu0 0.0
        %352 = vmatpush1.msra.mxu0 0.0
        %353 = vmatprep.subr.mxu0 0.0
        %354 = vmatpush1.msra.mxu0 0.0
        %355 = vmatprep.subr.mxu0 0.0
        %356 = vmatpush1.msra.mxu0 0.0
        %357 = vmatprep.subr.mxu0 0.0
        %358 = vmatpush1.msra.mxu0 0.0
        %359 = vmatprep.subr.mxu0 0.0
        %360 = vmatpush1.msra.mxu0 0.0
        %361 = vmatprep.subr.mxu0 0.0
        %362 = vmatpush1.msra.mxu0 0.0
        %363 = vmatprep.subr.mxu0 0.0
        %364 = vmatpush1.msra.mxu0 0.0
        %365 = vmatprep.subr.mxu0 0.0
        %366 = vmatpush1.msra.mxu0 0.0
        %367 = vmatprep.subr.mxu0 0.0
        %368 = vmatpush1.msra.mxu0 0.0
        %369 = vmatprep.subr.mxu0 0.0
        %370 = vmatpush1.msra.mxu0 0.0
        %371 = vmatprep.subr.mxu0 0.0
        %372 = vmatpush1.msra.mxu0 0.0
        %373 = vmatprep.subr.mxu0 0.0
        %374 = vmatpush1.msra.mxu0 0.0
        %375 = vmatprep.subr.mxu0 0.0
        %376 = vmatpush1.msra.mxu0 0.0
        %377 = vmatprep.subr.mxu0 0.0
        %378 = vmatpush1.msra.mxu0 0.0
        %379 = vmatprep.subr.mxu0 0.0
        %380 = vmatpush1.msra.mxu0 0.0
        %381 = vmatprep.subr.mxu0 0.0
        %382 = vmatpush1.msra.mxu0 0.0
        %383 = vmatprep.subr.mxu0 0.0
        %384 = vmatpush1.msra.mxu0 0.0
        %385 = vmatprep.subr.mxu0 0.0
        %386 = vmatpush1.msra.mxu0 0.0
        %387 = vmatprep.subr.mxu0 0.0
        %388 = vmatpush1.msra.mxu0 0.0
        %389 = vmatprep.subr.mxu0 0.0
        %390 = vmatpush1.msra.mxu0 0.0
        %391 = vmatprep.subr.mxu0 0.0
        %392 = vmatpush1.msra.mxu0 0.0
        %393 = vmatprep.subr.mxu0 0.0
        %394 = vmatpush1.msra.mxu0 0.0
        %395 = vmatprep.subr.mxu0 0.0
        %396 = vmatpush1.msra.mxu0 0.0
        %397 = vmatprep.subr.mxu0 0.0
        %398 = vmatpush1.msra.mxu0 0.0
        %399 = vmatprep.subr.mxu0 0.0
        %400 = vmatpush1.msra.mxu0 0.0
        %401 = vmatprep.subr.mxu0 0.0
        %402 = vmatpush1.msra.mxu0 0.0
        %403 = vmatprep.subr.mxu0 0.0
        %404 = vmatpush1.msra.mxu0 0.0
        %405 = vmatprep.subr.mxu0 0.0
        %406 = vmatpush1.msra.mxu0 0.0
        %407 = vmatprep.subr.mxu0 0.0
        %408 = vmatpush1.msra.mxu0 0.0
        %409 = vmatprep.mubr.f32.mxu0 0.0
        %410 = vmatmul.mubr.f32.gmra.mrb[0].mxu0 %v340
        %v411 = vpop.f32.mrb[0].mxu0
        %v412 = vadd.f32 0.0, %v411
        %v413 = vpop.f32.mrb[0].mxu0
        %414 = vmatprep.mubr.f32.mxu0 0.0
        %415 = vmatmul.mubr.f32.gmra.mrb[0].mxu0 %v343
        %v416 = vpop.f32.mrb[0].mxu0
        %v417 = vadd.f32 0.0, %v416
        %v418 = vpop.f32.mrb[0].mxu0
        %419 = vdwg.mxu0
        %v421 = vsel %vm338, %v314, 0
        %v424 = vsel %vm338, %v315, 0
        %426 = vmatprep.subr.mxu0 0.0
        %427 = vmatpush1.msra.mxu0 %v245
        %428 = vmatprep.subr.mxu0 0.0
        %429 = vmatpush1.msra.mxu0 %v246
        %430 = vmatprep.subr.mxu0 0.0
        %431 = vmatpush1.msra.mxu0 0.0
        %432 = vmatprep.subr.mxu0 0.0
        %433 = vmatpush1.msra.mxu0 0.0
        %434 = vmatprep.subr.mxu0 0.0
        %435 = vmatpush1.msra.mxu0 0.0
        %436 = vmatprep.subr.mxu0 0.0
        %437 = vmatpush1.msra.mxu0 0.0
        %438 = vmatprep.subr.mxu0 0.0
        %439 = vmatpush1.msra.mxu0 0.0
        %440 = vmatprep.subr.mxu0 0.0
        %441 = vmatpush1.msra.mxu0 0.0
        %442 = vmatprep.subr.mxu0 0.0
        %443 = vmatpush1.msra.mxu0 0.0
        %444 = vmatprep.subr.mxu0 0.0
        %445 = vmatpush1.msra.mxu0 0.0
        %446 = vmatprep.subr.mxu0 0.0
        %447 = vmatpush1.msra.mxu0 0.0
        %448 = vmatprep.subr.mxu0 0.0
        %449 = vmatpush1.msra.mxu0 0.0
        %450 = vmatprep.subr.mxu0 0.0
        %451 = vmatpush1.msra.mxu0 0.0
        %452 = vmatprep.subr.mxu0 0.0
        %453 = vmatpush1.msra.mxu0 0.0
        %454 = vmatprep.subr.mxu0 0.0
        %455 = vmatpush1.msra.mxu0 0.0
        %456 = vmatprep.subr.mxu0 0.0
        %457 = vmatpush1.msra.mxu0 0.0
        %458 = vmatprep.subr.mxu0 0.0
        %459 = vmatpush1.msra.mxu0 0.0
        %460 = vmatprep.subr.mxu0 0.0
        %461 = vmatpush1.msra.mxu0 0.0
        %462 = vmatprep.subr.mxu0 0.0
        %463 = vmatpush1.msra.mxu0 0.0
        %464 = vmatprep.subr.mxu0 0.0
        %465 = vmatpush1.msra.mxu0 0.0
        %466 = vmatprep.subr.mxu0 0.0
        %467 = vmatpush1.msra.mxu0 0.0
        %468 = vmatprep.subr.mxu0 0.0
        %469 = vmatpush1.msra.mxu0 0.0
        %470 = vmatprep.subr.mxu0 0.0
        %471 = vmatpush1.msra.mxu0 0.0
        %472 = vmatprep.subr.mxu0 0.0
        %473 = vmatpush1.msra.mxu0 0.0
        %474 = vmatprep.subr.mxu0 0.0
        %475 = vmatpush1.msra.mxu0 0.0
        %476 = vmatprep.subr.mxu0 0.0
        %477 = vmatpush1.msra.mxu0 0.0
        %478 = vmatprep.subr.mxu0 0.0
        %479 = vmatpush1.msra.mxu0 0.0
        %480 = vmatprep.subr.mxu0 0.0
        %481 = vmatpush1.msra.mxu0 0.0
        %482 = vmatprep.subr.mxu0 0.0
        %483 = vmatpush1.msra.mxu0 0.0
        %484 = vmatprep.subr.mxu0 0.0
        %485 = vmatpush1.msra.mxu0 0.0
        %486 = vmatprep.subr.mxu0 0.0
        %487 = vmatpush1.msra.mxu0 0.0
        %488 = vmatprep.subr.mxu0 0.0
        %489 = vmatpush1.msra.mxu0 0.0
        %490 = vmatprep.mubr.f32.mxu0 0.0
        %491 = vmatmul.mubr.f32.gmra.mrb[0].mxu0 %v421
        %v492 = vpop.f32.mrb[0].mxu0
        %v493 = vadd.f32 %v412, %v492
        %v494 = vpop.f32.mrb[0].mxu0
        %495 = vmatprep.mubr.f32.mxu0 0.0
        %496 = vmatmul.mubr.f32.gmra.mrb[0].mxu0 %v424
        %v497 = vpop.f32.mrb[0].mxu0
        %v498 = vadd.f32 %v417, %v497
        %v499 = vpop.f32.mrb[0].mxu0
        %500 = vdwg.mxu0
        %s501 = sld [smem:[#allocation2 + $0x2]]
        %v502 = vstv %s501
        %v503 = vmul.f32 %v283, %v502
        %v504 = vmul.f32 %v284, %v502
        %s505 = sld [smem:[#allocation2 + $0x12]]
        %v506 = vstv %s505
        %v507 = vmul.f32 %v286, %v506
        %v508 = vmul.f32 %v287, %v506
        %v509 = vadd.f32 %v503, %v507
        %v510 = vadd.f32 %v504, %v508
        %s511 = sld [smem:[#allocation2 + $0x22]]
        %v512 = vstv %s511
        %v513 = vmul.f32 %v289, %v512
        %v514 = vmul.f32 %v290, %v512
        %v515 = vadd.f32 %v509, %v513
        %v516 = vadd.f32 %v510, %v514
        %s517 = sld [smem:[#allocation2 + $0x32]]
        %v518 = vstv %s517
        %v519 = vmul.f32 %v292, %v518
        %v520 = vmul.f32 %v293, %v518
        %v521 = vadd.f32 %v515, %v519
        %v522 = vadd.f32 %v516, %v520
        %s523 = sld [smem:[#allocation2 + $0x3]]
        %v524 = vstv %s523
        %v525 = vmul.f32 %v283, %v524
        %v526 = vmul.f32 %v284, %v524
        %s527 = sld [smem:[#allocation2 + $0x13]]
        %v528 = vstv %s527
        %v529 = vmul.f32 %v286, %v528
        %v530 = vmul.f32 %v287, %v528
        %v531 = vadd.f32 %v525, %v529
        %v532 = vadd.f32 %v526, %v530
        %s533 = sld [smem:[#allocation2 + $0x23]]
        %v534 = vstv %s533
        %v535 = vmul.f32 %v289, %v534
        %v536 = vmul.f32 %v290, %v534
        %v537 = vadd.f32 %v531, %v535
        %v538 = vadd.f32 %v532, %v536
        %s539 = sld [smem:[#allocation2 + $0x33]]
        %v540 = vstv %s539
        %v541 = vmul.f32 %v292, %v540
        %v542 = vmul.f32 %v293, %v540
        %v543 = vadd.f32 %v537, %v541
        %v544 = vadd.f32 %v538, %v542
        %v546 = vsel %vm338, %v543, 0
        %v549 = vsel %vm338, %v544, 0
        %551 = vmatprep.subr.mxu0 0.0
        %552 = vmatpush1.msra.mxu0 %v253
        %553 = vmatprep.subr.mxu0 0.0
        %554 = vmatpush1.msra.mxu0 %v254
        %555 = vmatprep.subr.mxu0 0.0
        %556 = vmatpush1.msra.mxu0 0.0
        %557 = vmatprep.subr.mxu0 0.0
        %558 = vmatpush1.msra.mxu0 0.0
        %559 = vmatprep.subr.mxu0 0.0
        %560 = vmatpush1.msra.mxu0 0.0
        %561 = vmatprep.subr.mxu0 0.0
        %562 = vmatpush1.msra.mxu0 0.0
        %563 = vmatprep.subr.mxu0 0.0
        %564 = vmatpush1.msra.mxu0 0.0
        %565 = vmatprep.subr.mxu0 0.0
        %566 = vmatpush1.msra.mxu0 0.0
        %567 = vmatprep.subr.mxu0 0.0
        %568 = vmatpush1.msra.mxu0 0.0
        %569 = vmatprep.subr.mxu0 0.0
        %570 = vmatpush1.msra.mxu0 0.0
        %571 = vmatprep.subr.mxu0 0.0
        %572 = vmatpush1.msra.mxu0 0.0
        %573 = vmatprep.subr.mxu0 0.0
        %574 = vmatpush1.msra.mxu0 0.0
        %575 = vmatprep.subr.mxu0 0.0
        %576 = vmatpush1.msra.mxu0 0.0
        %577 = vmatprep.subr.mxu0 0.0
        %578 = vmatpush1.msra.mxu0 0.0
        %579 = vmatprep.subr.mxu0 0.0
        %580 = vmatpush1.msra.mxu0 0.0
        %581 = vmatprep.subr.mxu0 0.0
        %582 = vmatpush1.msra.mxu0 0.0
        %583 = vmatprep.subr.mxu0 0.0
        %584 = vmatpush1.msra.mxu0 0.0
        %585 = vmatprep.subr.mxu0 0.0
        %586 = vmatpush1.msra.mxu0 0.0
        %587 = vmatprep.subr.mxu0 0.0
        %588 = vmatpush1.msra.mxu0 0.0
        %589 = vmatprep.subr.mxu0 0.0
        %590 = vmatpush1.msra.mxu0 0.0
        %591 = vmatprep.subr.mxu0 0.0
        %592 = vmatpush1.msra.mxu0 0.0
        %593 = vmatprep.subr.mxu0 0.0
        %594 = vmatpush1.msra.mxu0 0.0
        %595 = vmatprep.subr.mxu0 0.0
        %596 = vmatpush1.msra.mxu0 0.0
        %597 = vmatprep.subr.mxu0 0.0
        %598 = vmatpush1.msra.mxu0 0.0
        %599 = vmatprep.subr.mxu0 0.0
        %600 = vmatpush1.msra.mxu0 0.0
        %601 = vmatprep.subr.mxu0 0.0
        %602 = vmatpush1.msra.mxu0 0.0
        %603 = vmatprep.subr.mxu0 0.0
        %604 = vmatpush1.msra.mxu0 0.0
        %605 = vmatprep.subr.mxu0 0.0
        %606 = vmatpush1.msra.mxu0 0.0
        %607 = vmatprep.subr.mxu0 0.0
        %608 = vmatpush1.msra.mxu0 0.0
        %609 = vmatprep.subr.mxu0 0.0
        %610 = vmatpush1.msra.mxu0 0.0
        %611 = vmatprep.subr.mxu0 0.0
        %612 = vmatpush1.msra.mxu0 0.0
        %613 = vmatprep.subr.mxu0 0.0
        %614 = vmatpush1.msra.mxu0 0.0
        %615 = vmatprep.mubr.f32.mxu0 0.0
        %616 = vmatmul.mubr.f32.gmra.mrb[0].mxu0 %v546
        %v617 = vpop.f32.mrb[0].mxu0
        %v618 = vadd.f32 0.0, %v617
        %v619 = vpop.f32.mrb[0].mxu0
        %620 = vmatprep.mubr.f32.mxu0 0.0
        %621 = vmatmul.mubr.f32.gmra.mrb[0].mxu0 %v549
        %v622 = vpop.f32.mrb[0].mxu0
        %v623 = vadd.f32 0.0, %v622
        %v624 = vpop.f32.mrb[0].mxu0
        %625 = vdwg.mxu0
        %v627 = vsel %vm338, %v521, 0
        %v630 = vsel %vm338, %v522, 0
        %632 = vmatprep.subr.mxu0 0.0
        %633 = vmatpush1.msra.mxu0 %v245
        %634 = vmatprep.subr.mxu0 0.0
        %635 = vmatpush1.msra.mxu0 %v246
        %636 = vmatprep.subr.mxu0 0.0
        %637 = vmatpush1.msra.mxu0 0.0
        %638 = vmatprep.subr.mxu0 0.0
        %639 = vmatpush1.msra.mxu0 0.0
        %640 = vmatprep.subr.mxu0 0.0
        %641 = vmatpush1.msra.mxu0 0.0
        %642 = vmatprep.subr.mxu0 0.0
        %643 = vmatpush1.msra.mxu0 0.0
        %644 = vmatprep.subr.mxu0 0.0
        %645 = vmatpush1.msra.mxu0 0.0
        %646 = vmatprep.subr.mxu0 0.0
        %647 = vmatpush1.msra.mxu0 0.0
        %648 = vmatprep.subr.mxu0 0.0
        %649 = vmatpush1.msra.mxu0 0.0
        %650 = vmatprep.subr.mxu0 0.0
        %651 = vmatpush1.msra.mxu0 0.0
        %652 = vmatprep.subr.mxu0 0.0
        %653 = vmatpush1.msra.mxu0 0.0
        %654 = vmatprep.subr.mxu0 0.0
        %655 = vmatpush1.msra.mxu0 0.0
        %656 = vmatprep.subr.mxu0 0.0
        %657 = vmatpush1.msra.mxu0 0.0
        %658 = vmatprep.subr.mxu0 0.0
        %659 = vmatpush1.msra.mxu0 0.0
        %660 = vmatprep.subr.mxu0 0.0
        %661 = vmatpush1.msra.mxu0 0.0
        %662 = vmatprep.subr.mxu0 0.0
        %663 = vmatpush1.msra.mxu0 0.0
        %664 = vmatprep.subr.mxu0 0.0
        %665 = vmatpush1.msra.mxu0 0.0
        %666 = vmatprep.subr.mxu0 0.0
        %667 = vmatpush1.msra.mxu0 0.0
        %668 = vmatprep.subr.mxu0 0.0
        %669 = vmatpush1.msra.mxu0 0.0
        %670 = vmatprep.subr.mxu0 0.0
        %671 = vmatpush1.msra.mxu0 0.0
        %672 = vmatprep.subr.mxu0 0.0
        %673 = vmatpush1.msra.mxu0 0.0
        %674 = vmatprep.subr.mxu0 0.0
        %675 = vmatpush1.msra.mxu0 0.0
        %676 = vmatprep.subr.mxu0 0.0
        %677 = vmatpush1.msra.mxu0 0.0
        %678 = vmatprep.subr.mxu0 0.0
        %679 = vmatpush1.msra.mxu0 0.0
        %680 = vmatprep.subr.mxu0 0.0
        %681 = vmatpush1.msra.mxu0 0.0
        %682 = vmatprep.subr.mxu0 0.0
        %683 = vmatpush1.msra.mxu0 0.0
        %684 = vmatprep.subr.mxu0 0.0
        %685 = vmatpush1.msra.mxu0 0.0
        %686 = vmatprep.subr.mxu0 0.0
        %687 = vmatpush1.msra.mxu0 0.0
        %688 = vmatprep.subr.mxu0 0.0
        %689 = vmatpush1.msra.mxu0 0.0
        %690 = vmatprep.subr.mxu0 0.0
        %691 = vmatpush1.msra.mxu0 0.0
        %692 = vmatprep.subr.mxu0 0.0
        %693 = vmatpush1.msra.mxu0 0.0
        %694 = vmatprep.subr.mxu0 0.0
        %695 = vmatpush1.msra.mxu0 0.0
        %696 = vmatprep.mubr.f32.mxu0 0.0
        %697 = vmatmul.mubr.f32.gmra.mrb[0].mxu0 %v627
        %v698 = vpop.f32.mrb[0].mxu0
        %v699 = vadd.f32 %v618, %v698
        %v700 = vpop.f32.mrb[0].mxu0
        %701 = vmatprep.mubr.f32.mxu0 0.0
        %702 = vmatmul.mubr.f32.gmra.mrb[0].mxu0 %v630
        %v703 = vpop.f32.mrb[0].mxu0
        %v704 = vadd.f32 %v623, %v703
        %v705 = vpop.f32.mrb[0].mxu0
        %706 = vdwg.mxu0
        %v708 = vsel %vm338, %v279, 0
        %v711 = vsel %vm338, %v280, 0
        %v714 = vsel %vm338, %v281, 0
        %v717 = vsel %vm338, %v282, 0
        %719 = vmatprep.subr.mxu0 0.0
        %720 = vmatpush1.msra.mxu0 %v699
        %721 = vmatprep.subr.mxu0 0.0
        %722 = vmatpush1.msra.mxu0 %v704
        %723 = vmatprep.subr.mxu0 0.0
        %724 = vmatpush1.msra.mxu0 0.0
        %725 = vmatprep.subr.mxu0 0.0
        %726 = vmatpush1.msra.mxu0 0.0
        %727 = vmatprep.subr.mxu0 0.0
        %728 = vmatpush1.msra.mxu0 0.0
        %729 = vmatprep.subr.mxu0 0.0
        %730 = vmatpush1.msra.mxu0 0.0
        %731 = vmatprep.subr.mxu0 0.0
        %732 = vmatpush1.msra.mxu0 0.0
        %733 = vmatprep.subr.mxu0 0.0
        %734 = vmatpush1.msra.mxu0 0.0
        %735 = vmatprep.subr.mxu0 0.0
        %736 = vmatpush1.msra.mxu0 0.0
        %737 = vmatprep.subr.mxu0 0.0
        %738 = vmatpush1.msra.mxu0 0.0
        %739 = vmatprep.subr.mxu0 0.0
        %740 = vmatpush1.msra.mxu0 0.0
        %741 = vmatprep.subr.mxu0 0.0
        %742 = vmatpush1.msra.mxu0 0.0
        %743 = vmatprep.subr.mxu0 0.0
        %744 = vmatpush1.msra.mxu0 0.0
        %745 = vmatprep.subr.mxu0 0.0
        %746 = vmatpush1.msra.mxu0 0.0
        %747 = vmatprep.subr.mxu0 0.0
        %748 = vmatpush1.msra.mxu0 0.0
        %749 = vmatprep.subr.mxu0 0.0
        %750 = vmatpush1.msra.mxu0 0.0
        %751 = vmatprep.subr.mxu0 0.0
        %752 = vmatpush1.msra.mxu0 0.0
        %753 = vmatprep.subr.mxu0 0.0
        %754 = vmatpush1.msra.mxu0 0.0
        %755 = vmatprep.subr.mxu0 0.0
        %756 = vmatpush1.msra.mxu0 0.0
        %757 = vmatprep.subr.mxu0 0.0
        %758 = vmatpush1.msra.mxu0 0.0
        %759 = vmatprep.subr.mxu0 0.0
        %760 = vmatpush1.msra.mxu0 0.0
        %761 = vmatprep.subr.mxu0 0.0
        %762 = vmatpush1.msra.mxu0 0.0
        %763 = vmatprep.subr.mxu0 0.0
        %764 = vmatpush1.msra.mxu0 0.0
        %765 = vmatprep.subr.mxu0 0.0
        %766 = vmatpush1.msra.mxu0 0.0
        %767 = vmatprep.subr.mxu0 0.0
        %768 = vmatpush1.msra.mxu0 0.0
        %769 = vmatprep.subr.mxu0 0.0
        %770 = vmatpush1.msra.mxu0 0.0
        %771 = vmatprep.subr.mxu0 0.0
        %772 = vmatpush1.msra.mxu0 0.0
        %773 = vmatprep.subr.mxu0 0.0
        %774 = vmatpush1.msra.mxu0 0.0
        %775 = vmatprep.subr.mxu0 0.0
        %776 = vmatpush1.msra.mxu0 0.0
        %777 = vmatprep.subr.mxu0 0.0
        %778 = vmatpush1.msra.mxu0 0.0
        %779 = vmatprep.subr.mxu0 0.0
        %780 = vmatpush1.msra.mxu0 0.0
        %781 = vmatprep.subr.mxu0 0.0
        %782 = vmatpush1.msra.mxu0 0.0
        %783 = vmatprep.mubr.f32.mxu0 0.0
        %784 = vmatmul.mubr.f32.gmra.mrb[0].mxu0 %v708
        %v785 = vpop.f32.mrb[0].mxu0
        %v786 = vadd.f32 0.0, %v785
        %v787 = vpop.f32.mrb[0].mxu0
        %788 = vmatprep.mubr.f32.mxu0 0.0
        %789 = vmatmul.mubr.f32.gmra.mrb[0].mxu0 %v711
        %v790 = vpop.f32.mrb[0].mxu0
        %v791 = vadd.f32 0.0, %v790
        %v792 = vpop.f32.mrb[0].mxu0
        %793 = vmatprep.mubr.f32.mxu0 0.0
        %794 = vmatmul.mubr.f32.gmra.mrb[0].mxu0 %v714
        %v795 = vpop.f32.mrb[0].mxu0
        %v796 = vadd.f32 0.0, %v795
        %v797 = vpop.f32.mrb[0].mxu0
        %798 = vmatprep.mubr.f32.mxu0 0.0
        %799 = vmatmul.mubr.f32.gmra.mrb[0].mxu0 %v717
        %v800 = vpop.f32.mrb[0].mxu0
        %v801 = vadd.f32 0.0, %v800
        %v802 = vpop.f32.mrb[0].mxu0
        %803 = vdwg.mxu0
        %v805 = vsel %vm338, %v266, 0
        %v808 = vsel %vm338, %v267, 0
        %v811 = vsel %vm338, %v268, 0
        %v814 = vsel %vm338, %v269, 0
        %816 = vmatprep.subr.mxu0 0.0
        %817 = vmatpush1.msra.mxu0 %v493
        %818 = vmatprep.subr.mxu0 0.0
        %819 = vmatpush1.msra.mxu0 %v498
        %820 = vmatprep.subr.mxu0 0.0
        %821 = vmatpush1.msra.mxu0 0.0
        %822 = vmatprep.subr.mxu0 0.0
        %823 = vmatpush1.msra.mxu0 0.0
        %824 = vmatprep.subr.mxu0 0.0
        %825 = vmatpush1.msra.mxu0 0.0
        %826 = vmatprep.subr.mxu0 0.0
        %827 = vmatpush1.msra.mxu0 0.0
        %828 = vmatprep.subr.mxu0 0.0
        %829 = vmatpush1.msra.mxu0 0.0
        %830 = vmatprep.subr.mxu0 0.0
        %831 = vmatpush1.msra.mxu0 0.0
        %832 = vmatprep.subr.mxu0 0.0
        %833 = vmatpush1.msra.mxu0 0.0
        %834 = vmatprep.subr.mxu0 0.0
        %835 = vmatpush1.msra.mxu0 0.0
        %836 = vmatprep.subr.mxu0 0.0
        %837 = vmatpush1.msra.mxu0 0.0
        %838 = vmatprep.subr.mxu0 0.0
        %839 = vmatpush1.msra.mxu0 0.0
        %840 = vmatprep.subr.mxu0 0.0
        %841 = vmatpush1.msra.mxu0 0.0
        %842 = vmatprep.subr.mxu0 0.0
        %843 = vmatpush1.msra.mxu0 0.0
        %844 = vmatprep.subr.mxu0 0.0
        %845 = vmatpush1.msra.mxu0 0.0
        %846 = vmatprep.subr.mxu0 0.0
        %847 = vmatpush1.msra.mxu0 0.0
        %848 = vmatprep.subr.mxu0 0.0
        %849 = vmatpush1.msra.mxu0 0.0
        %850 = vmatprep.subr.mxu0 0.0
        %851 = vmatpush1.msra.mxu0 0.0
        %852 = vmatprep.subr.mxu0 0.0
        %853 = vmatpush1.msra.mxu0 0.0
        %854 = vmatprep.subr.mxu0 0.0
        %855 = vmatpush1.msra.mxu0 0.0
        %856 = vmatprep.subr.mxu0 0.0
        %857 = vmatpush1.msra.mxu0 0.0
        %858 = vmatprep.subr.mxu0 0.0
        %859 = vmatpush1.msra.mxu0 0.0
        %860 = vmatprep.subr.mxu0 0.0
        %861 = vmatpush1.msra.mxu0 0.0
        %862 = vmatprep.subr.mxu0 0.0
        %863 = vmatpush1.msra.mxu0 0.0
        %864 = vmatprep.subr.mxu0 0.0
        %865 = vmatpush1.msra.mxu0 0.0
        %866 = vmatprep.subr.mxu0 0.0
        %867 = vmatpush1.msra.mxu0 0.0
        %868 = vmatprep.subr.mxu0 0.0
        %869 = vmatpush1.msra.mxu0 0.0
        %870 = vmatprep.subr.mxu0 0.0
        %871 = vmatpush1.msra.mxu0 0.0
        %872 = vmatprep.subr.mxu0 0.0
        %873 = vmatpush1.msra.mxu0 0.0
        %874 = vmatprep.subr.mxu0 0.0
        %875 = vmatpush1.msra.mxu0 0.0
        %876 = vmatprep.subr.mxu0 0.0
        %877 = vmatpush1.msra.mxu0 0.0
        %878 = vmatprep.subr.mxu0 0.0
        %879 = vmatpush1.msra.mxu0 0.0
        %880 = vmatprep.mubr.f32.mxu0 0.0
        %881 = vmatmul.mubr.f32.gmra.mrb[0].mxu0 %v805
        %v882 = vpop.f32.mrb[0].mxu0
        %v883 = vadd.f32 %v786, %v882
        %v884 = vpop.f32.mrb[0].mxu0
        %885 = vmatprep.mubr.f32.mxu0 0.0
        %886 = vmatmul.mubr.f32.gmra.mrb[0].mxu0 %v808
        %v887 = vpop.f32.mrb[0].mxu0
        %v888 = vadd.f32 %v791, %v887
        %v889 = vpop.f32.mrb[0].mxu0
        %890 = vmatprep.mubr.f32.mxu0 0.0
        %891 = vmatmul.mubr.f32.gmra.mrb[0].mxu0 %v811
        %v892 = vpop.f32.mrb[0].mxu0
        %v893 = vadd.f32 %v796, %v892
        %v894 = vpop.f32.mrb[0].mxu0
        %895 = vmatprep.mubr.f32.mxu0 0.0
        %896 = vmatmul.mubr.f32.gmra.mrb[0].mxu0 %v814
        %v897 = vpop.f32.mrb[0].mxu0
        %v898 = vadd.f32 %v801, %v897
        %v899 = vpop.f32.mrb[0].mxu0
        %900 = vdwg.mxu0
        %s901 = sld [smem:[#allocation7]]
        %v902 = vstv %s901
        %v903 = vadd.f32 %v883, %v902
        %v904 = vadd.f32 %v888, %v902
        %v905 = vadd.f32 %v893, %v902
        %v906 = vadd.f32 %v898, %v902
        %vm907 = vcmask 261120
        %908 = vst.msk [vmem:[%s231] sm:$0xff] %vm907, %v903
        %909 = vst.msk [vmem:[%s231 + $0x8] sm:$0xff] %vm907, %v904
        %910 = vst.msk [vmem:[%s231 + $0x10] sm:$0xff] %vm907, %v905
        %911 = vst.msk [vmem:[%s231 + $0x18] sm:$0xff] %vm907, %v906
        %s912 = sld [smem:[#allocation2 + $0x4]]
        %v913 = vstv %s912
        %v914 = vmul.f32 %v283, %v913
        %v915 = vmul.f32 %v284, %v913
        %s916 = sld [smem:[#allocation2 + $0x14]]
        %v917 = vstv %s916
        %v918 = vmul.f32 %v286, %v917
        %v919 = vmul.f32 %v287, %v917
        %v920 = vadd.f32 %v914, %v918
        %v921 = vadd.f32 %v915, %v919
        %s922 = sld [smem:[#allocation2 + $0x24]]
        %v923 = vstv %s922
        %v924 = vmul.f32 %v289, %v923
        %v925 = vmul.f32 %v290, %v923
        %v926 = vadd.f32 %v920, %v924
        %v927 = vadd.f32 %v921, %v925
        %s928 = sld [smem:[#allocation2 + $0x34]]
        %v929 = vstv %s928
        %v930 = vmul.f32 %v292, %v929
        %v931 = vmul.f32 %v293, %v929
        %v932 = vadd.f32 %v926, %v930
        %v933 = vadd.f32 %v927, %v931
        %s934 = sld [smem:[#allocation2 + $0x5]]
        %v935 = vstv %s934
        %v936 = vmul.f32 %v283, %v935
        %v937 = vmul.f32 %v284, %v935
        %s938 = sld [smem:[#allocation2 + $0x15]]
        %v939 = vstv %s938
        %v940 = vmul.f32 %v286, %v939
        %v941 = vmul.f32 %v287, %v939
        %v942 = vadd.f32 %v936, %v940
        %v943 = vadd.f32 %v937, %v941
        %s944 = sld [smem:[#allocation2 + $0x25]]
        %v945 = vstv %s944
        %v946 = vmul.f32 %v289, %v945
        %v947 = vmul.f32 %v290, %v945
        %v948 = vadd.f32 %v942, %v946
        %v949 = vadd.f32 %v943, %v947
        %s950 = sld [smem:[#allocation2 + $0x35]]
        %v951 = vstv %s950
        %v952 = vmul.f32 %v292, %v951
        %v953 = vmul.f32 %v293, %v951
        %v954 = vadd.f32 %v948, %v952
        %v955 = vadd.f32 %v949, %v953
        %v957 = vsel %vm338, %v954, 0
        %v960 = vsel %vm338, %v955, 0
        %962 = vmatprep.subr.mxu0 0.0
        %963 = vmatpush1.msra.mxu0 %v253
        %964 = vmatprep.subr.mxu0 0.0
        %965 = vmatpush1.msra.mxu0 %v254
        %966 = vmatprep.subr.mxu0 0.0
        %967 = vmatpush1.msra.mxu0 0.0
        %968 = vmatprep.subr.mxu0 0.0
        %969 = vmatpush1.msra.mxu0 0.0
        %970 = vmatprep.subr.mxu0 0.0
        %971 = vmatpush1.msra.mxu0 0.0
        %972 = vmatprep.subr.mxu0 0.0
        %973 = vmatpush1.msra.mxu0 0.0
        %974 = vmatprep.subr.mxu0 0.0
        %975 = vmatpush1.msra.mxu0 0.0
        %976 = vmatprep.subr.mxu0 0.0
        %977 = vmatpush1.msra.mxu0 0.0
        %978 = vmatprep.subr.mxu0 0.0
        %979 = vmatpush1.msra.mxu0 0.0
        %980 = vmatprep.subr.mxu0 0.0
        %981 = vmatpush1.msra.mxu0 0.0
        %982 = vmatprep.subr.mxu0 0.0
        %983 = vmatpush1.msra.mxu0 0.0
        %984 = vmatprep.subr.mxu0 0.0
        %985 = vmatpush1.msra.mxu0 0.0
        %986 = vmatprep.subr.mxu0 0.0
        %987 = vmatpush1.msra.mxu0 0.0
        %988 = vmatprep.subr.mxu0 0.0
        %989 = vmatpush1.msra.mxu0 0.0
        %990 = vmatprep.subr.mxu0 0.0
        %991 = vmatpush1.msra.mxu0 0.0
        %992 = vmatprep.subr.mxu0 0.0
        %993 = vmatpush1.msra.mxu0 0.0
        %994 = vmatprep.subr.mxu0 0.0
        %995 = vmatpush1.msra.mxu0 0.0
        %996 = vmatprep.subr.mxu0 0.0
        %997 = vmatpush1.msra.mxu0 0.0
        %998 = vmatprep.subr.mxu0 0.0
        %999 = vmatpush1.msra.mxu0 0.0
        %1000 = vmatprep.subr.mxu0 0.0
        %1001 = vmatpush1.msra.mxu0 0.0
        %1002 = vmatprep.subr.mxu0 0.0
        %1003 = vmatpush1.msra.mxu0 0.0
        %1004 = vmatprep.subr.mxu0 0.0
        %1005 = vmatpush1.msra.mxu0 0.0
        %1006 = vmatprep.subr.mxu0 0.0
        %1007 = vmatpush1.msra.mxu0 0.0
        %1008 = vmatprep.subr.mxu0 0.0
        %1009 = vmatpush1.msra.mxu0 0.0
        %1010 = vmatprep.subr.mxu0 0.0
        %1011 = vmatpush1.msra.mxu0 0.0
        %1012 = vmatprep.subr.mxu0 0.0
        %1013 = vmatpush1.msra.mxu0 0.0
        %1014 = vmatprep.subr.mxu0 0.0
        %1015 = vmatpush1.msra.mxu0 0.0
        %1016 = vmatprep.subr.mxu0 0.0
        %1017 = vmatpush1.msra.mxu0 0.0
        %1018 = vmatprep.subr.mxu0 0.0
        %1019 = vmatpush1.msra.mxu0 0.0
        %1020 = vmatprep.subr.mxu0 0.0
        %1021 = vmatpush1.msra.mxu0 0.0
        %1022 = vmatprep.subr.mxu0 0.0
        %1023 = vmatpush1.msra.mxu0 0.0
        %1024 = vmatprep.subr.mxu0 0.0
        %1025 = vmatpush1.msra.mxu0 0.0
        %1026 = vmatprep.mubr.f32.mxu0 0.0
        %1027 = vmatmul.mubr.f32.gmra.mrb[0].mxu0 %v957
        %v1028 = vpop.f32.mrb[0].mxu0
        %v1029 = vadd.f32 0.0, %v1028
        %v1030 = vpop.f32.mrb[0].mxu0
        %1031 = vmatprep.mubr.f32.mxu0 0.0
        %1032 = vmatmul.mubr.f32.gmra.mrb[0].mxu0 %v960
        %v1033 = vpop.f32.mrb[0].mxu0
        %v1034 = vadd.f32 0.0, %v1033
        %v1035 = vpop.f32.mrb[0].mxu0
        %1036 = vdwg.mxu0
        %v1038 = vsel %vm338, %v932, 0
        %v1041 = vsel %vm338, %v933, 0
        %1043 = vmatprep.subr.mxu0 0.0
        %1044 = vmatpush1.msra.mxu0 %v245
        %1045 = vmatprep.subr.mxu0 0.0
        %1046 = vmatpush1.msra.mxu0 %v246
        %1047 = vmatprep.subr.mxu0 0.0
        %1048 = vmatpush1.msra.mxu0 0.0
        %1049 = vmatprep.subr.mxu0 0.0
        %1050 = vmatpush1.msra.mxu0 0.0
        %1051 = vmatprep.subr.mxu0 0.0
        %1052 = vmatpush1.msra.mxu0 0.0
        %1053 = vmatprep.subr.mxu0 0.0
        %1054 = vmatpush1.msra.mxu0 0.0
        %1055 = vmatprep.subr.mxu0 0.0
        %1056 = vmatpush1.msra.mxu0 0.0
        %1057 = vmatprep.subr.mxu0 0.0
        %1058 = vmatpush1.msra.mxu0 0.0
        %1059 = vmatprep.subr.mxu0 0.0
        %1060 = vmatpush1.msra.mxu0 0.0
        %1061 = vmatprep.subr.mxu0 0.0
        %1062 = vmatpush1.msra.mxu0 0.0
        %1063 = vmatprep.subr.mxu0 0.0
        %1064 = vmatpush1.msra.mxu0 0.0
        %1065 = vmatprep.subr.mxu0 0.0
        %1066 = vmatpush1.msra.mxu0 0.0
        %1067 = vmatprep.subr.mxu0 0.0
        %1068 = vmatpush1.msra.mxu0 0.0
        %1069 = vmatprep.subr.mxu0 0.0
        %1070 = vmatpush1.msra.mxu0 0.0
        %1071 = vmatprep.subr.mxu0 0.0
        %1072 = vmatpush1.msra.mxu0 0.0
        %1073 = vmatprep.subr.mxu0 0.0
        %1074 = vmatpush1.msra.mxu0 0.0
        %1075 = vmatprep.subr.mxu0 0.0
        %1076 = vmatpush1.msra.mxu0 0.0
        %1077 = vmatprep.subr.mxu0 0.0
        %1078 = vmatpush1.msra.mxu0 0.0
        %1079 = vmatprep.subr.mxu0 0.0
        %1080 = vmatpush1.msra.mxu0 0.0
        %1081 = vmatprep.subr.mxu0 0.0
        %1082 = vmatpush1.msra.mxu0 0.0
        %1083 = vmatprep.subr.mxu0 0.0
        %1084 = vmatpush1.msra.mxu0 0.0
        %1085 = vmatprep.subr.mxu0 0.0
        %1086 = vmatpush1.msra.mxu0 0.0
        %1087 = vmatprep.subr.mxu0 0.0
        %1088 = vmatpush1.msra.mxu0 0.0
        %1089 = vmatprep.subr.mxu0 0.0
        %1090 = vmatpush1.msra.mxu0 0.0
        %1091 = vmatprep.subr.mxu0 0.0
        %1092 = vmatpush1.msra.mxu0 0.0
        %1093 = vmatprep.subr.mxu0 0.0
        %1094 = vmatpush1.msra.mxu0 0.0
        %1095 = vmatprep.subr.mxu0 0.0
        %1096 = vmatpush1.msra.mxu0 0.0
        %1097 = vmatprep.subr.mxu0 0.0
        %1098 = vmatpush1.msra.mxu0 0.0
        %1099 = vmatprep.subr.mxu0 0.0
        %1100 = vmatpush1.msra.mxu0 0.0
        %1101 = vmatprep.subr.mxu0 0.0
        %1102 = vmatpush1.msra.mxu0 0.0
        %1103 = vmatprep.subr.mxu0 0.0
        %1104 = vmatpush1.msra.mxu0 0.0
        %1105 = vmatprep.subr.mxu0 0.0
        %1106 = vmatpush1.msra.mxu0 0.0
        %1107 = vmatprep.mubr.f32.mxu0 0.0
        %1108 = vmatmul.mubr.f32.gmra.mrb[0].mxu0 %v1038
        %v1109 = vpop.f32.mrb[0].mxu0
        %v1110 = vadd.f32 %v1029, %v1109
        %v1111 = vpop.f32.mrb[0].mxu0
        %1112 = vmatprep.mubr.f32.mxu0 0.0
        %1113 = vmatmul.mubr.f32.gmra.mrb[0].mxu0 %v1041
        %v1114 = vpop.f32.mrb[0].mxu0
        %v1115 = vadd.f32 %v1034, %v1114
        %v1116 = vpop.f32.mrb[0].mxu0
        %1117 = vdwg.mxu0
        %s1118 = sld [smem:[#allocation2 + $0x6]]
        %v1119 = vstv %s1118
        %v1120 = vmul.f32 %v283, %v1119
        %v1121 = vmul.f32 %v284, %v1119
        %s1122 = sld [smem:[#allocation2 + $0x16]]
        %v1123 = vstv %s1122
        %v1124 = vmul.f32 %v286, %v1123
        %v1125 = vmul.f32 %v287, %v1123
        %v1126 = vadd.f32 %v1120, %v1124
        %v1127 = vadd.f32 %v1121, %v1125
        %s1128 = sld [smem:[#allocation2 + $0x26]]
        %v1129 = vstv %s1128
        %v1130 = vmul.f32 %v289, %v1129
        %v1131 = vmul.f32 %v290, %v1129
        %v1132 = vadd.f32 %v1126, %v1130
        %v1133 = vadd.f32 %v1127, %v1131
        %s1134 = sld [smem:[#allocation2 + $0x36]]
        %v1135 = vstv %s1134
        %v1136 = vmul.f32 %v292, %v1135
        %v1137 = vmul.f32 %v293, %v1135
        %v1138 = vadd.f32 %v1132, %v1136
        %v1139 = vadd.f32 %v1133, %v1137
        %s1140 = sld [smem:[#allocation2 + $0x7]]
        %v1141 = vstv %s1140
        %v1142 = vmul.f32 %v283, %v1141
        %v1143 = vmul.f32 %v284, %v1141
        %s1144 = sld [smem:[#allocation2 + $0x17]]
        %v1145 = vstv %s1144
        %v1146 = vmul.f32 %v286, %v1145
        %v1147 = vmul.f32 %v287, %v1145
        %v1148 = vadd.f32 %v1142, %v1146
        %v1149 = vadd.f32 %v1143, %v1147
        %s1150 = sld [smem:[#allocation2 + $0x27]]
        %v1151 = vstv %s1150
        %v1152 = vmul.f32 %v289, %v1151
        %v1153 = vmul.f32 %v290, %v1151
        %v1154 = vadd.f32 %v1148, %v1152
        %v1155 = vadd.f32 %v1149, %v1153
        %s1156 = sld [smem:[#allocation2 + $0x37]]
        %v1157 = vstv %s1156
        %v1158 = vmul.f32 %v292, %v1157
        %v1159 = vmul.f32 %v293, %v1157
        %v1160 = vadd.f32 %v1154, %v1158
        %v1161 = vadd.f32 %v1155, %v1159
        %v1163 = vsel %vm338, %v1160, 0
        %v1166 = vsel %vm338, %v1161, 0
        %1168 = vmatprep.subr.mxu0 0.0
        %1169 = vmatpush1.msra.mxu0 %v253
        %1170 = vmatprep.subr.mxu0 0.0
        %1171 = vmatpush1.msra.mxu0 %v254
        %1172 = vmatprep.subr.mxu0 0.0
        %1173 = vmatpush1.msra.mxu0 0.0
        %1174 = vmatprep.subr.mxu0 0.0
        %1175 = vmatpush1.msra.mxu0 0.0
        %1176 = vmatprep.subr.mxu0 0.0
        %1177 = vmatpush1.msra.mxu0 0.0
        %1178 = vmatprep.subr.mxu0 0.0
        %1179 = vmatpush1.msra.mxu0 0.0
        %1180 = vmatprep.subr.mxu0 0.0
        %1181 = vmatpush1.msra.mxu0 0.0
        %1182 = vmatprep.subr.mxu0 0.0
        %1183 = vmatpush1.msra.mxu0 0.0
        %1184 = vmatprep.subr.mxu0 0.0
        %1185 = vmatpush1.msra.mxu0 0.0
        %1186 = vmatprep.subr.mxu0 0.0
        %1187 = vmatpush1.msra.mxu0 0.0
        %1188 = vmatprep.subr.mxu0 0.0
        %1189 = vmatpush1.msra.mxu0 0.0
        %1190 = vmatprep.subr.mxu0 0.0
        %1191 = vmatpush1.msra.mxu0 0.0
        %1192 = vmatprep.subr.mxu0 0.0
        %1193 = vmatpush1.msra.mxu0 0.0
        %1194 = vmatprep.subr.mxu0 0.0
        %1195 = vmatpush1.msra.mxu0 0.0
        %1196 = vmatprep.subr.mxu0 0.0
        %1197 = vmatpush1.msra.mxu0 0.0
        %1198 = vmatprep.subr.mxu0 0.0
        %1199 = vmatpush1.msra.mxu0 0.0
        %1200 = vmatprep.subr.mxu0 0.0
        %1201 = vmatpush1.msra.mxu0 0.0
        %1202 = vmatprep.subr.mxu0 0.0
        %1203 = vmatpush1.msra.mxu0 0.0
        %1204 = vmatprep.subr.mxu0 0.0
        %1205 = vmatpush1.msra.mxu0 0.0
        %1206 = vmatprep.subr.mxu0 0.0
        %1207 = vmatpush1.msra.mxu0 0.0
        %1208 = vmatprep.subr.mxu0 0.0
        %1209 = vmatpush1.msra.mxu0 0.0
        %1210 = vmatprep.subr.mxu0 0.0
        %1211 = vmatpush1.msra.mxu0 0.0
        %1212 = vmatprep.subr.mxu0 0.0
        %1213 = vmatpush1.msra.mxu0 0.0
        %1214 = vmatprep.subr.mxu0 0.0
        %1215 = vmatpush1.msra.mxu0 0.0
        %1216 = vmatprep.subr.mxu0 0.0
        %1217 = vmatpush1.msra.mxu0 0.0
        %1218 = vmatprep.subr.mxu0 0.0
        %1219 = vmatpush1.msra.mxu0 0.0
        %1220 = vmatprep.subr.mxu0 0.0
        %1221 = vmatpush1.msra.mxu0 0.0
        %1222 = vmatprep.subr.mxu0 0.0
        %1223 = vmatpush1.msra.mxu0 0.0
        %1224 = vmatprep.subr.mxu0 0.0
        %1225 = vmatpush1.msra.mxu0 0.0
        %1226 = vmatprep.subr.mxu0 0.0
        %1227 = vmatpush1.msra.mxu0 0.0
        %1228 = vmatprep.subr.mxu0 0.0
        %1229 = vmatpush1.msra.mxu0 0.0
        %1230 = vmatprep.subr.mxu0 0.0
        %1231 = vmatpush1.msra.mxu0 0.0
        %1232 = vmatprep.mubr.f32.mxu0 0.0
        %1233 = vmatmul.mubr.f32.gmra.mrb[0].mxu0 %v1163
        %v1234 = vpop.f32.mrb[0].mxu0
        %v1235 = vadd.f32 0.0, %v1234
        %v1236 = vpop.f32.mrb[0].mxu0
        %1237 = vmatprep.mubr.f32.mxu0 0.0
        %1238 = vmatmul.mubr.f32.gmra.mrb[0].mxu0 %v1166
        %v1239 = vpop.f32.mrb[0].mxu0
        %v1240 = vadd.f32 0.0, %v1239
        %v1241 = vpop.f32.mrb[0].mxu0
        %1242 = vdwg.mxu0
        %v1244 = vsel %vm338, %v1138, 0
        %v1247 = vsel %vm338, %v1139, 0
        %1249 = vmatprep.subr.mxu0 0.0
        %1250 = vmatpush1.msra.mxu0 %v245
        %1251 = vmatprep.subr.mxu0 0.0
        %1252 = vmatpush1.msra.mxu0 %v246
        %1253 = vmatprep.subr.mxu0 0.0
        %1254 = vmatpush1.msra.mxu0 0.0
        %1255 = vmatprep.subr.mxu0 0.0
        %1256 = vmatpush1.msra.mxu0 0.0
        %1257 = vmatprep.subr.mxu0 0.0
        %1258 = vmatpush1.msra.mxu0 0.0
        %1259 = vmatprep.subr.mxu0 0.0
        %1260 = vmatpush1.msra.mxu0 0.0
        %1261 = vmatprep.subr.mxu0 0.0
        %1262 = vmatpush1.msra.mxu0 0.0
        %1263 = vmatprep.subr.mxu0 0.0
        %1264 = vmatpush1.msra.mxu0 0.0
        %1265 = vmatprep.subr.mxu0 0.0
        %1266 = vmatpush1.msra.mxu0 0.0
        %1267 = vmatprep.subr.mxu0 0.0
        %1268 = vmatpush1.msra.mxu0 0.0
        %1269 = vmatprep.subr.mxu0 0.0
        %1270 = vmatpush1.msra.mxu0 0.0
        %1271 = vmatprep.subr.mxu0 0.0
        %1272 = vmatpush1.msra.mxu0 0.0
        %1273 = vmatprep.subr.mxu0 0.0
        %1274 = vmatpush1.msra.mxu0 0.0
        %1275 = vmatprep.subr.mxu0 0.0
        %1276 = vmatpush1.msra.mxu0 0.0
        %1277 = vmatprep.subr.mxu0 0.0
        %1278 = vmatpush1.msra.mxu0 0.0
        %1279 = vmatprep.subr.mxu0 0.0
        %1280 = vmatpush1.msra.mxu0 0.0
        %1281 = vmatprep.subr.mxu0 0.0
        %1282 = vmatpush1.msra.mxu0 0.0
        %1283 = vmatprep.subr.mxu0 0.0
        %1284 = vmatpush1.msra.mxu0 0.0
        %1285 = vmatprep.subr.mxu0 0.0
        %1286 = vmatpush1.msra.mxu0 0.0
        %1287 = vmatprep.subr.mxu0 0.0
        %1288 = vmatpush1.msra.mxu0 0.0
        %1289 = vmatprep.subr.mxu0 0.0
        %1290 = vmatpush1.msra.mxu0 0.0
        %1291 = vmatprep.subr.mxu0 0.0
        %1292 = vmatpush1.msra.mxu0 0.0
        %1293 = vmatprep.subr.mxu0 0.0
        %1294 = vmatpush1.msra.mxu0 0.0
        %1295 = vmatprep.subr.mxu0 0.0
        %1296 = vmatpush1.msra.mxu0 0.0
        %1297 = vmatprep.subr.mxu0 0.0
        %1298 = vmatpush1.msra.mxu0 0.0
        %1299 = vmatprep.subr.mxu0 0.0
        %1300 = vmatpush1.msra.mxu0 0.0
        %1301 = vmatprep.subr.mxu0 0.0
        %1302 = vmatpush1.msra.mxu0 0.0
        %1303 = vmatprep.subr.mxu0 0.0
        %1304 = vmatpush1.msra.mxu0 0.0
        %1305 = vmatprep.subr.mxu0 0.0
        %1306 = vmatpush1.msra.mxu0 0.0
        %1307 = vmatprep.subr.mxu0 0.0
        %1308 = vmatpush1.msra.mxu0 0.0
        %1309 = vmatprep.subr.mxu0 0.0
        %1310 = vmatpush1.msra.mxu0 0.0
        %1311 = vmatprep.subr.mxu0 0.0
        %1312 = vmatpush1.msra.mxu0 0.0
        %1313 = vmatprep.mubr.f32.mxu0 0.0
        %1314 = vmatmul.mubr.f32.gmra.mrb[0].mxu0 %v1244
        %v1315 = vpop.f32.mrb[0].mxu0
        %v1316 = vadd.f32 %v1235, %v1315
        %v1317 = vpop.f32.mrb[0].mxu0
        %1318 = vmatprep.mubr.f32.mxu0 0.0
        %1319 = vmatmul.mubr.f32.gmra.mrb[0].mxu0 %v1247
        %v1320 = vpop.f32.mrb[0].mxu0
        %v1321 = vadd.f32 %v1240, %v1320
        %v1322 = vpop.f32.mrb[0].mxu0
        %1323 = vdwg.mxu0
        %1324 = vmatprep.subr.mxu0 0.0
        %1325 = vmatpush1.msra.mxu0 %v1316
        %1326 = vmatprep.subr.mxu0 0.0
        %1327 = vmatpush1.msra.mxu0 %v1321
        %1328 = vmatprep.subr.mxu0 0.0
        %1329 = vmatpush1.msra.mxu0 0.0
        %1330 = vmatprep.subr.mxu0 0.0
        %1331 = vmatpush1.msra.mxu0 0.0
        %1332 = vmatprep.subr.mxu0 0.0
        %1333 = vmatpush1.msra.mxu0 0.0
        %1334 = vmatprep.subr.mxu0 0.0
        %1335 = vmatpush1.msra.mxu0 0.0
        %1336 = vmatprep.subr.mxu0 0.0
        %1337 = vmatpush1.msra.mxu0 0.0
        %1338 = vmatprep.subr.mxu0 0.0
        %1339 = vmatpush1.msra.mxu0 0.0
        %1340 = vmatprep.subr.mxu0 0.0
        %1341 = vmatpush1.msra.mxu0 0.0
        %1342 = vmatprep.subr.mxu0 0.0
        %1343 = vmatpush1.msra.mxu0 0.0
        %1344 = vmatprep.subr.mxu0 0.0
        %1345 = vmatpush1.msra.mxu0 0.0
        %1346 = vmatprep.subr.mxu0 0.0
        %1347 = vmatpush1.msra.mxu0 0.0
        %1348 = vmatprep.subr.mxu0 0.0
        %1349 = vmatpush1.msra.mxu0 0.0
        %1350 = vmatprep.subr.mxu0 0.0
        %1351 = vmatpush1.msra.mxu0 0.0
        %1352 = vmatprep.subr.mxu0 0.0
        %1353 = vmatpush1.msra.mxu0 0.0
        %1354 = vmatprep.subr.mxu0 0.0
        %1355 = vmatpush1.msra.mxu0 0.0
        %1356 = vmatprep.subr.mxu0 0.0
        %1357 = vmatpush1.msra.mxu0 0.0
        %1358 = vmatprep.subr.mxu0 0.0
        %1359 = vmatpush1.msra.mxu0 0.0
        %1360 = vmatprep.subr.mxu0 0.0
        %1361 = vmatpush1.msra.mxu0 0.0
        %1362 = vmatprep.subr.mxu0 0.0
        %1363 = vmatpush1.msra.mxu0 0.0
        %1364 = vmatprep.subr.mxu0 0.0
        %1365 = vmatpush1.msra.mxu0 0.0
        %1366 = vmatprep.subr.mxu0 0.0
        %1367 = vmatpush1.msra.mxu0 0.0
        %1368 = vmatprep.subr.mxu0 0.0
        %1369 = vmatpush1.msra.mxu0 0.0
        %1370 = vmatprep.subr.mxu0 0.0
        %1371 = vmatpush1.msra.mxu0 0.0
        %1372 = vmatprep.subr.mxu0 0.0
        %1373 = vmatpush1.msra.mxu0 0.0
        %1374 = vmatprep.subr.mxu0 0.0
        %1375 = vmatpush1.msra.mxu0 0.0
        %1376 = vmatprep.subr.mxu0 0.0
        %1377 = vmatpush1.msra.mxu0 0.0
        %1378 = vmatprep.subr.mxu0 0.0
        %1379 = vmatpush1.msra.mxu0 0.0
        %1380 = vmatprep.subr.mxu0 0.0
        %1381 = vmatpush1.msra.mxu0 0.0
        %1382 = vmatprep.subr.mxu0 0.0
        %1383 = vmatpush1.msra.mxu0 0.0
        %1384 = vmatprep.subr.mxu0 0.0
        %1385 = vmatpush1.msra.mxu0 0.0
        %1386 = vmatprep.subr.mxu0 0.0
        %1387 = vmatpush1.msra.mxu0 0.0
        %1388 = vmatprep.mubr.f32.mxu0 0.0
        %1389 = vmatmul.mubr.f32.gmra.mrb[0].mxu0 %v708
        %v1390 = vpop.f32.mrb[0].mxu0
        %v1391 = vadd.f32 0.0, %v1390
        %v1392 = vpop.f32.mrb[0].mxu0
        %1393 = vmatprep.mubr.f32.mxu0 0.0
        %1394 = vmatmul.mubr.f32.gmra.mrb[0].mxu0 %v711
        %v1395 = vpop.f32.mrb[0].mxu0
        %v1396 = vadd.f32 0.0, %v1395
        %v1397 = vpop.f32.mrb[0].mxu0
        %1398 = vmatprep.mubr.f32.mxu0 0.0
        %1399 = vmatmul.mubr.f32.gmra.mrb[0].mxu0 %v714
        %v1400 = vpop.f32.mrb[0].mxu0
        %v1401 = vadd.f32 0.0, %v1400
        %v1402 = vpop.f32.mrb[0].mxu0
        %1403 = vmatprep.mubr.f32.mxu0 0.0
        %1404 = vmatmul.mubr.f32.gmra.mrb[0].mxu0 %v717
        %v1405 = vpop.f32.mrb[0].mxu0
        %v1406 = vadd.f32 0.0, %v1405
        %v1407 = vpop.f32.mrb[0].mxu0
        %1408 = vdwg.mxu0
        %1409 = vmatprep.subr.mxu0 0.0
        %1410 = vmatpush1.msra.mxu0 %v1110
        %1411 = vmatprep.subr.mxu0 0.0
        %1412 = vmatpush1.msra.mxu0 %v1115
        %1413 = vmatprep.subr.mxu0 0.0
        %1414 = vmatpush1.msra.mxu0 0.0
        %1415 = vmatprep.subr.mxu0 0.0
        %1416 = vmatpush1.msra.mxu0 0.0
        %1417 = vmatprep.subr.mxu0 0.0
        %1418 = vmatpush1.msra.mxu0 0.0
        %1419 = vmatprep.subr.mxu0 0.0
        %1420 = vmatpush1.msra.mxu0 0.0
        %1421 = vmatprep.subr.mxu0 0.0
        %1422 = vmatpush1.msra.mxu0 0.0
        %1423 = vmatprep.subr.mxu0 0.0
        %1424 = vmatpush1.msra.mxu0 0.0
        %1425 = vmatprep.subr.mxu0 0.0
        %1426 = vmatpush1.msra.mxu0 0.0
        %1427 = vmatprep.subr.mxu0 0.0
        %1428 = vmatpush1.msra.mxu0 0.0
        %1429 = vmatprep.subr.mxu0 0.0
        %1430 = vmatpush1.msra.mxu0 0.0
        %1431 = vmatprep.subr.mxu0 0.0
        %1432 = vmatpush1.msra.mxu0 0.0
        %1433 = vmatprep.subr.mxu0 0.0
        %1434 = vmatpush1.msra.mxu0 0.0
        %1435 = vmatprep.subr.mxu0 0.0
        %1436 = vmatpush1.msra.mxu0 0.0
        %1437 = vmatprep.subr.mxu0 0.0
        %1438 = vmatpush1.msra.mxu0 0.0
        %1439 = vmatprep.subr.mxu0 0.0
        %1440 = vmatpush1.msra.mxu0 0.0
        %1441 = vmatprep.subr.mxu0 0.0
        %1442 = vmatpush1.msra.mxu0 0.0
        %1443 = vmatprep.subr.mxu0 0.0
        %1444 = vmatpush1.msra.mxu0 0.0
        %1445 = vmatprep.subr.mxu0 0.0
        %1446 = vmatpush1.msra.mxu0 0.0
        %1447 = vmatprep.subr.mxu0 0.0
        %1448 = vmatpush1.msra.mxu0 0.0
        %1449 = vmatprep.subr.mxu0 0.0
        %1450 = vmatpush1.msra.mxu0 0.0
        %1451 = vmatprep.subr.mxu0 0.0
        %1452 = vmatpush1.msra.mxu0 0.0
        %1453 = vmatprep.subr.mxu0 0.0
        %1454 = vmatpush1.msra.mxu0 0.0
        %1455 = vmatprep.subr.mxu0 0.0
        %1456 = vmatpush1.msra.mxu0 0.0
        %1457 = vmatprep.subr.mxu0 0.0
        %1458 = vmatpush1.msra.mxu0 0.0
        %1459 = vmatprep.subr.mxu0 0.0
        %1460 = vmatpush1.msra.mxu0 0.0
        %1461 = vmatprep.subr.mxu0 0.0
        %1462 = vmatpush1.msra.mxu0 0.0
        %1463 = vmatprep.subr.mxu0 0.0
        %1464 = vmatpush1.msra.mxu0 0.0
        %1465 = vmatprep.subr.mxu0 0.0
        %1466 = vmatpush1.msra.mxu0 0.0
        %1467 = vmatprep.subr.mxu0 0.0
        %1468 = vmatpush1.msra.mxu0 0.0
        %1469 = vmatprep.subr.mxu0 0.0
        %1470 = vmatpush1.msra.mxu0 0.0
        %1471 = vmatprep.subr.mxu0 0.0
        %1472 = vmatpush1.msra.mxu0 0.0
        %1473 = vmatprep.mubr.f32.mxu0 0.0
        %1474 = vmatmul.mubr.f32.gmra.mrb[0].mxu0 %v805
        %v1475 = vpop.f32.mrb[0].mxu0
        %v1476 = vadd.f32 %v1391, %v1475
        %v1477 = vpop.f32.mrb[0].mxu0
        %1478 = vmatprep.mubr.f32.mxu0 0.0
        %1479 = vmatmul.mubr.f32.gmra.mrb[0].mxu0 %v808
        %v1480 = vpop.f32.mrb[0].mxu0
        %v1481 = vadd.f32 %v1396, %v1480
        %v1482 = vpop.f32.mrb[0].mxu0
        %1483 = vmatprep.mubr.f32.mxu0 0.0
        %1484 = vmatmul.mubr.f32.gmra.mrb[0].mxu0 %v811
        %v1485 = vpop.f32.mrb[0].mxu0
        %v1486 = vadd.f32 %v1401, %v1485
        %v1487 = vpop.f32.mrb[0].mxu0
        %1488 = vmatprep.mubr.f32.mxu0 0.0
        %1489 = vmatmul.mubr.f32.gmra.mrb[0].mxu0 %v814
        %v1490 = vpop.f32.mrb[0].mxu0
        %v1491 = vadd.f32 %v1406, %v1490
        %v1492 = vpop.f32.mrb[0].mxu0
        %1493 = vdwg.mxu0
        %s1494 = sld [smem:[#allocation7 + $0x1]]
        %v1495 = vstv %s1494
        %v1496 = vadd.f32 %v1476, %v1495
        %v1497 = vadd.f32 %v1481, %v1495
        %v1498 = vadd.f32 %v1486, %v1495
        %v1499 = vadd.f32 %v1491, %v1495
        %s1500 = scalar_lea.vmem %s231, 32 [#allocation9]
        %1501 = vst.msk [vmem:[%s1500] sm:$0xff] %vm907, %v1496
        %1502 = vst.msk [vmem:[%s1500 + $0x8] sm:$0xff] %vm907, %v1497
        %1503 = vst.msk [vmem:[%s1500 + $0x10] sm:$0xff] %vm907, %v1498
        %1504 = vst.msk [vmem:[%s1500 + $0x18] sm:$0xff] %vm907, %v1499
        %s1505 = sld [smem:[#allocation2 + $0x8]]
        %v1506 = vstv %s1505
        %v1507 = vmul.f32 %v283, %v1506
        %v1508 = vmul.f32 %v284, %v1506
        %s1509 = sld [smem:[#allocation2 + $0x18]]
        %v1510 = vstv %s1509
        %v1511 = vmul.f32 %v286, %v1510
        %v1512 = vmul.f32 %v287, %v1510
        %v1513 = vadd.f32 %v1507, %v1511
        %v1514 = vadd.f32 %v1508, %v1512
        %s1515 = sld [smem:[#allocation2 + $0x28]]
        %v1516 = vstv %s1515
        %v1517 = vmul.f32 %v289, %v1516
        %v1518 = vmul.f32 %v290, %v1516
        %v1519 = vadd.f32 %v1513, %v1517
        %v1520 = vadd.f32 %v1514, %v1518
        %s1521 = sld [smem:[#allocation2 + $0x38]]
        %v1522 = vstv %s1521
        %v1523 = vmul.f32 %v292, %v1522
        %v1524 = vmul.f32 %v293, %v1522
        %v1525 = vadd.f32 %v1519, %v1523
        %v1526 = vadd.f32 %v1520, %v1524
        %s1527 = sld [smem:[#allocation2 + $0x9]]
        %v1528 = vstv %s1527
        %v1529 = vmul.f32 %v283, %v1528
        %v1530 = vmul.f32 %v284, %v1528
        %s1531 = sld [smem:[#allocation2 + $0x19]]
        %v1532 = vstv %s1531
        %v1533 = vmul.f32 %v286, %v1532
        %v1534 = vmul.f32 %v287, %v1532
        %v1535 = vadd.f32 %v1529, %v1533
        %v1536 = vadd.f32 %v1530, %v1534
        %s1537 = sld [smem:[#allocation2 + $0x29]]
        %v1538 = vstv %s1537
        %v1539 = vmul.f32 %v289, %v1538
        %v1540 = vmul.f32 %v290, %v1538
        %v1541 = vadd.f32 %v1535, %v1539
        %v1542 = vadd.f32 %v1536, %v1540
        %s1543 = sld [smem:[#allocation2 + $0x39]]
        %v1544 = vstv %s1543
        %v1545 = vmul.f32 %v292, %v1544
        %v1546 = vmul.f32 %v293, %v1544
        %v1547 = vadd.f32 %v1541, %v1545
        %v1548 = vadd.f32 %v1542, %v1546
        %v1550 = vsel %vm338, %v1547, 0
        %v1553 = vsel %vm338, %v1548, 0
        %1555 = vmatprep.subr.mxu0 0.0
        %1556 = vmatpush1.msra.mxu0 %v253
        %1557 = vmatprep.subr.mxu0 0.0
        %1558 = vmatpush1.msra.mxu0 %v254
        %1559 = vmatprep.subr.mxu0 0.0
        %1560 = vmatpush1.msra.mxu0 0.0
        %1561 = vmatprep.subr.mxu0 0.0
        %1562 = vmatpush1.msra.mxu0 0.0
        %1563 = vmatprep.subr.mxu0 0.0
        %1564 = vmatpush1.msra.mxu0 0.0
        %1565 = vmatprep.subr.mxu0 0.0
        %1566 = vmatpush1.msra.mxu0 0.0
        %1567 = vmatprep.subr.mxu0 0.0
        %1568 = vmatpush1.msra.mxu0 0.0
        %1569 = vmatprep.subr.mxu0 0.0
        %1570 = vmatpush1.msra.mxu0 0.0
        %1571 = vmatprep.subr.mxu0 0.0
        %1572 = vmatpush1.msra.mxu0 0.0
        %1573 = vmatprep.subr.mxu0 0.0
        %1574 = vmatpush1.msra.mxu0 0.0
        %1575 = vmatprep.subr.mxu0 0.0
        %1576 = vmatpush1.msra.mxu0 0.0
        %1577 = vmatprep.subr.mxu0 0.0
        %1578 = vmatpush1.msra.mxu0 0.0
        %1579 = vmatprep.subr.mxu0 0.0
        %1580 = vmatpush1.msra.mxu0 0.0
        %1581 = vmatprep.subr.mxu0 0.0
        %1582 = vmatpush1.msra.mxu0 0.0
        %1583 = vmatprep.subr.mxu0 0.0
        %1584 = vmatpush1.msra.mxu0 0.0
        %1585 = vmatprep.subr.mxu0 0.0
        %1586 = vmatpush1.msra.mxu0 0.0
        %1587 = vmatprep.subr.mxu0 0.0
        %1588 = vmatpush1.msra.mxu0 0.0
        %1589 = vmatprep.subr.mxu0 0.0
        %1590 = vmatpush1.msra.mxu0 0.0
        %1591 = vmatprep.subr.mxu0 0.0
        %1592 = vmatpush1.msra.mxu0 0.0
        %1593 = vmatprep.subr.mxu0 0.0
        %1594 = vmatpush1.msra.mxu0 0.0
        %1595 = vmatprep.subr.mxu0 0.0
        %1596 = vmatpush1.msra.mxu0 0.0
        %1597 = vmatprep.subr.mxu0 0.0
        %1598 = vmatpush1.msra.mxu0 0.0
        %1599 = vmatprep.subr.mxu0 0.0
        %1600 = vmatpush1.msra.mxu0 0.0
        %1601 = vmatprep.subr.mxu0 0.0
        %1602 = vmatpush1.msra.mxu0 0.0
        %1603 = vmatprep.subr.mxu0 0.0
        %1604 = vmatpush1.msra.mxu0 0.0
        %1605 = vmatprep.subr.mxu0 0.0
        %1606 = vmatpush1.msra.mxu0 0.0
        %1607 = vmatprep.subr.mxu0 0.0
        %1608 = vmatpush1.msra.mxu0 0.0
        %1609 = vmatprep.subr.mxu0 0.0
        %1610 = vmatpush1.msra.mxu0 0.0
        %1611 = vmatprep.subr.mxu0 0.0
        %1612 = vmatpush1.msra.mxu0 0.0
        %1613 = vmatprep.subr.mxu0 0.0
        %1614 = vmatpush1.msra.mxu0 0.0
        %1615 = vmatprep.subr.mxu0 0.0
        %1616 = vmatpush1.msra.mxu0 0.0
        %1617 = vmatprep.subr.mxu0 0.0
        %1618 = vmatpush1.msra.mxu0 0.0
        %1619 = vmatprep.mubr.f32.mxu0 0.0
        %1620 = vmatmul.mubr.f32.gmra.mrb[0].mxu0 %v1550
        %v1621 = vpop.f32.mrb[0].mxu0
        %v1622 = vadd.f32 0.0, %v1621
        %v1623 = vpop.f32.mrb[0].mxu0
        %1624 = vmatprep.mubr.f32.mxu0 0.0
        %1625 = vmatmul.mubr.f32.gmra.mrb[0].mxu0 %v1553
        %v1626 = vpop.f32.mrb[0].mxu0
        %v1627 = vadd.f32 0.0, %v1626
        %v1628 = vpop.f32.mrb[0].mxu0
        %1629 = vdwg.mxu0
        %v1631 = vsel %vm338, %v1525, 0
        %v1634 = vsel %vm338, %v1526, 0
        %1636 = vmatprep.subr.mxu0 0.0
        %1637 = vmatpush1.msra.mxu0 %v245
        %1638 = vmatprep.subr.mxu0 0.0
        %1639 = vmatpush1.msra.mxu0 %v246
        %1640 = vmatprep.subr.mxu0 0.0
        %1641 = vmatpush1.msra.mxu0 0.0
        %1642 = vmatprep.subr.mxu0 0.0
        %1643 = vmatpush1.msra.mxu0 0.0
        %1644 = vmatprep.subr.mxu0 0.0
        %1645 = vmatpush1.msra.mxu0 0.0
        %1646 = vmatprep.subr.mxu0 0.0
        %1647 = vmatpush1.msra.mxu0 0.0
        %1648 = vmatprep.subr.mxu0 0.0
        %1649 = vmatpush1.msra.mxu0 0.0
        %1650 = vmatprep.subr.mxu0 0.0
        %1651 = vmatpush1.msra.mxu0 0.0
        %1652 = vmatprep.subr.mxu0 0.0
        %1653 = vmatpush1.msra.mxu0 0.0
        %1654 = vmatprep.subr.mxu0 0.0
        %1655 = vmatpush1.msra.mxu0 0.0
        %1656 = vmatprep.subr.mxu0 0.0
        %1657 = vmatpush1.msra.mxu0 0.0
        %1658 = vmatprep.subr.mxu0 0.0
        %1659 = vmatpush1.msra.mxu0 0.0
        %1660 = vmatprep.subr.mxu0 0.0
        %1661 = vmatpush1.msra.mxu0 0.0
        %1662 = vmatprep.subr.mxu0 0.0
        %1663 = vmatpush1.msra.mxu0 0.0
        %1664 = vmatprep.subr.mxu0 0.0
        %1665 = vmatpush1.msra.mxu0 0.0
        %1666 = vmatprep.subr.mxu0 0.0
        %1667 = vmatpush1.msra.mxu0 0.0
        %1668 = vmatprep.subr.mxu0 0.0
        %1669 = vmatpush1.msra.mxu0 0.0
        %1670 = vmatprep.subr.mxu0 0.0
        %1671 = vmatpush1.msra.mxu0 0.0
        %1672 = vmatprep.subr.mxu0 0.0
        %1673 = vmatpush1.msra.mxu0 0.0
        %1674 = vmatprep.subr.mxu0 0.0
        %1675 = vmatpush1.msra.mxu0 0.0
        %1676 = vmatprep.subr.mxu0 0.0
        %1677 = vmatpush1.msra.mxu0 0.0
        %1678 = vmatprep.subr.mxu0 0.0
        %1679 = vmatpush1.msra.mxu0 0.0
        %1680 = vmatprep.subr.mxu0 0.0
        %1681 = vmatpush1.msra.mxu0 0.0
        %1682 = vmatprep.subr.mxu0 0.0
        %1683 = vmatpush1.msra.mxu0 0.0
        %1684 = vmatprep.subr.mxu0 0.0
        %1685 = vmatpush1.msra.mxu0 0.0
        %1686 = vmatprep.subr.mxu0 0.0
        %1687 = vmatpush1.msra.mxu0 0.0
        %1688 = vmatprep.subr.mxu0 0.0
        %1689 = vmatpush1.msra.mxu0 0.0
        %1690 = vmatprep.subr.mxu0 0.0
        %1691 = vmatpush1.msra.mxu0 0.0
        %1692 = vmatprep.subr.mxu0 0.0
        %1693 = vmatpush1.msra.mxu0 0.0
        %1694 = vmatprep.subr.mxu0 0.0
        %1695 = vmatpush1.msra.mxu0 0.0
        %1696 = vmatprep.subr.mxu0 0.0
        %1697 = vmatpush1.msra.mxu0 0.0
        %1698 = vmatprep.subr.mxu0 0.0
        %1699 = vmatpush1.msra.mxu0 0.0
        %1700 = vmatprep.mubr.f32.mxu0 0.0
        %1701 = vmatmul.mubr.f32.gmra.mrb[0].mxu0 %v1631
        %v1702 = vpop.f32.mrb[0].mxu0
        %v1703 = vadd.f32 %v1622, %v1702
        %v1704 = vpop.f32.mrb[0].mxu0
        %1705 = vmatprep.mubr.f32.mxu0 0.0
        %1706 = vmatmul.mubr.f32.gmra.mrb[0].mxu0 %v1634
        %v1707 = vpop.f32.mrb[0].mxu0
        %v1708 = vadd.f32 %v1627, %v1707
        %v1709 = vpop.f32.mrb[0].mxu0
        %1710 = vdwg.mxu0
        %s1711 = sld [smem:[#allocation2 + $0xa]]
        %v1712 = vstv %s1711
        %v1713 = vmul.f32 %v283, %v1712
        %v1714 = vmul.f32 %v284, %v1712
        %s1715 = sld [smem:[#allocation2 + $0x1a]]
        %v1716 = vstv %s1715
        %v1717 = vmul.f32 %v286, %v1716
        %v1718 = vmul.f32 %v287, %v1716
        %v1719 = vadd.f32 %v1713, %v1717
        %v1720 = vadd.f32 %v1714, %v1718
        %s1721 = sld [smem:[#allocation2 + $0x2a]]
        %v1722 = vstv %s1721
        %v1723 = vmul.f32 %v289, %v1722
        %v1724 = vmul.f32 %v290, %v1722
        %v1725 = vadd.f32 %v1719, %v1723
        %v1726 = vadd.f32 %v1720, %v1724
        %s1727 = sld [smem:[#allocation2 + $0x3a]]
        %v1728 = vstv %s1727
        %v1729 = vmul.f32 %v292, %v1728
        %v1730 = vmul.f32 %v293, %v1728
        %v1731 = vadd.f32 %v1725, %v1729
        %v1732 = vadd.f32 %v1726, %v1730
        %s1733 = sld [smem:[#allocation2 + $0xb]]
        %v1734 = vstv %s1733
        %v1735 = vmul.f32 %v283, %v1734
        %v1736 = vmul.f32 %v284, %v1734
        %s1737 = sld [smem:[#allocation2 + $0x1b]]
        %v1738 = vstv %s1737
        %v1739 = vmul.f32 %v286, %v1738
        %v1740 = vmul.f32 %v287, %v1738
        %v1741 = vadd.f32 %v1735, %v1739
        %v1742 = vadd.f32 %v1736, %v1740
        %s1743 = sld [smem:[#allocation2 + $0x2b]]
        %v1744 = vstv %s1743
        %v1745 = vmul.f32 %v289, %v1744
        %v1746 = vmul.f32 %v290, %v1744
        %v1747 = vadd.f32 %v1741, %v1745
        %v1748 = vadd.f32 %v1742, %v1746
        %s1749 = sld [smem:[#allocation2 + $0x3b]]
        %v1750 = vstv %s1749
        %v1751 = vmul.f32 %v292, %v1750
        %v1752 = vmul.f32 %v293, %v1750
        %v1753 = vadd.f32 %v1747, %v1751
        %v1754 = vadd.f32 %v1748, %v1752
        %v1756 = vsel %vm338, %v1753, 0
        %v1759 = vsel %vm338, %v1754, 0
        %1761 = vmatprep.subr.mxu0 0.0
        %1762 = vmatpush1.msra.mxu0 %v253
        %1763 = vmatprep.subr.mxu0 0.0
        %1764 = vmatpush1.msra.mxu0 %v254
        %1765 = vmatprep.subr.mxu0 0.0
        %1766 = vmatpush1.msra.mxu0 0.0
        %1767 = vmatprep.subr.mxu0 0.0
        %1768 = vmatpush1.msra.mxu0 0.0
        %1769 = vmatprep.subr.mxu0 0.0
        %1770 = vmatpush1.msra.mxu0 0.0
        %1771 = vmatprep.subr.mxu0 0.0
        %1772 = vmatpush1.msra.mxu0 0.0
        %1773 = vmatprep.subr.mxu0 0.0
        %1774 = vmatpush1.msra.mxu0 0.0
        %1775 = vmatprep.subr.mxu0 0.0
        %1776 = vmatpush1.msra.mxu0 0.0
        %1777 = vmatprep.subr.mxu0 0.0
        %1778 = vmatpush1.msra.mxu0 0.0
        %1779 = vmatprep.subr.mxu0 0.0
        %1780 = vmatpush1.msra.mxu0 0.0
        %1781 = vmatprep.subr.mxu0 0.0
        %1782 = vmatpush1.msra.mxu0 0.0
        %1783 = vmatprep.subr.mxu0 0.0
        %1784 = vmatpush1.msra.mxu0 0.0
        %1785 = vmatprep.subr.mxu0 0.0
        %1786 = vmatpush1.msra.mxu0 0.0
        %1787 = vmatprep.subr.mxu0 0.0
        %1788 = vmatpush1.msra.mxu0 0.0
        %1789 = vmatprep.subr.mxu0 0.0
        %1790 = vmatpush1.msra.mxu0 0.0
        %1791 = vmatprep.subr.mxu0 0.0
        %1792 = vmatpush1.msra.mxu0 0.0
        %1793 = vmatprep.subr.mxu0 0.0
        %1794 = vmatpush1.msra.mxu0 0.0
        %1795 = vmatprep.subr.mxu0 0.0
        %1796 = vmatpush1.msra.mxu0 0.0
        %1797 = vmatprep.subr.mxu0 0.0
        %1798 = vmatpush1.msra.mxu0 0.0
        %1799 = vmatprep.subr.mxu0 0.0
        %1800 = vmatpush1.msra.mxu0 0.0
        %1801 = vmatprep.subr.mxu0 0.0
        %1802 = vmatpush1.msra.mxu0 0.0
        %1803 = vmatprep.subr.mxu0 0.0
        %1804 = vmatpush1.msra.mxu0 0.0
        %1805 = vmatprep.subr.mxu0 0.0
        %1806 = vmatpush1.msra.mxu0 0.0
        %1807 = vmatprep.subr.mxu0 0.0
        %1808 = vmatpush1.msra.mxu0 0.0
        %1809 = vmatprep.subr.mxu0 0.0
        %1810 = vmatpush1.msra.mxu0 0.0
        %1811 = vmatprep.subr.mxu0 0.0
        %1812 = vmatpush1.msra.mxu0 0.0
        %1813 = vmatprep.subr.mxu0 0.0
        %1814 = vmatpush1.msra.mxu0 0.0
        %1815 = vmatprep.subr.mxu0 0.0
        %1816 = vmatpush1.msra.mxu0 0.0
        %1817 = vmatprep.subr.mxu0 0.0
        %1818 = vmatpush1.msra.mxu0 0.0
        %1819 = vmatprep.subr.mxu0 0.0
        %1820 = vmatpush1.msra.mxu0 0.0
        %1821 = vmatprep.subr.mxu0 0.0
        %1822 = vmatpush1.msra.mxu0 0.0
        %1823 = vmatprep.subr.mxu0 0.0
        %1824 = vmatpush1.msra.mxu0 0.0
        %1825 = vmatprep.mubr.f32.mxu0 0.0
        %1826 = vmatmul.mubr.f32.gmra.mrb[0].mxu0 %v1756
        %v1827 = vpop.f32.mrb[0].mxu0
        %v1828 = vadd.f32 0.0, %v1827
        %v1829 = vpop.f32.mrb[0].mxu0
        %1830 = vmatprep.mubr.f32.mxu0 0.0
        %1831 = vmatmul.mubr.f32.gmra.mrb[0].mxu0 %v1759
        %v1832 = vpop.f32.mrb[0].mxu0
        %v1833 = vadd.f32 0.0, %v1832
        %v1834 = vpop.f32.mrb[0].mxu0
        %1835 = vdwg.mxu0
        %v1837 = vsel %vm338, %v1731, 0
        %v1840 = vsel %vm338, %v1732, 0
        %1842 = vmatprep.subr.mxu0 0.0
        %1843 = vmatpush1.msra.mxu0 %v245
        %1844 = vmatprep.subr.mxu0 0.0
        %1845 = vmatpush1.msra.mxu0 %v246
        %1846 = vmatprep.subr.mxu0 0.0
        %1847 = vmatpush1.msra.mxu0 0.0
        %1848 = vmatprep.subr.mxu0 0.0
        %1849 = vmatpush1.msra.mxu0 0.0
        %1850 = vmatprep.subr.mxu0 0.0
        %1851 = vmatpush1.msra.mxu0 0.0
        %1852 = vmatprep.subr.mxu0 0.0
        %1853 = vmatpush1.msra.mxu0 0.0
        %1854 = vmatprep.subr.mxu0 0.0
        %1855 = vmatpush1.msra.mxu0 0.0
        %1856 = vmatprep.subr.mxu0 0.0
        %1857 = vmatpush1.msra.mxu0 0.0
        %1858 = vmatprep.subr.mxu0 0.0
        %1859 = vmatpush1.msra.mxu0 0.0
        %1860 = vmatprep.subr.mxu0 0.0
        %1861 = vmatpush1.msra.mxu0 0.0
        %1862 = vmatprep.subr.mxu0 0.0
        %1863 = vmatpush1.msra.mxu0 0.0
        %1864 = vmatprep.subr.mxu0 0.0
        %1865 = vmatpush1.msra.mxu0 0.0
        %1866 = vmatprep.subr.mxu0 0.0
        %1867 = vmatpush1.msra.mxu0 0.0
        %1868 = vmatprep.subr.mxu0 0.0
        %1869 = vmatpush1.msra.mxu0 0.0
        %1870 = vmatprep.subr.mxu0 0.0
        %1871 = vmatpush1.msra.mxu0 0.0
        %1872 = vmatprep.subr.mxu0 0.0
        %1873 = vmatpush1.msra.mxu0 0.0
        %1874 = vmatprep.subr.mxu0 0.0
        %1875 = vmatpush1.msra.mxu0 0.0
        %1876 = vmatprep.subr.mxu0 0.0
        %1877 = vmatpush1.msra.mxu0 0.0
        %1878 = vmatprep.subr.mxu0 0.0
        %1879 = vmatpush1.msra.mxu0 0.0
        %1880 = vmatprep.subr.mxu0 0.0
        %1881 = vmatpush1.msra.mxu0 0.0
        %1882 = vmatprep.subr.mxu0 0.0
        %1883 = vmatpush1.msra.mxu0 0.0
        %1884 = vmatprep.subr.mxu0 0.0
        %1885 = vmatpush1.msra.mxu0 0.0
        %1886 = vmatprep.subr.mxu0 0.0
        %1887 = vmatpush1.msra.mxu0 0.0
        %1888 = vmatprep.subr.mxu0 0.0
        %1889 = vmatpush1.msra.mxu0 0.0
        %1890 = vmatprep.subr.mxu0 0.0
        %1891 = vmatpush1.msra.mxu0 0.0
        %1892 = vmatprep.subr.mxu0 0.0
        %1893 = vmatpush1.msra.mxu0 0.0
        %1894 = vmatprep.subr.mxu0 0.0
        %1895 = vmatpush1.msra.mxu0 0.0
        %1896 = vmatprep.subr.mxu0 0.0
        %1897 = vmatpush1.msra.mxu0 0.0
        %1898 = vmatprep.subr.mxu0 0.0
        %1899 = vmatpush1.msra.mxu0 0.0
        %1900 = vmatprep.subr.mxu0 0.0
        %1901 = vmatpush1.msra.mxu0 0.0
        %1902 = vmatprep.subr.mxu0 0.0
        %1903 = vmatpush1.msra.mxu0 0.0
        %1904 = vmatprep.subr.mxu0 0.0
        %1905 = vmatpush1.msra.mxu0 0.0
        %1906 = vmatprep.mubr.f32.mxu0 0.0
        %1907 = vmatmul.mubr.f32.gmra.mrb[0].mxu0 %v1837
        %v1908 = vpop.f32.mrb[0].mxu0
        %v1909 = vadd.f32 %v1828, %v1908
        %v1910 = vpop.f32.mrb[0].mxu0
        %1911 = vmatprep.mubr.f32.mxu0 0.0
        %1912 = vmatmul.mubr.f32.gmra.mrb[0].mxu0 %v1840
        %v1913 = vpop.f32.mrb[0].mxu0
        %v1914 = vadd.f32 %v1833, %v1913
        %v1915 = vpop.f32.mrb[0].mxu0
        %1916 = vdwg.mxu0
        %1917 = vmatprep.subr.mxu0 0.0
        %1918 = vmatpush1.msra.mxu0 %v1909
        %1919 = vmatprep.subr.mxu0 0.0
        %1920 = vmatpush1.msra.mxu0 %v1914
        %1921 = vmatprep.subr.mxu0 0.0
        %1922 = vmatpush1.msra.mxu0 0.0
        %1923 = vmatprep.subr.mxu0 0.0
        %1924 = vmatpush1.msra.mxu0 0.0
        %1925 = vmatprep.subr.mxu0 0.0
        %1926 = vmatpush1.msra.mxu0 0.0
        %1927 = vmatprep.subr.mxu0 0.0
        %1928 = vmatpush1.msra.mxu0 0.0
        %1929 = vmatprep.subr.mxu0 0.0
        %1930 = vmatpush1.msra.mxu0 0.0
        %1931 = vmatprep.subr.mxu0 0.0
        %1932 = vmatpush1.msra.mxu0 0.0
        %1933 = vmatprep.subr.mxu0 0.0
        %1934 = vmatpush1.msra.mxu0 0.0
        %1935 = vmatprep.subr.mxu0 0.0
        %1936 = vmatpush1.msra.mxu0 0.0
        %1937 = vmatprep.subr.mxu0 0.0
        %1938 = vmatpush1.msra.mxu0 0.0
        %1939 = vmatprep.subr.mxu0 0.0
        %1940 = vmatpush1.msra.mxu0 0.0
        %1941 = vmatprep.subr.mxu0 0.0
        %1942 = vmatpush1.msra.mxu0 0.0
        %1943 = vmatprep.subr.mxu0 0.0
        %1944 = vmatpush1.msra.mxu0 0.0
        %1945 = vmatprep.subr.mxu0 0.0
        %1946 = vmatpush1.msra.mxu0 0.0
        %1947 = vmatprep.subr.mxu0 0.0
        %1948 = vmatpush1.msra.mxu0 0.0
        %1949 = vmatprep.subr.mxu0 0.0
        %1950 = vmatpush1.msra.mxu0 0.0
        %1951 = vmatprep.subr.mxu0 0.0
        %1952 = vmatpush1.msra.mxu0 0.0
        %1953 = vmatprep.subr.mxu0 0.0
        %1954 = vmatpush1.msra.mxu0 0.0
        %1955 = vmatprep.subr.mxu0 0.0
        %1956 = vmatpush1.msra.mxu0 0.0
        %1957 = vmatprep.subr.mxu0 0.0
        %1958 = vmatpush1.msra.mxu0 0.0
        %1959 = vmatprep.subr.mxu0 0.0
        %1960 = vmatpush1.msra.mxu0 0.0
        %1961 = vmatprep.subr.mxu0 0.0
        %1962 = vmatpush1.msra.mxu0 0.0
        %1963 = vmatprep.subr.mxu0 0.0
        %1964 = vmatpush1.msra.mxu0 0.0
        %1965 = vmatprep.subr.mxu0 0.0
        %1966 = vmatpush1.msra.mxu0 0.0
        %1967 = vmatprep.subr.mxu0 0.0
        %1968 = vmatpush1.msra.mxu0 0.0
        %1969 = vmatprep.subr.mxu0 0.0
        %1970 = vmatpush1.msra.mxu0 0.0
        %1971 = vmatprep.subr.mxu0 0.0
        %1972 = vmatpush1.msra.mxu0 0.0
        %1973 = vmatprep.subr.mxu0 0.0
        %1974 = vmatpush1.msra.mxu0 0.0
        %1975 = vmatprep.subr.mxu0 0.0
        %1976 = vmatpush1.msra.mxu0 0.0
        %1977 = vmatprep.subr.mxu0 0.0
        %1978 = vmatpush1.msra.mxu0 0.0
        %1979 = vmatprep.subr.mxu0 0.0
        %1980 = vmatpush1.msra.mxu0 0.0
        %1981 = vmatprep.mubr.f32.mxu0 0.0
        %1982 = vmatmul.mubr.f32.gmra.mrb[0].mxu0 %v708
        %v1983 = vpop.f32.mrb[0].mxu0
        %v1984 = vadd.f32 0.0, %v1983
        %v1985 = vpop.f32.mrb[0].mxu0
        %1986 = vmatprep.mubr.f32.mxu0 0.0
        %1987 = vmatmul.mubr.f32.gmra.mrb[0].mxu0 %v711
        %v1988 = vpop.f32.mrb[0].mxu0
        %v1989 = vadd.f32 0.0, %v1988
        %v1990 = vpop.f32.mrb[0].mxu0
        %1991 = vmatprep.mubr.f32.mxu0 0.0
        %1992 = vmatmul.mubr.f32.gmra.mrb[0].mxu0 %v714
        %v1993 = vpop.f32.mrb[0].mxu0
        %v1994 = vadd.f32 0.0, %v1993
        %v1995 = vpop.f32.mrb[0].mxu0
        %1996 = vmatprep.mubr.f32.mxu0 0.0
        %1997 = vmatmul.mubr.f32.gmra.mrb[0].mxu0 %v717
        %v1998 = vpop.f32.mrb[0].mxu0
        %v1999 = vadd.f32 0.0, %v1998
        %v2000 = vpop.f32.mrb[0].mxu0
        %2001 = vdwg.mxu0
        %2002 = vmatprep.subr.mxu0 0.0
        %2003 = vmatpush1.msra.mxu0 %v1703
        %2004 = vmatprep.subr.mxu0 0.0
        %2005 = vmatpush1.msra.mxu0 %v1708
        %2006 = vmatprep.subr.mxu0 0.0
        %2007 = vmatpush1.msra.mxu0 0.0
        %2008 = vmatprep.subr.mxu0 0.0
        %2009 = vmatpush1.msra.mxu0 0.0
        %2010 = vmatprep.subr.mxu0 0.0
        %2011 = vmatpush1.msra.mxu0 0.0
        %2012 = vmatprep.subr.mxu0 0.0
        %2013 = vmatpush1.msra.mxu0 0.0
        %2014 = vmatprep.subr.mxu0 0.0
        %2015 = vmatpush1.msra.mxu0 0.0
        %2016 = vmatprep.subr.mxu0 0.0
        %2017 = vmatpush1.msra.mxu0 0.0
        %2018 = vmatprep.subr.mxu0 0.0
        %2019 = vmatpush1.msra.mxu0 0.0
        %2020 = vmatprep.subr.mxu0 0.0
        %2021 = vmatpush1.msra.mxu0 0.0
        %2022 = vmatprep.subr.mxu0 0.0
        %2023 = vmatpush1.msra.mxu0 0.0
        %2024 = vmatprep.subr.mxu0 0.0
        %2025 = vmatpush1.msra.mxu0 0.0
        %2026 = vmatprep.subr.mxu0 0.0
        %2027 = vmatpush1.msra.mxu0 0.0
        %2028 = vmatprep.subr.mxu0 0.0
        %2029 = vmatpush1.msra.mxu0 0.0
        %2030 = vmatprep.subr.mxu0 0.0
        %2031 = vmatpush1.msra.mxu0 0.0
        %2032 = vmatprep.subr.mxu0 0.0
        %2033 = vmatpush1.msra.mxu0 0.0
        %2034 = vmatprep.subr.mxu0 0.0
        %2035 = vmatpush1.msra.mxu0 0.0
        %2036 = vmatprep.subr.mxu0 0.0
        %2037 = vmatpush1.msra.mxu0 0.0
        %2038 = vmatprep.subr.mxu0 0.0
        %2039 = vmatpush1.msra.mxu0 0.0
        %2040 = vmatprep.subr.mxu0 0.0
        %2041 = vmatpush1.msra.mxu0 0.0
        %2042 = vmatprep.subr.mxu0 0.0
        %2043 = vmatpush1.msra.mxu0 0.0
        %2044 = vmatprep.subr.mxu0 0.0
        %2045 = vmatpush1.msra.mxu0 0.0
        %2046 = vmatprep.subr.mxu0 0.0
        %2047 = vmatpush1.msra.mxu0 0.0
        %2048 = vmatprep.subr.mxu0 0.0
        %2049 = vmatpush1.msra.mxu0 0.0
        %2050 = vmatprep.subr.mxu0 0.0
        %2051 = vmatpush1.msra.mxu0 0.0
        %2052 = vmatprep.subr.mxu0 0.0
        %2053 = vmatpush1.msra.mxu0 0.0
        %2054 = vmatprep.subr.mxu0 0.0
        %2055 = vmatpush1.msra.mxu0 0.0
        %2056 = vmatprep.subr.mxu0 0.0
        %2057 = vmatpush1.msra.mxu0 0.0
        %2058 = vmatprep.subr.mxu0 0.0
        %2059 = vmatpush1.msra.mxu0 0.0
        %2060 = vmatprep.subr.mxu0 0.0
        %2061 = vmatpush1.msra.mxu0 0.0
        %2062 = vmatprep.subr.mxu0 0.0
        %2063 = vmatpush1.msra.mxu0 0.0
        %2064 = vmatprep.subr.mxu0 0.0
        %2065 = vmatpush1.msra.mxu0 0.0
        %2066 = vmatprep.mubr.f32.mxu0 0.0
        %2067 = vmatmul.mubr.f32.gmra.mrb[0].mxu0 %v805
        %v2068 = vpop.f32.mrb[0].mxu0
        %v2069 = vadd.f32 %v1984, %v2068
        %v2070 = vpop.f32.mrb[0].mxu0
        %2071 = vmatprep.mubr.f32.mxu0 0.0
        %2072 = vmatmul.mubr.f32.gmra.mrb[0].mxu0 %v808
        %v2073 = vpop.f32.mrb[0].mxu0
        %v2074 = vadd.f32 %v1989, %v2073
        %v2075 = vpop.f32.mrb[0].mxu0
        %2076 = vmatprep.mubr.f32.mxu0 0.0
        %2077 = vmatmul.mubr.f32.gmra.mrb[0].mxu0 %v811
        %v2078 = vpop.f32.mrb[0].mxu0
        %v2079 = vadd.f32 %v1994, %v2078
        %v2080 = vpop.f32.mrb[0].mxu0
        %2081 = vmatprep.mubr.f32.mxu0 0.0
        %2082 = vmatmul.mubr.f32.gmra.mrb[0].mxu0 %v814
        %v2083 = vpop.f32.mrb[0].mxu0
        %v2084 = vadd.f32 %v1999, %v2083
        %v2085 = vpop.f32.mrb[0].mxu0
        %2086 = vdwg.mxu0
        %s2087 = sld [smem:[#allocation7 + $0x2]]
        %v2088 = vstv %s2087
        %v2089 = vadd.f32 %v2069, %v2088
        %v2090 = vadd.f32 %v2074, %v2088
        %v2091 = vadd.f32 %v2079, %v2088
        %v2092 = vadd.f32 %v2084, %v2088
        %s2093 = scalar_lea.vmem %s231, 64 [#allocation9]
        %2094 = vst.msk [vmem:[%s2093] sm:$0xff] %vm907, %v2089
        %2095 = vst.msk [vmem:[%s2093 + $0x8] sm:$0xff] %vm907, %v2090
        %2096 = vst.msk [vmem:[%s2093 + $0x10] sm:$0xff] %vm907, %v2091
        %2097 = vst.msk [vmem:[%s2093 + $0x18] sm:$0xff] %vm907, %v2092
        %s2098 = sld [smem:[#allocation2 + $0xc]]
        %v2099 = vstv %s2098
        %v2100 = vmul.f32 %v283, %v2099
        %v2101 = vmul.f32 %v284, %v2099
        %s2102 = sld [smem:[#allocation2 + $0x1c]]
        %v2103 = vstv %s2102
        %v2104 = vmul.f32 %v286, %v2103
        %v2105 = vmul.f32 %v287, %v2103
        %v2106 = vadd.f32 %v2100, %v2104
        %v2107 = vadd.f32 %v2101, %v2105
        %s2108 = sld [smem:[#allocation2 + $0x2c]]
        %v2109 = vstv %s2108
        %v2110 = vmul.f32 %v289, %v2109
        %v2111 = vmul.f32 %v290, %v2109
        %v2112 = vadd.f32 %v2106, %v2110
        %v2113 = vadd.f32 %v2107, %v2111
        %s2114 = sld [smem:[#allocation2 + $0x3c]]
        %v2115 = vstv %s2114
        %v2116 = vmul.f32 %v292, %v2115
        %v2117 = vmul.f32 %v293, %v2115
        %v2118 = vadd.f32 %v2112, %v2116
        %v2119 = vadd.f32 %v2113, %v2117
        %s2120 = sld [smem:[#allocation2 + $0xd]]
        %v2121 = vstv %s2120
        %v2122 = vmul.f32 %v283, %v2121
        %v2123 = vmul.f32 %v284, %v2121
        %s2124 = sld [smem:[#allocation2 + $0x1d]]
        %v2125 = vstv %s2124
        %v2126 = vmul.f32 %v286, %v2125
        %v2127 = vmul.f32 %v287, %v2125
        %v2128 = vadd.f32 %v2122, %v2126
        %v2129 = vadd.f32 %v2123, %v2127
        %s2130 = sld [smem:[#allocation2 + $0x2d]]
        %v2131 = vstv %s2130
        %v2132 = vmul.f32 %v289, %v2131
        %v2133 = vmul.f32 %v290, %v2131
        %v2134 = vadd.f32 %v2128, %v2132
        %v2135 = vadd.f32 %v2129, %v2133
        %s2136 = sld [smem:[#allocation2 + $0x3d]]
        %v2137 = vstv %s2136
        %v2138 = vmul.f32 %v292, %v2137
        %v2139 = vmul.f32 %v293, %v2137
        %v2140 = vadd.f32 %v2134, %v2138
        %v2141 = vadd.f32 %v2135, %v2139
        %v2143 = vsel %vm338, %v2140, 0
        %v2146 = vsel %vm338, %v2141, 0
        %2148 = vmatprep.subr.mxu0 0.0
        %2149 = vmatpush1.msra.mxu0 %v253
        %2150 = vmatprep.subr.mxu0 0.0
        %2151 = vmatpush1.msra.mxu0 %v254
        %2152 = vmatprep.subr.mxu0 0.0
        %2153 = vmatpush1.msra.mxu0 0.0
        %2154 = vmatprep.subr.mxu0 0.0
        %2155 = vmatpush1.msra.mxu0 0.0
        %2156 = vmatprep.subr.mxu0 0.0
        %2157 = vmatpush1.msra.mxu0 0.0
        %2158 = vmatprep.subr.mxu0 0.0
        %2159 = vmatpush1.msra.mxu0 0.0
        %2160 = vmatprep.subr.mxu0 0.0
        %2161 = vmatpush1.msra.mxu0 0.0
        %2162 = vmatprep.subr.mxu0 0.0
        %2163 = vmatpush1.msra.mxu0 0.0
        %2164 = vmatprep.subr.mxu0 0.0
        %2165 = vmatpush1.msra.mxu0 0.0
        %2166 = vmatprep.subr.mxu0 0.0
        %2167 = vmatpush1.msra.mxu0 0.0
        %2168 = vmatprep.subr.mxu0 0.0
        %2169 = vmatpush1.msra.mxu0 0.0
        %2170 = vmatprep.subr.mxu0 0.0
        %2171 = vmatpush1.msra.mxu0 0.0
        %2172 = vmatprep.subr.mxu0 0.0
        %2173 = vmatpush1.msra.mxu0 0.0
        %2174 = vmatprep.subr.mxu0 0.0
        %2175 = vmatpush1.msra.mxu0 0.0
        %2176 = vmatprep.subr.mxu0 0.0
        %2177 = vmatpush1.msra.mxu0 0.0
        %2178 = vmatprep.subr.mxu0 0.0
        %2179 = vmatpush1.msra.mxu0 0.0
        %2180 = vmatprep.subr.mxu0 0.0
        %2181 = vmatpush1.msra.mxu0 0.0
        %2182 = vmatprep.subr.mxu0 0.0
        %2183 = vmatpush1.msra.mxu0 0.0
        %2184 = vmatprep.subr.mxu0 0.0
        %2185 = vmatpush1.msra.mxu0 0.0
        %2186 = vmatprep.subr.mxu0 0.0
        %2187 = vmatpush1.msra.mxu0 0.0
        %2188 = vmatprep.subr.mxu0 0.0
        %2189 = vmatpush1.msra.mxu0 0.0
        %2190 = vmatprep.subr.mxu0 0.0
        %2191 = vmatpush1.msra.mxu0 0.0
        %2192 = vmatprep.subr.mxu0 0.0
        %2193 = vmatpush1.msra.mxu0 0.0
        %2194 = vmatprep.subr.mxu0 0.0
        %2195 = vmatpush1.msra.mxu0 0.0
        %2196 = vmatprep.subr.mxu0 0.0
        %2197 = vmatpush1.msra.mxu0 0.0
        %2198 = vmatprep.subr.mxu0 0.0
        %2199 = vmatpush1.msra.mxu0 0.0
        %2200 = vmatprep.subr.mxu0 0.0
        %2201 = vmatpush1.msra.mxu0 0.0
        %2202 = vmatprep.subr.mxu0 0.0
        %2203 = vmatpush1.msra.mxu0 0.0
        %2204 = vmatprep.subr.mxu0 0.0
        %2205 = vmatpush1.msra.mxu0 0.0
        %2206 = vmatprep.subr.mxu0 0.0
        %2207 = vmatpush1.msra.mxu0 0.0
        %2208 = vmatprep.subr.mxu0 0.0
        %2209 = vmatpush1.msra.mxu0 0.0
        %2210 = vmatprep.subr.mxu0 0.0
        %2211 = vmatpush1.msra.mxu0 0.0
        %2212 = vmatprep.mubr.f32.mxu0 0.0
        %2213 = vmatmul.mubr.f32.gmra.mrb[0].mxu0 %v2143
        %v2214 = vpop.f32.mrb[0].mxu0
        %v2215 = vadd.f32 0.0, %v2214
        %v2216 = vpop.f32.mrb[0].mxu0
        %2217 = vmatprep.mubr.f32.mxu0 0.0
        %2218 = vmatmul.mubr.f32.gmra.mrb[0].mxu0 %v2146
        %v2219 = vpop.f32.mrb[0].mxu0
        %v2220 = vadd.f32 0.0, %v2219
        %v2221 = vpop.f32.mrb[0].mxu0
        %2222 = vdwg.mxu0
        %v2224 = vsel %vm338, %v2118, 0
        %v2227 = vsel %vm338, %v2119, 0
        %2229 = vmatprep.subr.mxu0 0.0
        %2230 = vmatpush1.msra.mxu0 %v245
        %2231 = vmatprep.subr.mxu0 0.0
        %2232 = vmatpush1.msra.mxu0 %v246
        %2233 = vmatprep.subr.mxu0 0.0
        %2234 = vmatpush1.msra.mxu0 0.0
        %2235 = vmatprep.subr.mxu0 0.0
        %2236 = vmatpush1.msra.mxu0 0.0
        %2237 = vmatprep.subr.mxu0 0.0
        %2238 = vmatpush1.msra.mxu0 0.0
        %2239 = vmatprep.subr.mxu0 0.0
        %2240 = vmatpush1.msra.mxu0 0.0
        %2241 = vmatprep.subr.mxu0 0.0
        %2242 = vmatpush1.msra.mxu0 0.0
        %2243 = vmatprep.subr.mxu0 0.0
        %2244 = vmatpush1.msra.mxu0 0.0
        %2245 = vmatprep.subr.mxu0 0.0
        %2246 = vmatpush1.msra.mxu0 0.0
        %2247 = vmatprep.subr.mxu0 0.0
        %2248 = vmatpush1.msra.mxu0 0.0
        %2249 = vmatprep.subr.mxu0 0.0
        %2250 = vmatpush1.msra.mxu0 0.0
        %2251 = vmatprep.subr.mxu0 0.0
        %2252 = vmatpush1.msra.mxu0 0.0
        %2253 = vmatprep.subr.mxu0 0.0
        %2254 = vmatpush1.msra.mxu0 0.0
        %2255 = vmatprep.subr.mxu0 0.0
        %2256 = vmatpush1.msra.mxu0 0.0
        %2257 = vmatprep.subr.mxu0 0.0
        %2258 = vmatpush1.msra.mxu0 0.0
        %2259 = vmatprep.subr.mxu0 0.0
        %2260 = vmatpush1.msra.mxu0 0.0
        %2261 = vmatprep.subr.mxu0 0.0
        %2262 = vmatpush1.msra.mxu0 0.0
        %2263 = vmatprep.subr.mxu0 0.0
        %2264 = vmatpush1.msra.mxu0 0.0
        %2265 = vmatprep.subr.mxu0 0.0
        %2266 = vmatpush1.msra.mxu0 0.0
        %2267 = vmatprep.subr.mxu0 0.0
        %2268 = vmatpush1.msra.mxu0 0.0
        %2269 = vmatprep.subr.mxu0 0.0
        %2270 = vmatpush1.msra.mxu0 0.0
        %2271 = vmatprep.subr.mxu0 0.0
        %2272 = vmatpush1.msra.mxu0 0.0
        %2273 = vmatprep.subr.mxu0 0.0
        %2274 = vmatpush1.msra.mxu0 0.0
        %2275 = vmatprep.subr.mxu0 0.0
        %2276 = vmatpush1.msra.mxu0 0.0
        %2277 = vmatprep.subr.mxu0 0.0
        %2278 = vmatpush1.msra.mxu0 0.0
        %2279 = vmatprep.subr.mxu0 0.0
        %2280 = vmatpush1.msra.mxu0 0.0
        %2281 = vmatprep.subr.mxu0 0.0
        %2282 = vmatpush1.msra.mxu0 0.0
        %2283 = vmatprep.subr.mxu0 0.0
        %2284 = vmatpush1.msra.mxu0 0.0
        %2285 = vmatprep.subr.mxu0 0.0
        %2286 = vmatpush1.msra.mxu0 0.0
        %2287 = vmatprep.subr.mxu0 0.0
        %2288 = vmatpush1.msra.mxu0 0.0
        %2289 = vmatprep.subr.mxu0 0.0
        %2290 = vmatpush1.msra.mxu0 0.0
        %2291 = vmatprep.subr.mxu0 0.0
        %2292 = vmatpush1.msra.mxu0 0.0
        %2293 = vmatprep.mubr.f32.mxu0 0.0
        %2294 = vmatmul.mubr.f32.gmra.mrb[0].mxu0 %v2224
        %v2295 = vpop.f32.mrb[0].mxu0
        %v2296 = vadd.f32 %v2215, %v2295
        %v2297 = vpop.f32.mrb[0].mxu0
        %2298 = vmatprep.mubr.f32.mxu0 0.0
        %2299 = vmatmul.mubr.f32.gmra.mrb[0].mxu0 %v2227
        %v2300 = vpop.f32.mrb[0].mxu0
        %v2301 = vadd.f32 %v2220, %v2300
        %v2302 = vpop.f32.mrb[0].mxu0
        %2303 = vdwg.mxu0
        %s2304 = sld [smem:[#allocation2 + $0xe]]
        %v2305 = vstv %s2304
        %v2306 = vmul.f32 %v283, %v2305
        %v2307 = vmul.f32 %v284, %v2305
        %s2308 = sld [smem:[#allocation2 + $0x1e]]
        %v2309 = vstv %s2308
        %v2310 = vmul.f32 %v286, %v2309
        %v2311 = vmul.f32 %v287, %v2309
        %v2312 = vadd.f32 %v2306, %v2310
        %v2313 = vadd.f32 %v2307, %v2311
        %s2314 = sld [smem:[#allocation2 + $0x2e]]
        %v2315 = vstv %s2314
        %v2316 = vmul.f32 %v289, %v2315
        %v2317 = vmul.f32 %v290, %v2315
        %v2318 = vadd.f32 %v2312, %v2316
        %v2319 = vadd.f32 %v2313, %v2317
        %s2320 = sld [smem:[#allocation2 + $0x3e]]
        %v2321 = vstv %s2320
        %v2322 = vmul.f32 %v292, %v2321
        %v2323 = vmul.f32 %v293, %v2321
        %v2324 = vadd.f32 %v2318, %v2322
        %v2325 = vadd.f32 %v2319, %v2323
        %s2326 = sld [smem:[#allocation2 + $0xf]]
        %v2327 = vstv %s2326
        %v2328 = vmul.f32 %v283, %v2327
        %v2329 = vmul.f32 %v284, %v2327
        %s2330 = sld [smem:[#allocation2 + $0x1f]]
        %v2331 = vstv %s2330
        %v2332 = vmul.f32 %v286, %v2331
        %v2333 = vmul.f32 %v287, %v2331
        %v2334 = vadd.f32 %v2328, %v2332
        %v2335 = vadd.f32 %v2329, %v2333
        %s2336 = sld [smem:[#allocation2 + $0x2f]]
        %v2337 = vstv %s2336
        %v2338 = vmul.f32 %v289, %v2337
        %v2339 = vmul.f32 %v290, %v2337
        %v2340 = vadd.f32 %v2334, %v2338
        %v2341 = vadd.f32 %v2335, %v2339
        %s2342 = sld [smem:[#allocation2 + $0x3f]]
        %v2343 = vstv %s2342
        %v2344 = vmul.f32 %v292, %v2343
        %v2345 = vmul.f32 %v293, %v2343
        %v2346 = vadd.f32 %v2340, %v2344
        %v2347 = vadd.f32 %v2341, %v2345
        %v2349 = vsel %vm338, %v2346, 0
        %v2352 = vsel %vm338, %v2347, 0
        %2354 = vmatprep.subr.mxu0 0.0
        %2355 = vmatpush1.msra.mxu0 %v253
        %2356 = vmatprep.subr.mxu0 0.0
        %2357 = vmatpush1.msra.mxu0 %v254
        %2358 = vmatprep.subr.mxu0 0.0
        %2359 = vmatpush1.msra.mxu0 0.0
        %2360 = vmatprep.subr.mxu0 0.0
        %2361 = vmatpush1.msra.mxu0 0.0
        %2362 = vmatprep.subr.mxu0 0.0
        %2363 = vmatpush1.msra.mxu0 0.0
        %2364 = vmatprep.subr.mxu0 0.0
        %2365 = vmatpush1.msra.mxu0 0.0
        %2366 = vmatprep.subr.mxu0 0.0
        %2367 = vmatpush1.msra.mxu0 0.0
        %2368 = vmatprep.subr.mxu0 0.0
        %2369 = vmatpush1.msra.mxu0 0.0
        %2370 = vmatprep.subr.mxu0 0.0
        %2371 = vmatpush1.msra.mxu0 0.0
        %2372 = vmatprep.subr.mxu0 0.0
        %2373 = vmatpush1.msra.mxu0 0.0
        %2374 = vmatprep.subr.mxu0 0.0
        %2375 = vmatpush1.msra.mxu0 0.0
        %2376 = vmatprep.subr.mxu0 0.0
        %2377 = vmatpush1.msra.mxu0 0.0
        %2378 = vmatprep.subr.mxu0 0.0
        %2379 = vmatpush1.msra.mxu0 0.0
        %2380 = vmatprep.subr.mxu0 0.0
        %2381 = vmatpush1.msra.mxu0 0.0
        %2382 = vmatprep.subr.mxu0 0.0
        %2383 = vmatpush1.msra.mxu0 0.0
        %2384 = vmatprep.subr.mxu0 0.0
        %2385 = vmatpush1.msra.mxu0 0.0
        %2386 = vmatprep.subr.mxu0 0.0
        %2387 = vmatpush1.msra.mxu0 0.0
        %2388 = vmatprep.subr.mxu0 0.0
        %2389 = vmatpush1.msra.mxu0 0.0
        %2390 = vmatprep.subr.mxu0 0.0
        %2391 = vmatpush1.msra.mxu0 0.0
        %2392 = vmatprep.subr.mxu0 0.0
        %2393 = vmatpush1.msra.mxu0 0.0
        %2394 = vmatprep.subr.mxu0 0.0
        %2395 = vmatpush1.msra.mxu0 0.0
        %2396 = vmatprep.subr.mxu0 0.0
        %2397 = vmatpush1.msra.mxu0 0.0
        %2398 = vmatprep.subr.mxu0 0.0
        %2399 = vmatpush1.msra.mxu0 0.0
        %2400 = vmatprep.subr.mxu0 0.0
        %2401 = vmatpush1.msra.mxu0 0.0
        %2402 = vmatprep.subr.mxu0 0.0
        %2403 = vmatpush1.msra.mxu0 0.0
        %2404 = vmatprep.subr.mxu0 0.0
        %2405 = vmatpush1.msra.mxu0 0.0
        %2406 = vmatprep.subr.mxu0 0.0
        %2407 = vmatpush1.msra.mxu0 0.0
        %2408 = vmatprep.subr.mxu0 0.0
        %2409 = vmatpush1.msra.mxu0 0.0
        %2410 = vmatprep.subr.mxu0 0.0
        %2411 = vmatpush1.msra.mxu0 0.0
        %2412 = vmatprep.subr.mxu0 0.0
        %2413 = vmatpush1.msra.mxu0 0.0
        %2414 = vmatprep.subr.mxu0 0.0
        %2415 = vmatpush1.msra.mxu0 0.0
        %2416 = vmatprep.subr.mxu0 0.0
        %2417 = vmatpush1.msra.mxu0 0.0
        %2418 = vmatprep.mubr.f32.mxu0 0.0
        %2419 = vmatmul.mubr.f32.gmra.mrb[0].mxu0 %v2349
        %v2420 = vpop.f32.mrb[0].mxu0
        %v2421 = vadd.f32 0.0, %v2420
        %v2422 = vpop.f32.mrb[0].mxu0
        %2423 = vmatprep.mubr.f32.mxu0 0.0
        %2424 = vmatmul.mubr.f32.gmra.mrb[0].mxu0 %v2352
        %v2425 = vpop.f32.mrb[0].mxu0
        %v2426 = vadd.f32 0.0, %v2425
        %v2427 = vpop.f32.mrb[0].mxu0
        %2428 = vdwg.mxu0
        %v2430 = vsel %vm338, %v2324, 0
        %v2433 = vsel %vm338, %v2325, 0
        %2435 = vmatprep.subr.mxu0 0.0
        %2436 = vmatpush1.msra.mxu0 %v245
        %2437 = vmatprep.subr.mxu0 0.0
        %2438 = vmatpush1.msra.mxu0 %v246
        %2439 = vmatprep.subr.mxu0 0.0
        %2440 = vmatpush1.msra.mxu0 0.0
        %2441 = vmatprep.subr.mxu0 0.0
        %2442 = vmatpush1.msra.mxu0 0.0
        %2443 = vmatprep.subr.mxu0 0.0
        %2444 = vmatpush1.msra.mxu0 0.0
        %2445 = vmatprep.subr.mxu0 0.0
        %2446 = vmatpush1.msra.mxu0 0.0
        %2447 = vmatprep.subr.mxu0 0.0
        %2448 = vmatpush1.msra.mxu0 0.0
        %2449 = vmatprep.subr.mxu0 0.0
        %2450 = vmatpush1.msra.mxu0 0.0
        %2451 = vmatprep.subr.mxu0 0.0
        %2452 = vmatpush1.msra.mxu0 0.0
        %2453 = vmatprep.subr.mxu0 0.0
        %2454 = vmatpush1.msra.mxu0 0.0
        %2455 = vmatprep.subr.mxu0 0.0
        %2456 = vmatpush1.msra.mxu0 0.0
        %2457 = vmatprep.subr.mxu0 0.0
        %2458 = vmatpush1.msra.mxu0 0.0
        %2459 = vmatprep.subr.mxu0 0.0
        %2460 = vmatpush1.msra.mxu0 0.0
        %2461 = vmatprep.subr.mxu0 0.0
        %2462 = vmatpush1.msra.mxu0 0.0
        %2463 = vmatprep.subr.mxu0 0.0
        %2464 = vmatpush1.msra.mxu0 0.0
        %2465 = vmatprep.subr.mxu0 0.0
        %2466 = vmatpush1.msra.mxu0 0.0
        %2467 = vmatprep.subr.mxu0 0.0
        %2468 = vmatpush1.msra.mxu0 0.0
        %2469 = vmatprep.subr.mxu0 0.0
        %2470 = vmatpush1.msra.mxu0 0.0
        %2471 = vmatprep.subr.mxu0 0.0
        %2472 = vmatpush1.msra.mxu0 0.0
        %2473 = vmatprep.subr.mxu0 0.0
        %2474 = vmatpush1.msra.mxu0 0.0
        %2475 = vmatprep.subr.mxu0 0.0
        %2476 = vmatpush1.msra.mxu0 0.0
        %2477 = vmatprep.subr.mxu0 0.0
        %2478 = vmatpush1.msra.mxu0 0.0
        %2479 = vmatprep.subr.mxu0 0.0
        %2480 = vmatpush1.msra.mxu0 0.0
        %2481 = vmatprep.subr.mxu0 0.0
        %2482 = vmatpush1.msra.mxu0 0.0
        %2483 = vmatprep.subr.mxu0 0.0
        %2484 = vmatpush1.msra.mxu0 0.0
        %2485 = vmatprep.subr.mxu0 0.0
        %2486 = vmatpush1.msra.mxu0 0.0
        %2487 = vmatprep.subr.mxu0 0.0
        %2488 = vmatpush1.msra.mxu0 0.0
        %2489 = vmatprep.subr.mxu0 0.0
        %2490 = vmatpush1.msra.mxu0 0.0
        %2491 = vmatprep.subr.mxu0 0.0
        %2492 = vmatpush1.msra.mxu0 0.0
        %2493 = vmatprep.subr.mxu0 0.0
        %2494 = vmatpush1.msra.mxu0 0.0
        %2495 = vmatprep.subr.mxu0 0.0
        %2496 = vmatpush1.msra.mxu0 0.0
        %2497 = vmatprep.subr.mxu0 0.0
        %2498 = vmatpush1.msra.mxu0 0.0
        %2499 = vmatprep.mubr.f32.mxu0 0.0
        %2500 = vmatmul.mubr.f32.gmra.mrb[0].mxu0 %v2430
        %v2501 = vpop.f32.mrb[0].mxu0
        %v2502 = vadd.f32 %v2421, %v2501
        %v2503 = vpop.f32.mrb[0].mxu0
        %2504 = vmatprep.mubr.f32.mxu0 0.0
        %2505 = vmatmul.mubr.f32.gmra.mrb[0].mxu0 %v2433
        %v2506 = vpop.f32.mrb[0].mxu0
        %v2507 = vadd.f32 %v2426, %v2506
        %v2508 = vpop.f32.mrb[0].mxu0
        %2509 = vdwg.mxu0
        %2510 = vmatprep.subr.mxu0 0.0
        %2511 = vmatpush1.msra.mxu0 %v2502
        %2512 = vmatprep.subr.mxu0 0.0
        %2513 = vmatpush1.msra.mxu0 %v2507
        %2514 = vmatprep.subr.mxu0 0.0
        %2515 = vmatpush1.msra.mxu0 0.0
        %2516 = vmatprep.subr.mxu0 0.0
        %2517 = vmatpush1.msra.mxu0 0.0
        %2518 = vmatprep.subr.mxu0 0.0
        %2519 = vmatpush1.msra.mxu0 0.0
        %2520 = vmatprep.subr.mxu0 0.0
        %2521 = vmatpush1.msra.mxu0 0.0
        %2522 = vmatprep.subr.mxu0 0.0
        %2523 = vmatpush1.msra.mxu0 0.0
        %2524 = vmatprep.subr.mxu0 0.0
        %2525 = vmatpush1.msra.mxu0 0.0
        %2526 = vmatprep.subr.mxu0 0.0
        %2527 = vmatpush1.msra.mxu0 0.0
        %2528 = vmatprep.subr.mxu0 0.0
        %2529 = vmatpush1.msra.mxu0 0.0
        %2530 = vmatprep.subr.mxu0 0.0
        %2531 = vmatpush1.msra.mxu0 0.0
        %2532 = vmatprep.subr.mxu0 0.0
        %2533 = vmatpush1.msra.mxu0 0.0
        %2534 = vmatprep.subr.mxu0 0.0
        %2535 = vmatpush1.msra.mxu0 0.0
        %2536 = vmatprep.subr.mxu0 0.0
        %2537 = vmatpush1.msra.mxu0 0.0
        %2538 = vmatprep.subr.mxu0 0.0
        %2539 = vmatpush1.msra.mxu0 0.0
        %2540 = vmatprep.subr.mxu0 0.0
        %2541 = vmatpush1.msra.mxu0 0.0
        %2542 = vmatprep.subr.mxu0 0.0
        %2543 = vmatpush1.msra.mxu0 0.0
        %2544 = vmatprep.subr.mxu0 0.0
        %2545 = vmatpush1.msra.mxu0 0.0
        %2546 = vmatprep.subr.mxu0 0.0
        %2547 = vmatpush1.msra.mxu0 0.0
        %2548 = vmatprep.subr.mxu0 0.0
        %2549 = vmatpush1.msra.mxu0 0.0
        %2550 = vmatprep.subr.mxu0 0.0
        %2551 = vmatpush1.msra.mxu0 0.0
        %2552 = vmatprep.subr.mxu0 0.0
        %2553 = vmatpush1.msra.mxu0 0.0
        %2554 = vmatprep.subr.mxu0 0.0
        %2555 = vmatpush1.msra.mxu0 0.0
        %2556 = vmatprep.subr.mxu0 0.0
        %2557 = vmatpush1.msra.mxu0 0.0
        %2558 = vmatprep.subr.mxu0 0.0
        %2559 = vmatpush1.msra.mxu0 0.0
        %2560 = vmatprep.subr.mxu0 0.0
        %2561 = vmatpush1.msra.mxu0 0.0
        %2562 = vmatprep.subr.mxu0 0.0
        %2563 = vmatpush1.msra.mxu0 0.0
        %2564 = vmatprep.subr.mxu0 0.0
        %2565 = vmatpush1.msra.mxu0 0.0
        %2566 = vmatprep.subr.mxu0 0.0
        %2567 = vmatpush1.msra.mxu0 0.0
        %2568 = vmatprep.subr.mxu0 0.0
        %2569 = vmatpush1.msra.mxu0 0.0
        %2570 = vmatprep.subr.mxu0 0.0
        %2571 = vmatpush1.msra.mxu0 0.0
        %2572 = vmatprep.subr.mxu0 0.0
        %2573 = vmatpush1.msra.mxu0 0.0
        %2574 = vmatprep.mubr.f32.mxu0 0.0
        %2575 = vmatmul.mubr.f32.gmra.mrb[0].mxu0 %v708
        %v2576 = vpop.f32.mrb[0].mxu0
        %v2577 = vadd.f32 0.0, %v2576
        %v2578 = vpop.f32.mrb[0].mxu0
        %2579 = vmatprep.mubr.f32.mxu0 0.0
        %2580 = vmatmul.mubr.f32.gmra.mrb[0].mxu0 %v711
        %v2581 = vpop.f32.mrb[0].mxu0
        %v2582 = vadd.f32 0.0, %v2581
        %v2583 = vpop.f32.mrb[0].mxu0
        %2584 = vmatprep.mubr.f32.mxu0 0.0
        %2585 = vmatmul.mubr.f32.gmra.mrb[0].mxu0 %v714
        %v2586 = vpop.f32.mrb[0].mxu0
        %v2587 = vadd.f32 0.0, %v2586
        %v2588 = vpop.f32.mrb[0].mxu0
        %2589 = vmatprep.mubr.f32.mxu0 0.0
        %2590 = vmatmul.mubr.f32.gmra.mrb[0].mxu0 %v717
        %v2591 = vpop.f32.mrb[0].mxu0
        %v2592 = vadd.f32 0.0, %v2591
        %v2593 = vpop.f32.mrb[0].mxu0
        %2594 = vdwg.mxu0
        %2595 = vmatprep.subr.mxu0 0.0
        %2596 = vmatpush1.msra.mxu0 %v2296
        %2597 = vmatprep.subr.mxu0 0.0
        %2598 = vmatpush1.msra.mxu0 %v2301
        %2599 = vmatprep.subr.mxu0 0.0
        %2600 = vmatpush1.msra.mxu0 0.0
        %2601 = vmatprep.subr.mxu0 0.0
        %2602 = vmatpush1.msra.mxu0 0.0
        %2603 = vmatprep.subr.mxu0 0.0
        %2604 = vmatpush1.msra.mxu0 0.0
        %2605 = vmatprep.subr.mxu0 0.0
        %2606 = vmatpush1.msra.mxu0 0.0
        %2607 = vmatprep.subr.mxu0 0.0
        %2608 = vmatpush1.msra.mxu0 0.0
        %2609 = vmatprep.subr.mxu0 0.0
        %2610 = vmatpush1.msra.mxu0 0.0
        %2611 = vmatprep.subr.mxu0 0.0
        %2612 = vmatpush1.msra.mxu0 0.0
        %2613 = vmatprep.subr.mxu0 0.0
        %2614 = vmatpush1.msra.mxu0 0.0
        %2615 = vmatprep.subr.mxu0 0.0
        %2616 = vmatpush1.msra.mxu0 0.0
        %2617 = vmatprep.subr.mxu0 0.0
        %2618 = vmatpush1.msra.mxu0 0.0
        %2619 = vmatprep.subr.mxu0 0.0
        %2620 = vmatpush1.msra.mxu0 0.0
        %2621 = vmatprep.subr.mxu0 0.0
        %2622 = vmatpush1.msra.mxu0 0.0
        %2623 = vmatprep.subr.mxu0 0.0
        %2624 = vmatpush1.msra.mxu0 0.0
        %2625 = vmatprep.subr.mxu0 0.0
        %2626 = vmatpush1.msra.mxu0 0.0
        %2627 = vmatprep.subr.mxu0 0.0
        %2628 = vmatpush1.msra.mxu0 0.0
        %2629 = vmatprep.subr.mxu0 0.0
        %2630 = vmatpush1.msra.mxu0 0.0
        %2631 = vmatprep.subr.mxu0 0.0
        %2632 = vmatpush1.msra.mxu0 0.0
        %2633 = vmatprep.subr.mxu0 0.0
        %2634 = vmatpush1.msra.mxu0 0.0
        %2635 = vmatprep.subr.mxu0 0.0
        %2636 = vmatpush1.msra.mxu0 0.0
        %2637 = vmatprep.subr.mxu0 0.0
        %2638 = vmatpush1.msra.mxu0 0.0
        %2639 = vmatprep.subr.mxu0 0.0
        %2640 = vmatpush1.msra.mxu0 0.0
        %2641 = vmatprep.subr.mxu0 0.0
        %2642 = vmatpush1.msra.mxu0 0.0
        %2643 = vmatprep.subr.mxu0 0.0
        %2644 = vmatpush1.msra.mxu0 0.0
        %2645 = vmatprep.subr.mxu0 0.0
        %2646 = vmatpush1.msra.mxu0 0.0
        %2647 = vmatprep.subr.mxu0 0.0
        %2648 = vmatpush1.msra.mxu0 0.0
        %2649 = vmatprep.subr.mxu0 0.0
        %2650 = vmatpush1.msra.mxu0 0.0
        %2651 = vmatprep.subr.mxu0 0.0
        %2652 = vmatpush1.msra.mxu0 0.0
        %2653 = vmatprep.subr.mxu0 0.0
        %2654 = vmatpush1.msra.mxu0 0.0
        %2655 = vmatprep.subr.mxu0 0.0
        %2656 = vmatpush1.msra.mxu0 0.0
        %2657 = vmatprep.subr.mxu0 0.0
        %2658 = vmatpush1.msra.mxu0 0.0
        %2659 = vmatprep.mubr.f32.mxu0 0.0
        %2660 = vmatmul.mubr.f32.gmra.mrb[0].mxu0 %v805
        %v2661 = vpop.f32.mrb[0].mxu0
        %v2662 = vadd.f32 %v2577, %v2661
        %v2663 = vpop.f32.mrb[0].mxu0
        %2664 = vmatprep.mubr.f32.mxu0 0.0
        %2665 = vmatmul.mubr.f32.gmra.mrb[0].mxu0 %v808
        %v2666 = vpop.f32.mrb[0].mxu0
        %v2667 = vadd.f32 %v2582, %v2666
        %v2668 = vpop.f32.mrb[0].mxu0
        %2669 = vmatprep.mubr.f32.mxu0 0.0
        %2670 = vmatmul.mubr.f32.gmra.mrb[0].mxu0 %v811
        %v2671 = vpop.f32.mrb[0].mxu0
        %v2672 = vadd.f32 %v2587, %v2671
        %v2673 = vpop.f32.mrb[0].mxu0
        %2674 = vmatprep.mubr.f32.mxu0 0.0
        %2675 = vmatmul.mubr.f32.gmra.mrb[0].mxu0 %v814
        %v2676 = vpop.f32.mrb[0].mxu0
        %v2677 = vadd.f32 %v2592, %v2676
        %v2678 = vpop.f32.mrb[0].mxu0
        %2679 = vdwg.mxu0
        %s2680 = sld [smem:[#allocation7 + $0x3]]
        %v2681 = vstv %s2680
        %v2682 = vadd.f32 %v2662, %v2681
        %v2683 = vadd.f32 %v2667, %v2681
        %v2684 = vadd.f32 %v2672, %v2681
        %v2685 = vadd.f32 %v2677, %v2681
        %s2686 = scalar_lea.vmem %s231, 96 [#allocation9]
        %2687 = vst.msk [vmem:[%s2686] sm:$0xff] %vm907, %v2682
        %2688 = vst.msk [vmem:[%s2686 + $0x8] sm:$0xff] %vm907, %v2683
        %2689 = vst.msk [vmem:[%s2686 + $0x10] sm:$0xff] %vm907, %v2684
        %2690 = vst.msk [vmem:[%s2686 + $0x18] sm:$0xff] %vm907, %v2685
        %s2691 = sand.u32 %s114, 1
        %s2692 = scalar_lea.sflag [#allocation4], %s2691
        %s2693 = sand.u32 %s114, 1
        %s2694 = smul.addr %s2693, 128
        %s2695 = scalar_lea.vmem [#allocation9], %s2694
        // Predicated region
        $region45: #{tpu_custom_call.1} parent=31 // pred_check
          %p2696 = pneg %p124
        $region46: #{tpu_custom_call.1} parent=31 // pred_check_branch
          %2698 = sbr.rel (%p2696) target = $region48
        $region47: #{tpu_custom_call.1} parent=31 // pred_region
          %s2699 = smul.u32 4, %s27
          %s2701 = ssub.s32 2048, 2048
          %2702 = vsyncadd %s2692, %s2701
          %s2703 = smul.addr %s26, 16
          %s2704 = sadd.s32 %s2699, %s2703
          %s2705 = smul.addr %s2704, 128
          %s2706 = scalar_lea.hbm %s3, %s2705
          %s2707 = sshll.u32 %s2695, 4
          %s2708 = int_to_ptr.vmem [resolvable:$true] %s2707
          %2713 = dma.vmem_to_hbm [thread:$0]  %s2708, 2048, %s2706, %s2692, 128, 128, 8
        $region48: #{tpu_custom_call.1} parent=31 // pred_fallthru
          _
      $region32: #{tpu_custom_call.1} parent=5 // pred_fallthru
        _
      %p2714 = scmp.le.s32.totalorder 2, %s17
      // Predicated region
      $region49: #{tpu_custom_call.1} parent=5 // pred_check
        %p2715 = pneg %p2714
      $region50: #{tpu_custom_call.1} parent=5 // pred_check_branch
        %2717 = sbr.rel (%p2715) target = $region52
      $region51: #{tpu_custom_call.1} parent=5 // pred_region
        %s2718 = ssub.s32 %s17, 2
        // Predicated region
        $region53: #{tpu_custom_call.1} parent=51 // pred_check
          %p2719 = pneg %p130
        $region54: #{tpu_custom_call.1} parent=51 // pred_check_branch
          %2721 = sbr.rel (%p2719) target = $region56
        $region55: #{tpu_custom_call.1} parent=51 // pred_region
          %s2722 = sand.u32 %s115, 1
          %s2723 = scalar_lea.sflag [#allocation4], %s2722
          %s2724 = sand.u32 %s115, 1
          %s2725 = smul.addr %s2724, 128
          %s2726 = scalar_lea.vmem [#allocation9], %s2725
          %2727 = dma.done %s2723, 2048
        $region56: #{tpu_custom_call.1} parent=51 // pred_fallthru
          _
      $region52: #{tpu_custom_call.1} parent=5 // pred_fallthru
        _
    $region6: #{tpu_custom_call.1} parent=1 // loop_footer
      %s21 = sadd.s32 1, %s17
    $region7: #{tpu_custom_call.1} parent=1 // loop_footer_branch
      %16 = sbr.rel target = $region3
    $region8: #{tpu_custom_call.1} parent=1 // loop_exit
      _
    %2728 = vsyncpa [#allocation3], 1
    %s2729 = scalar_lea.sflag [#allocation3], 1
    %2730 = vsyncpa %s2729, 1
    %2731 = vsyncpa [#allocation4], 1
    %s2732 = scalar_lea.sflag [#allocation4], 1
    %2733 = vsyncpa %s2732, 1
    %2734 = vsyncpa [#allocation5], 1
    %s2735 = scalar_lea.sflag [#allocation5], 1
    %2736 = vsyncpa %s2735, 1
    %2737 = vsyncpa [#allocation6], 1
    %s2738 = scalar_lea.sflag [#allocation6], 1
    %2739 = vsyncpa %s2738, 1

</llo_original>
